<compile_context>
chip_gen: v6e
topology: v6e:2x2x1
jax: 0.10.0
libtpu: 0.0.40
codegen_flags: <defaults>
</compile_context>

<pallas_src>
import functools
import math

import jax
import jax.numpy as jnp
from jax.experimental import pallas as pl
from jax.experimental.pallas import tpu as pltpu

HIDDEN_LSTM = 64        # module's output_lstm_shape
HIDDEN_LSTM_PAD = 128   # lane-padded hidden size used inside the kernel
HIDDEN_FC = 32          # module's hidden_layer_shape
NUM_ACTIONS = 3
SIDE_PAD = 128          # lane-padded width of [portfolio_value | num_of_shares]
OUT_PAD = 128           # lane-padded output width (3 * num_stocks -> 128)
MATMUL_DTYPE = jnp.bfloat16   # MXU operand dtype; accumulation stays f32


def _round_up(n, m):
    return (n + m - 1) // m * m


def _dqn_kernel(x_ref, side_ref,
                wih0_ref, whh0_ref, b0_ref,
                w1cat_ref, b1_ref,
                w1hs_ref, bfc1_ref,
                w2_ref, bfc2_ref,
                out_ref):
    T, TB, F = x_ref.shape
    HP = whh0_ref.shape[0]
    G = 4 * HP

    mm = functools.partial(jnp.dot, preferred_element_type=jnp.float32)
    mdt = whh0_ref.dtype   # MXU operand dtype (bf16)

    # ---- Hoisted layer-0 input projection ------------------------------------
    # No recurrent dependency: one MXU matmul with M = T*TILE_B, bias folded in.
    x_all = x_ref[...].reshape(T * TB, F).astype(mdt)
    gates0_all = mm(x_all, wih0_ref[...]) + b0_ref[...]          # (T*TB, 4*HP) f32

    # Hoisted weight loads and the (1,G)->(TB,G) bias broadcast (broadcasts are
    # not CSE'd, so do it once outside the unrolled recurrence).
    whh0 = whh0_ref[...]
    w1cat = w1cat_ref[...]                                       # (2*HP, 4*HP)
    b1 = jnp.broadcast_to(b1_ref[...], (TB, G))

    def gate_math(g, c):
        # Gate blocks are 128-lane aligned -> full-vreg lane slices. Padded
        # state lanes stay exactly zero (zero-padded weights/bias, zero init).
        i = jax.nn.sigmoid(g[:, 0 * HP:1 * HP])
        f = jax.nn.sigmoid(g[:, 1 * HP:2 * HP])
        gg = jnp.tanh(g[:, 2 * HP:3 * HP])
        o = jax.nn.sigmoid(g[:, 3 * HP:4 * HP])
        c_new = f * c + i * gg
        h_new = o * jnp.tanh(c_new)
        return h_new, c_new

    zeros = jnp.zeros((TB, HP), jnp.float32)
    h1, c1, h2, c2 = zeros, zeros, zeros, zeros

    # Fully unrolled time loop (T small and static).
    for t in range(T):
        # Layer 0: recurrent matmul only (input part pre-computed above).
        g0 = gates0_all[t * TB:(t + 1) * TB, :] + mm(h1.astype(mdt), whh0)
        h1, c1 = gate_math(g0, c1)
        # Layer 1: input + recurrent fused into one MXU call via lane concat.
        hcat = jnp.concatenate([h1, h2], axis=1).astype(mdt)     # (TB, 2*HP)
        g1 = mm(hcat, w1cat) + b1
        h2, c2 = gate_math(g1, c2)

    # ---- fc1: Linear(64 + 1 + num_stocks -> 32) + ReLU ------------------------
    # torch.cat expressed as one lane-concat + one fused matmul.
    feat = jnp.concatenate([h2, side_ref[...]], axis=1).astype(mdt)  # (TB, HP+SIDE_PAD)
    z = jnp.maximum(mm(feat, w1hs_ref[...]) + bfc1_ref[...], 0.0)

    # ---- fc2: Linear(32 -> 3*num_stocks), written lane-dense (padded to 128) --
    out_ref[...] = mm(z.astype(mdt), w2_ref[...]) + bfc2_ref[...]


def multi_stock_dqn_forward(params, x_price, x_portfolio_value, x_num_of_shares,
                            num_stocks, *, tile_b=None):
    """MultiStockDQN forward. Returns (B, num_stocks, 3)."""
    B, T, F = x_price.shape
    out_dim = NUM_ACTIONS * num_stocks

    if tile_b is None:
        # Multiple of 8 (sublane tile); cap at 128 so per-tile scratch stays far
        # below the 32 MiB default scoped VMEM (safe on v7x's 64 MiB physical).
        tile_b = min(_round_up(B, 8), 128)
    b_pad = _round_up(B, tile_b)
    grid = (b_pad // tile_b,)

    # Time-major x so the hoisted gate buffer is read with static row slices;
    # batch padded to whole tiles (padded rows are sliced off below).
    x = jnp.zeros((b_pad, T, F), jnp.float32).at[:B].set(x_price.astype(jnp.float32))
    x = jnp.transpose(x, (1, 0, 2))                        # (T, b_pad, F)

    # Side input: [portfolio_value | num_of_shares | zeros] as one 128-lane block.
    pv = x_portfolio_value.reshape(-1, 1).astype(jnp.float32)
    sh = x_num_of_shares.reshape(-1, num_stocks).astype(jnp.float32)
    side = jnp.zeros((b_pad, SIDE_PAD), jnp.float32)
    side = side.at[:B, 0:1].set(pv).at[:B, 1:1 + num_stocks].set(sh)

    weights = (params["wih0"], params["whh0"], params["b0"],
               params["w1cat"], params["b1"],
               params["w1hs"], params["bfc1"],
               params["w2"], params["bfc2"])

    in_specs = [
        pl.BlockSpec((T, tile_b, F), lambda i: (0, i, 0)),       # x, batch-tiled
        pl.BlockSpec((tile_b, SIDE_PAD), lambda i: (i, 0)),      # side, batch-tiled
    ] + [pl.BlockSpec(w.shape, lambda i: (0, 0)) for w in weights]  # weights resident

    out = pl.pallas_call(
        _dqn_kernel,
        out_shape=jax.ShapeDtypeStruct((b_pad, OUT_PAD), jnp.float32),
        grid=grid,
        in_specs=in_specs,
        out_specs=pl.BlockSpec((tile_b, OUT_PAD), lambda i: (i, 0)),
        compiler_params=pltpu.CompilerParams(
            dimension_semantics=("parallel",)),    # megacore batch sharding
    )(x, side, *weights)

    return out[:B, :out_dim].reshape(B, num_stocks, NUM_ACTIONS)


def init_params(key, num_stocks, input_size_per_stock,
                input_size_balance_value, input_size_num_of_shares):
    """PyTorch-style uniform(-1/sqrt(fan), 1/sqrt(fan)) init.

    Returns (kernel_params, raw): `raw` holds PyTorch-layout weights for the
    reference; `kernel_params` holds pre-transposed, gate-block-padded,
    lane-padded (and where useful, pre-concatenated) tensors the kernel uses.
    """
    F = num_stocks * input_size_per_stock
    H, HP = HIDDEN_LSTM, HIDDEN_LSTM_PAD
    fc1_in = H + input_size_balance_value + input_size_num_of_shares
    side_dim = input_size_balance_value + input_size_num_of_shares
    out_dim = NUM_ACTIONS * num_stocks
    assert side_dim <= SIDE_PAD and out_dim <= OUT_PAD

    keys = jax.random.split(key, 12)
    k = iter(keys)

    def u(shape, bound, kk):
        return jax.random.uniform(kk, shape, jnp.float32, -bound, bound)

    s_lstm = 1.0 / math.sqrt(H)
    wih0 = u((4 * H, F), s_lstm, next(k))
    whh0 = u((4 * H, H), s_lstm, next(k))
    bih0 = u((4 * H,), s_lstm, next(k))
    bhh0 = u((4 * H,), s_lstm, next(k))
    wih1 = u((4 * H, H), s_lstm, next(k))
    whh1 = u((4 * H, H), s_lstm, next(k))
    bih1 = u((4 * H,), s_lstm, next(k))
    bhh1 = u((4 * H,), s_lstm, next(k))

    s_fc1 = 1.0 / math.sqrt(fc1_in)
    w_fc1 = u((HIDDEN_FC, fc1_in), s_fc1, next(k))
    b_fc1 = u((HIDDEN_FC,), s_fc1, next(k))

    s_fc2 = 1.0 / math.sqrt(HIDDEN_FC)
    w_fc2 = u((out_dim, HIDDEN_FC), s_fc2, next(k))
    b_fc2 = u((out_dim,), s_fc2, next(k))

    def pad_lstm(w_ih, w_hh, b_ih, b_hh, in_pad):
        """Transpose + zero-pad each of the 4 gate blocks (i,f,g,o) to HP=128
        lanes; zero pad rows/cols keep padded state lanes exactly zero."""
        in_size = w_ih.shape[1]
        wih_p = jnp.zeros((in_pad, 4 * HP), jnp.float32)
        whh_p = jnp.zeros((HP, 4 * HP), jnp.float32)
        b_p = jnp.zeros((1, 4 * HP), jnp.float32)
        b = b_ih + b_hh
        for g in range(4):
            wih_p = wih_p.at[:in_size, g * HP:g * HP + H].set(w_ih[g * H:(g + 1) * H, :].T)
            whh_p = whh_p.at[:H, g * HP:g * HP + H].set(w_hh[g * H:(g + 1) * H, :].T)
            b_p = b_p.at[0, g * HP:g * HP + H].set(b[g * H:(g + 1) * H])
        return wih_p, whh_p, b_p

    wih0_p, whh0_p, b0_p = pad_lstm(wih0, whh0, bih0, bhh0, in_pad=F)
    wih1_p, whh1_p, b1_p = pad_lstm(wih1, whh1, bih1, bhh1, in_pad=HP)

    # Layer-1 fused weight: [h1 | h2] @ [W_ih1 ; W_hh1]  (K = 2*HP).
    w1cat = jnp.concatenate([wih1_p, whh1_p], axis=0)            # (2*HP, 4*HP)

    # fc1 fused weight: [h2 | side] @ [W1h ; W1s]  (K = HP + SIDE_PAD).
    w1h = jnp.zeros((HP, HIDDEN_FC), jnp.float32).at[:H, :].set(w_fc1[:, :H].T)
    w1s = jnp.zeros((SIDE_PAD, HIDDEN_FC), jnp.float32).at[:side_dim, :].set(w_fc1[:, H:].T)
    w1hs = jnp.concatenate([w1h, w1s], axis=0)                   # (HP+SIDE_PAD, 32)

    w2p = jnp.zeros((HIDDEN_FC, OUT_PAD), jnp.float32).at[:, :out_dim].set(w_fc2.T)
    b2p = jnp.zeros((1, OUT_PAD), jnp.float32).at[0, :out_dim].set(b_fc2)

    params = {
        "wih0": wih0_p.astype(MATMUL_DTYPE), "whh0": whh0_p.astype(MATMUL_DTYPE),
        "b0": b0_p,
        "w1cat": w1cat.astype(MATMUL_DTYPE), "b1": b1_p,
        "w1hs": w1hs.astype(MATMUL_DTYPE), "bfc1": b_fc1[None, :],
        "w2": w2p.astype(MATMUL_DTYPE), "bfc2": b2p,
    }
    raw = {"wih0": wih0, "whh0": whh0, "bih0": bih0, "bhh0": bhh0,
           "wih1": wih1, "whh1": whh1, "bih1": bih1, "bhh1": bhh1,
           "w_fc1": w_fc1, "b_fc1": b_fc1, "w_fc2": w_fc2, "b_fc2": b_fc2}
    return params, raw


def reference_forward(raw, x_price, pv, sh, num_stocks, matmul_dtype=None):
    """Pure-JAX reference of the PyTorch forward. If `matmul_dtype` is set,
    matmul operands are cast to it (f32 accumulation), mirroring the kernel."""
    H = HIDDEN_LSTM
    B, T, _ = x_price.shape

    def cast(a):
        return a.astype(matmul_dtype) if matmul_dtype is not None else a

    def mm(a, b):
        return jnp.dot(cast(a), cast(b), preferred_element_type=jnp.float32)

    def cell(inp, h, c, wih, whh, bih, bhh):
        g = mm(inp, wih.T) + bih + mm(h, whh.T) + bhh
        i = jax.nn.sigmoid(g[:, 0 * H:1 * H])
        f = jax.nn.sigmoid(g[:, 1 * H:2 * H])
        gg = jnp.tanh(g[:, 2 * H:3 * H])
        o = jax.nn.sigmoid(g[:, 3 * H:4 * H])
        c = f * c + i * gg
        h = o * jnp.tanh(c)
        return h, c

    h1 = c1 = h2 = c2 = jnp.zeros((B, H), jnp.float32)
    for t in range(T):
        xt = x_price[:, t, :].astype(jnp.float32)
        h1, c1 = cell(xt, h1, c1, raw["wih0"], raw["whh0"], raw["bih0"], raw["bhh0"])
        h2, c2 = cell(h1, h2, c2, raw["wih1"], raw["whh1"], raw["bih1"], raw["bhh1"])

    x = jnp.concatenate([h2, pv.reshape(-1, 1), sh.reshape(-1, num_stocks)], axis=1)
    x = jax.nn.relu(mm(x, raw["w_fc1"].T) + raw["b_fc1"])
    x = mm(x, raw["w_fc2"].T) + raw["b_fc2"]
    return x.reshape(-1, num_stocks, NUM_ACTIONS)


if __name__ == "__main__":
    # Small shapes consistent with the module's forward contract.
    num_stocks = 4
    input_size_per_stock = 3
    input_size_balance_value = 1
    input_size_num_of_shares = num_stocks
    batch = 2
    seq_len = 8

    key = jax.random.PRNGKey(0)
    k_params, k_x, k_pv, k_sh = jax.random.split(key, 4)

    params, raw = init_params(k_params, num_stocks, input_size_per_stock,
                              input_size_balance_value, input_size_num_of_shares)

    x_price = jax.random.normal(
        k_x, (batch, seq_len, num_stocks * input_size_per_stock), jnp.float32)
    x_portfolio_value = jax.random.normal(k_pv, (batch, 1), jnp.float32)
    x_num_of_shares = jax.random.normal(k_sh, (batch, num_stocks), jnp.float32)

    out = multi_stock_dqn_forward(params, x_price, x_portfolio_value,
                                  x_num_of_shares, num_stocks)
    out = jax.block_until_ready(out)
    assert out.shape == (batch, num_stocks, NUM_ACTIONS)

    # Tight check vs a reference with the same bf16-operand / f32-accumulate
    # numerics (validates kernel structure: padding, hoisting, fusion, gates).
    ref_mirror = reference_forward(raw, x_price, x_portfolio_value,
                                   x_num_of_shares, num_stocks,
                                   matmul_dtype=MATMUL_DTYPE)
    assert jnp.allclose(out, ref_mirror, atol=2e-3, rtol=2e-3), (
        f"max diff vs mirrored ref: {jnp.max(jnp.abs(out - ref_mirror))}")

    # Looser check vs the full-f32 PyTorch-equivalent reference (bf16 drift).
    ref_f32 = reference_forward(raw, x_price, x_portfolio_value,
                                x_num_of_shares, num_stocks, matmul_dtype=None)
    assert jnp.allclose(out, ref_f32, atol=1e-1, rtol=1e-1), (
        f"max diff vs f32 ref: {jnp.max(jnp.abs(out - ref_f32))}")

    print("KERNEL_OK")
</pallas_src>

<mosaic_0001>
module attributes {stable_mosaic.version = 11 : i64} {
  func.func @_dqn_kernel(%arg0: i32, %arg1: memref<8x8x12xf32, #tpu.memory_space<vmem>>, %arg2: memref<8x128xf32, #tpu.memory_space<vmem>>, %arg3: memref<12x512xbf16, #tpu.memory_space<vmem>>, %arg4: memref<128x512xbf16, #tpu.memory_space<vmem>>, %arg5: memref<1x512xf32, #tpu.memory_space<vmem>>, %arg6: memref<256x512xbf16, #tpu.memory_space<vmem>>, %arg7: memref<1x512xf32, #tpu.memory_space<vmem>>, %arg8: memref<256x32xbf16, #tpu.memory_space<vmem>>, %arg9: memref<1x32xf32, #tpu.memory_space<vmem>>, %arg10: memref<32x128xbf16, #tpu.memory_space<vmem>>, %arg11: memref<1x128xf32, #tpu.memory_space<vmem>>, %arg12: memref<8x128xf32, #tpu.memory_space<vmem>>) attributes {dimension_semantics = [#tpu.dimension_semantics<parallel>], iteration_bounds = array<i64: 1>, scalar_prefetch = 0 : i64, scratch_operands = 0 : i64, tpu.core_type = #tpu.core_type<tc>, window_params = [{transform_indices = @transform_0, window_bounds = array<i64: 8, 8, 12>}, {transform_indices = @transform_1, window_bounds = array<i64: 8, 128>}, {pipeline_mode = #tpu.pipeline_mode<synchronous>, transform_indices = @transform_2, window_bounds = array<i64: 12, 512>}, {pipeline_mode = #tpu.pipeline_mode<synchronous>, transform_indices = @transform_3, window_bounds = array<i64: 128, 512>}, {pipeline_mode = #tpu.pipeline_mode<synchronous>, transform_indices = @transform_4, window_bounds = array<i64: 1, 512>}, {pipeline_mode = #tpu.pipeline_mode<synchronous>, transform_indices = @transform_5, window_bounds = array<i64: 256, 512>}, {pipeline_mode = #tpu.pipeline_mode<synchronous>, transform_indices = @transform_6, window_bounds = array<i64: 1, 512>}, {pipeline_mode = #tpu.pipeline_mode<synchronous>, transform_indices = @transform_7, window_bounds = array<i64: 256, 32>}, {pipeline_mode = #tpu.pipeline_mode<synchronous>, transform_indices = @transform_8, window_bounds = array<i64: 1, 32>}, {pipeline_mode = #tpu.pipeline_mode<synchronous>, transform_indices = @transform_9, window_bounds = array<i64: 32, 128>}, {pipeline_mode = #tpu.pipeline_mode<synchronous>, transform_indices = @transform_10, window_bounds = array<i64: 1, 128>}, {transform_indices = @transform_11, window_bounds = array<i64: 8, 128>}]} {
    %c0 = arith.constant 0 : index
    %c0_0 = arith.constant 0 : index
    %c0_1 = arith.constant 0 : index
    %0 = vector.load %arg1[%c0, %c0_0, %c0_1] : memref<8x8x12xf32, #tpu.memory_space<vmem>>, vector<8x8x12xf32>
    %1 = vector.shape_cast %0 : vector<8x8x12xf32> to vector<64x12xf32>
    %2 = arith.truncf %1 : vector<64x12xf32> to vector<64x12xbf16>
    %c0_2 = arith.constant 0 : index
    %c0_3 = arith.constant 0 : index
    %3 = vector.load %arg3[%c0_2, %c0_3] : memref<12x512xbf16, #tpu.memory_space<vmem>>, vector<12x512xbf16>
    %cst = arith.constant dense<0.000000e+00> : vector<64x512xf32>
    %4 = tpu.matmul %2, %3, %cst {dimension_numbers = #tpu.dot_dimension_numbers<[1], [0], [0], [1], [0, 0, 1, 1], [], []>} : vector<64x12xbf16>, vector<12x512xbf16>, vector<64x512xf32> -> vector<64x512xf32>
    %c0_4 = arith.constant 0 : index
    %c0_5 = arith.constant 0 : index
    %5 = vector.load %arg5[%c0_4, %c0_5] : memref<1x512xf32, #tpu.memory_space<vmem>>, vector<1x512xf32>
    %6 = vector.broadcast %5 : vector<1x512xf32> to vector<64x512xf32>
    %7 = arith.addf %4, %6 : vector<64x512xf32>
    %c0_6 = arith.constant 0 : index
    %c0_7 = arith.constant 0 : index
    %8 = vector.load %arg4[%c0_6, %c0_7] : memref<128x512xbf16, #tpu.memory_space<vmem>>, vector<128x512xbf16>
    %c0_8 = arith.constant 0 : index
    %c0_9 = arith.constant 0 : index
    %9 = vector.load %arg6[%c0_8, %c0_9] : memref<256x512xbf16, #tpu.memory_space<vmem>>, vector<256x512xbf16>
    %c0_10 = arith.constant 0 : index
    %c0_11 = arith.constant 0 : index
    %10 = vector.load %arg7[%c0_10, %c0_11] : memref<1x512xf32, #tpu.memory_space<vmem>>, vector<1x512xf32>
    %11 = vector.shape_cast %10 : vector<1x512xf32> to vector<1x512xf32>
    %12 = vector.broadcast %11 : vector<1x512xf32> to vector<8x512xf32>
    %cst_12 = arith.constant 0.000000e+00 : f32
    %13 = vector.broadcast %cst_12 : f32 to vector<8x128xf32>
    %14 = vector.extract_strided_slice %7 {offsets = [0, 0], sizes = [8, 512], strides = [1, 1]} : vector<64x512xf32> to vector<8x512xf32>
    %15 = arith.truncf %13 : vector<8x128xf32> to vector<8x128xbf16>
    %cst_13 = arith.constant dense<0.000000e+00> : vector<8x512xf32>
    %16 = tpu.matmul %15, %8, %cst_13 {dimension_numbers = #tpu.dot_dimension_numbers<[1], [0], [0], [1], [0, 0, 1, 1], [], []>} : vector<8x128xbf16>, vector<128x512xbf16>, vector<8x512xf32> -> vector<8x512xf32>
    %17 = arith.addf %14, %16 : vector<8x512xf32>
    %18 = vector.extract_strided_slice %17 {offsets = [0, 0], sizes = [8, 128], strides = [1, 1]} : vector<8x512xf32> to vector<8x128xf32>
    %19 = arith.negf %18 : vector<8x128xf32>
    %20 = math.exp %19 : vector<8x128xf32>
    %cst_14 = arith.constant 1.000000e+00 : f32
    %21 = vector.broadcast %cst_14 : f32 to vector<8x128xf32>
    %22 = arith.addf %21, %20 : vector<8x128xf32>
    %23 = arith.divf %21, %22 : vector<8x128xf32>
    %24 = vector.extract_strided_slice %17 {offsets = [0, 128], sizes = [8, 128], strides = [1, 1]} : vector<8x512xf32> to vector<8x128xf32>
    %25 = arith.negf %24 : vector<8x128xf32>
    %26 = math.exp %25 : vector<8x128xf32>
    %cst_15 = arith.constant 1.000000e+00 : f32
    %27 = vector.broadcast %cst_15 : f32 to vector<8x128xf32>
    %28 = arith.addf %27, %26 : vector<8x128xf32>
    %29 = arith.divf %27, %28 : vector<8x128xf32>
    %30 = vector.extract_strided_slice %17 {offsets = [0, 256], sizes = [8, 128], strides = [1, 1]} : vector<8x512xf32> to vector<8x128xf32>
    %31 = math.tanh %30 : vector<8x128xf32>
    %32 = vector.extract_strided_slice %17 {offsets = [0, 384], sizes = [8, 128], strides = [1, 1]} : vector<8x512xf32> to vector<8x128xf32>
    %33 = arith.negf %32 : vector<8x128xf32>
    %34 = math.exp %33 : vector<8x128xf32>
    %cst_16 = arith.constant 1.000000e+00 : f32
    %35 = vector.broadcast %cst_16 : f32 to vector<8x128xf32>
    %36 = arith.addf %35, %34 : vector<8x128xf32>
    %37 = arith.divf %35, %36 : vector<8x128xf32>
    %38 = arith.mulf %29, %13 : vector<8x128xf32>
    %39 = arith.mulf %23, %31 : vector<8x128xf32>
    %40 = arith.addf %38, %39 : vector<8x128xf32>
    %41 = math.tanh %40 : vector<8x128xf32>
    %42 = arith.mulf %37, %41 : vector<8x128xf32>
    %43 = tpu.concatenate %42, %13 in 1 : vector<8x128xf32>, vector<8x128xf32> -> vector<8x256xf32>
    %44 = arith.truncf %43 : vector<8x256xf32> to vector<8x256xbf16>
    %cst_17 = arith.constant dense<0.000000e+00> : vector<8x512xf32>
    %45 = tpu.matmul %44, %9, %cst_17 {dimension_numbers = #tpu.dot_dimension_numbers<[1], [0], [0], [1], [0, 0, 1, 1], [], []>} : vector<8x256xbf16>, vector<256x512xbf16>, vector<8x512xf32> -> vector<8x512xf32>
    %46 = arith.addf %45, %12 : vector<8x512xf32>
    %47 = vector.extract_strided_slice %46 {offsets = [0, 0], sizes = [8, 128], strides = [1, 1]} : vector<8x512xf32> to vector<8x128xf32>
    %48 = arith.negf %47 : vector<8x128xf32>
    %49 = math.exp %48 : vector<8x128xf32>
    %cst_18 = arith.constant 1.000000e+00 : f32
    %50 = vector.broadcast %cst_18 : f32 to vector<8x128xf32>
    %51 = arith.addf %50, %49 : vector<8x128xf32>
    %52 = arith.divf %50, %51 : vector<8x128xf32>
    %53 = vector.extract_strided_slice %46 {offsets = [0, 128], sizes = [8, 128], strides = [1, 1]} : vector<8x512xf32> to vector<8x128xf32>
    %54 = arith.negf %53 : vector<8x128xf32>
    %55 = math.exp %54 : vector<8x128xf32>
    %cst_19 = arith.constant 1.000000e+00 : f32
    %56 = vector.broadcast %cst_19 : f32 to vector<8x128xf32>
    %57 = arith.addf %56, %55 : vector<8x128xf32>
    %58 = arith.divf %56, %57 : vector<8x128xf32>
    %59 = vector.extract_strided_slice %46 {offsets = [0, 256], sizes = [8, 128], strides = [1, 1]} : vector<8x512xf32> to vector<8x128xf32>
    %60 = math.tanh %59 : vector<8x128xf32>
    %61 = vector.extract_strided_slice %46 {offsets = [0, 384], sizes = [8, 128], strides = [1, 1]} : vector<8x512xf32> to vector<8x128xf32>
    %62 = arith.negf %61 : vector<8x128xf32>
    %63 = math.exp %62 : vector<8x128xf32>
    %cst_20 = arith.constant 1.000000e+00 : f32
    %64 = vector.broadcast %cst_20 : f32 to vector<8x128xf32>
    %65 = arith.addf %64, %63 : vector<8x128xf32>
    %66 = arith.divf %64, %65 : vector<8x128xf32>
    %67 = arith.mulf %58, %13 : vector<8x128xf32>
    %68 = arith.mulf %52, %60 : vector<8x128xf32>
    %69 = arith.addf %67, %68 : vector<8x128xf32>
    %70 = math.tanh %69 : vector<8x128xf32>
    %71 = arith.mulf %66, %70 : vector<8x128xf32>
    %72 = vector.extract_strided_slice %7 {offsets = [8, 0], sizes = [8, 512], strides = [1, 1]} : vector<64x512xf32> to vector<8x512xf32>
    %73 = arith.truncf %42 : vector<8x128xf32> to vector<8x128xbf16>
    %cst_21 = arith.constant dense<0.000000e+00> : vector<8x512xf32>
    %74 = tpu.matmul %73, %8, %cst_21 {dimension_numbers = #tpu.dot_dimension_numbers<[1], [0], [0], [1], [0, 0, 1, 1], [], []>} : vector<8x128xbf16>, vector<128x512xbf16>, vector<8x512xf32> -> vector<8x512xf32>
    %75 = arith.addf %72, %74 : vector<8x512xf32>
    %76 = vector.extract_strided_slice %75 {offsets = [0, 0], sizes = [8, 128], strides = [1, 1]} : vector<8x512xf32> to vector<8x128xf32>
    %77 = arith.negf %76 : vector<8x128xf32>
    %78 = math.exp %77 : vector<8x128xf32>
    %cst_22 = arith.constant 1.000000e+00 : f32
    %79 = vector.broadcast %cst_22 : f32 to vector<8x128xf32>
    %80 = arith.addf %79, %78 : vector<8x128xf32>
    %81 = arith.divf %79, %80 : vector<8x128xf32>
    %82 = vector.extract_strided_slice %75 {offsets = [0, 128], sizes = [8, 128], strides = [1, 1]} : vector<8x512xf32> to vector<8x128xf32>
    %83 = arith.negf %82 : vector<8x128xf32>
    %84 = math.exp %83 : vector<8x128xf32>
    %cst_23 = arith.constant 1.000000e+00 : f32
    %85 = vector.broadcast %cst_23 : f32 to vector<8x128xf32>
    %86 = arith.addf %85, %84 : vector<8x128xf32>
    %87 = arith.divf %85, %86 : vector<8x128xf32>
    %88 = vector.extract_strided_slice %75 {offsets = [0, 256], sizes = [8, 128], strides = [1, 1]} : vector<8x512xf32> to vector<8x128xf32>
    %89 = math.tanh %88 : vector<8x128xf32>
    %90 = vector.extract_strided_slice %75 {offsets = [0, 384], sizes = [8, 128], strides = [1, 1]} : vector<8x512xf32> to vector<8x128xf32>
    %91 = arith.negf %90 : vector<8x128xf32>
    %92 = math.exp %91 : vector<8x128xf32>
    %cst_24 = arith.constant 1.000000e+00 : f32
    %93 = vector.broadcast %cst_24 : f32 to vector<8x128xf32>
    %94 = arith.addf %93, %92 : vector<8x128xf32>
    %95 = arith.divf %93, %94 : vector<8x128xf32>
    %96 = arith.mulf %87, %40 : vector<8x128xf32>
    %97 = arith.mulf %81, %89 : vector<8x128xf32>
    %98 = arith.addf %96, %97 : vector<8x128xf32>
    %99 = math.tanh %98 : vector<8x128xf32>
    %100 = arith.mulf %95, %99 : vector<8x128xf32>
    %101 = tpu.concatenate %100, %71 in 1 : vector<8x128xf32>, vector<8x128xf32> -> vector<8x256xf32>
    %102 = arith.truncf %101 : vector<8x256xf32> to vector<8x256xbf16>
    %cst_25 = arith.constant dense<0.000000e+00> : vector<8x512xf32>
    %103 = tpu.matmul %102, %9, %cst_25 {dimension_numbers = #tpu.dot_dimension_numbers<[1], [0], [0], [1], [0, 0, 1, 1], [], []>} : vector<8x256xbf16>, vector<256x512xbf16>, vector<8x512xf32> -> vector<8x512xf32>
    %104 = arith.addf %103, %12 : vector<8x512xf32>
    %105 = vector.extract_strided_slice %104 {offsets = [0, 0], sizes = [8, 128], strides = [1, 1]} : vector<8x512xf32> to vector<8x128xf32>
    %106 = arith.negf %105 : vector<8x128xf32>
    %107 = math.exp %106 : vector<8x128xf32>
    %cst_26 = arith.constant 1.000000e+00 : f32
    %108 = vector.broadcast %cst_26 : f32 to vector<8x128xf32>
    %109 = arith.addf %108, %107 : vector<8x128xf32>
    %110 = arith.divf %108, %109 : vector<8x128xf32>
    %111 = vector.extract_strided_slice %104 {offsets = [0, 128], sizes = [8, 128], strides = [1, 1]} : vector<8x512xf32> to vector<8x128xf32>
    %112 = arith.negf %111 : vector<8x128xf32>
    %113 = math.exp %112 : vector<8x128xf32>
    %cst_27 = arith.constant 1.000000e+00 : f32
    %114 = vector.broadcast %cst_27 : f32 to vector<8x128xf32>
    %115 = arith.addf %114, %113 : vector<8x128xf32>
    %116 = arith.divf %114, %115 : vector<8x128xf32>
    %117 = vector.extract_strided_slice %104 {offsets = [0, 256], sizes = [8, 128], strides = [1, 1]} : vector<8x512xf32> to vector<8x128xf32>
    %118 = math.tanh %117 : vector<8x128xf32>
    %119 = vector.extract_strided_slice %104 {offsets = [0, 384], sizes = [8, 128], strides = [1, 1]} : vector<8x512xf32> to vector<8x128xf32>
    %120 = arith.negf %119 : vector<8x128xf32>
    %121 = math.exp %120 : vector<8x128xf32>
    %cst_28 = arith.constant 1.000000e+00 : f32
    %122 = vector.broadcast %cst_28 : f32 to vector<8x128xf32>
    %123 = arith.addf %122, %121 : vector<8x128xf32>
    %124 = arith.divf %122, %123 : vector<8x128xf32>
    %125 = arith.mulf %116, %69 : vector<8x128xf32>
    %126 = arith.mulf %110, %118 : vector<8x128xf32>
    %127 = arith.addf %125, %126 : vector<8x128xf32>
    %128 = math.tanh %127 : vector<8x128xf32>
    %129 = arith.mulf %124, %128 : vector<8x128xf32>
    %130 = vector.extract_strided_slice %7 {offsets = [16, 0], sizes = [8, 512], strides = [1, 1]} : vector<64x512xf32> to vector<8x512xf32>
    %131 = arith.truncf %100 : vector<8x128xf32> to vector<8x128xbf16>
    %cst_29 = arith.constant dense<0.000000e+00> : vector<8x512xf32>
    %132 = tpu.matmul %131, %8, %cst_29 {dimension_numbers = #tpu.dot_dimension_numbers<[1], [0], [0], [1], [0, 0, 1, 1], [], []>} : vector<8x128xbf16>, vector<128x512xbf16>, vector<8x512xf32> -> vector<8x512xf32>
    %133 = arith.addf %130, %132 : vector<8x512xf32>
    %134 = vector.extract_strided_slice %133 {offsets = [0, 0], sizes = [8, 128], strides = [1, 1]} : vector<8x512xf32> to vector<8x128xf32>
    %135 = arith.negf %134 : vector<8x128xf32>
    %136 = math.exp %135 : vector<8x128xf32>
    %cst_30 = arith.constant 1.000000e+00 : f32
    %137 = vector.broadcast %cst_30 : f32 to vector<8x128xf32>
    %138 = arith.addf %137, %136 : vector<8x128xf32>
    %139 = arith.divf %137, %138 : vector<8x128xf32>
    %140 = vector.extract_strided_slice %133 {offsets = [0, 128], sizes = [8, 128], strides = [1, 1]} : vector<8x512xf32> to vector<8x128xf32>
    %141 = arith.negf %140 : vector<8x128xf32>
    %142 = math.exp %141 : vector<8x128xf32>
    %cst_31 = arith.constant 1.000000e+00 : f32
    %143 = vector.broadcast %cst_31 : f32 to vector<8x128xf32>
    %144 = arith.addf %143, %142 : vector<8x128xf32>
    %145 = arith.divf %143, %144 : vector<8x128xf32>
    %146 = vector.extract_strided_slice %133 {offsets = [0, 256], sizes = [8, 128], strides = [1, 1]} : vector<8x512xf32> to vector<8x128xf32>
    %147 = math.tanh %146 : vector<8x128xf32>
    %148 = vector.extract_strided_slice %133 {offsets = [0, 384], sizes = [8, 128], strides = [1, 1]} : vector<8x512xf32> to vector<8x128xf32>
    %149 = arith.negf %148 : vector<8x128xf32>
    %150 = math.exp %149 : vector<8x128xf32>
    %cst_32 = arith.constant 1.000000e+00 : f32
    %151 = vector.broadcast %cst_32 : f32 to vector<8x128xf32>
    %152 = arith.addf %151, %150 : vector<8x128xf32>
    %153 = arith.divf %151, %152 : vector<8x128xf32>
    %154 = arith.mulf %145, %98 : vector<8x128xf32>
    %155 = arith.mulf %139, %147 : vector<8x128xf32>
    %156 = arith.addf %154, %155 : vector<8x128xf32>
    %157 = math.tanh %156 : vector<8x128xf32>
    %158 = arith.mulf %153, %157 : vector<8x128xf32>
    %159 = tpu.concatenate %158, %129 in 1 : vector<8x128xf32>, vector<8x128xf32> -> vector<8x256xf32>
    %160 = arith.truncf %159 : vector<8x256xf32> to vector<8x256xbf16>
    %cst_33 = arith.constant dense<0.000000e+00> : vector<8x512xf32>
    %161 = tpu.matmul %160, %9, %cst_33 {dimension_numbers = #tpu.dot_dimension_numbers<[1], [0], [0], [1], [0, 0, 1, 1], [], []>} : vector<8x256xbf16>, vector<256x512xbf16>, vector<8x512xf32> -> vector<8x512xf32>
    %162 = arith.addf %161, %12 : vector<8x512xf32>
    %163 = vector.extract_strided_slice %162 {offsets = [0, 0], sizes = [8, 128], strides = [1, 1]} : vector<8x512xf32> to vector<8x128xf32>
    %164 = arith.negf %163 : vector<8x128xf32>
    %165 = math.exp %164 : vector<8x128xf32>
    %cst_34 = arith.constant 1.000000e+00 : f32
    %166 = vector.broadcast %cst_34 : f32 to vector<8x128xf32>
    %167 = arith.addf %166, %165 : vector<8x128xf32>
    %168 = arith.divf %166, %167 : vector<8x128xf32>
    %169 = vector.extract_strided_slice %162 {offsets = [0, 128], sizes = [8, 128], strides = [1, 1]} : vector<8x512xf32> to vector<8x128xf32>
    %170 = arith.negf %169 : vector<8x128xf32>
    %171 = math.exp %170 : vector<8x128xf32>
    %cst_35 = arith.constant 1.000000e+00 : f32
    %172 = vector.broadcast %cst_35 : f32 to vector<8x128xf32>
    %173 = arith.addf %172, %171 : vector<8x128xf32>
    %174 = arith.divf %172, %173 : vector<8x128xf32>
    %175 = vector.extract_strided_slice %162 {offsets = [0, 256], sizes = [8, 128], strides = [1, 1]} : vector<8x512xf32> to vector<8x128xf32>
    %176 = math.tanh %175 : vector<8x128xf32>
    %177 = vector.extract_strided_slice %162 {offsets = [0, 384], sizes = [8, 128], strides = [1, 1]} : vector<8x512xf32> to vector<8x128xf32>
    %178 = arith.negf %177 : vector<8x128xf32>
    %179 = math.exp %178 : vector<8x128xf32>
    %cst_36 = arith.constant 1.000000e+00 : f32
    %180 = vector.broadcast %cst_36 : f32 to vector<8x128xf32>
    %181 = arith.addf %180, %179 : vector<8x128xf32>
    %182 = arith.divf %180, %181 : vector<8x128xf32>
    %183 = arith.mulf %174, %127 : vector<8x128xf32>
    %184 = arith.mulf %168, %176 : vector<8x128xf32>
    %185 = arith.addf %183, %184 : vector<8x128xf32>
    %186 = math.tanh %185 : vector<8x128xf32>
    %187 = arith.mulf %182, %186 : vector<8x128xf32>
    %188 = vector.extract_strided_slice %7 {offsets = [24, 0], sizes = [8, 512], strides = [1, 1]} : vector<64x512xf32> to vector<8x512xf32>
    %189 = arith.truncf %158 : vector<8x128xf32> to vector<8x128xbf16>
    %cst_37 = arith.constant dense<0.000000e+00> : vector<8x512xf32>
    %190 = tpu.matmul %189, %8, %cst_37 {dimension_numbers = #tpu.dot_dimension_numbers<[1], [0], [0], [1], [0, 0, 1, 1], [], []>} : vector<8x128xbf16>, vector<128x512xbf16>, vector<8x512xf32> -> vector<8x512xf32>
    %191 = arith.addf %188, %190 : vector<8x512xf32>
    %192 = vector.extract_strided_slice %191 {offsets = [0, 0], sizes = [8, 128], strides = [1, 1]} : vector<8x512xf32> to vector<8x128xf32>
    %193 = arith.negf %192 : vector<8x128xf32>
    %194 = math.exp %193 : vector<8x128xf32>
    %cst_38 = arith.constant 1.000000e+00 : f32
    %195 = vector.broadcast %cst_38 : f32 to vector<8x128xf32>
    %196 = arith.addf %195, %194 : vector<8x128xf32>
    %197 = arith.divf %195, %196 : vector<8x128xf32>
    %198 = vector.extract_strided_slice %191 {offsets = [0, 128], sizes = [8, 128], strides = [1, 1]} : vector<8x512xf32> to vector<8x128xf32>
    %199 = arith.negf %198 : vector<8x128xf32>
    %200 = math.exp %199 : vector<8x128xf32>
    %cst_39 = arith.constant 1.000000e+00 : f32
    %201 = vector.broadcast %cst_39 : f32 to vector<8x128xf32>
    %202 = arith.addf %201, %200 : vector<8x128xf32>
    %203 = arith.divf %201, %202 : vector<8x128xf32>
    %204 = vector.extract_strided_slice %191 {offsets = [0, 256], sizes = [8, 128], strides = [1, 1]} : vector<8x512xf32> to vector<8x128xf32>
    %205 = math.tanh %204 : vector<8x128xf32>
    %206 = vector.extract_strided_slice %191 {offsets = [0, 384], sizes = [8, 128], strides = [1, 1]} : vector<8x512xf32> to vector<8x128xf32>
    %207 = arith.negf %206 : vector<8x128xf32>
    %208 = math.exp %207 : vector<8x128xf32>
    %cst_40 = arith.constant 1.000000e+00 : f32
    %209 = vector.broadcast %cst_40 : f32 to vector<8x128xf32>
    %210 = arith.addf %209, %208 : vector<8x128xf32>
    %211 = arith.divf %209, %210 : vector<8x128xf32>
    %212 = arith.mulf %203, %156 : vector<8x128xf32>
    %213 = arith.mulf %197, %205 : vector<8x128xf32>
    %214 = arith.addf %212, %213 : vector<8x128xf32>
    %215 = math.tanh %214 : vector<8x128xf32>
    %216 = arith.mulf %211, %215 : vector<8x128xf32>
    %217 = tpu.concatenate %216, %187 in 1 : vector<8x128xf32>, vector<8x128xf32> -> vector<8x256xf32>
    %218 = arith.truncf %217 : vector<8x256xf32> to vector<8x256xbf16>
    %cst_41 = arith.constant dense<0.000000e+00> : vector<8x512xf32>
    %219 = tpu.matmul %218, %9, %cst_41 {dimension_numbers = #tpu.dot_dimension_numbers<[1], [0], [0], [1], [0, 0, 1, 1], [], []>} : vector<8x256xbf16>, vector<256x512xbf16>, vector<8x512xf32> -> vector<8x512xf32>
    %220 = arith.addf %219, %12 : vector<8x512xf32>
    %221 = vector.extract_strided_slice %220 {offsets = [0, 0], sizes = [8, 128], strides = [1, 1]} : vector<8x512xf32> to vector<8x128xf32>
    %222 = arith.negf %221 : vector<8x128xf32>
    %223 = math.exp %222 : vector<8x128xf32>
    %cst_42 = arith.constant 1.000000e+00 : f32
    %224 = vector.broadcast %cst_42 : f32 to vector<8x128xf32>
    %225 = arith.addf %224, %223 : vector<8x128xf32>
    %226 = arith.divf %224, %225 : vector<8x128xf32>
    %227 = vector.extract_strided_slice %220 {offsets = [0, 128], sizes = [8, 128], strides = [1, 1]} : vector<8x512xf32> to vector<8x128xf32>
    %228 = arith.negf %227 : vector<8x128xf32>
    %229 = math.exp %228 : vector<8x128xf32>
    %cst_43 = arith.constant 1.000000e+00 : f32
    %230 = vector.broadcast %cst_43 : f32 to vector<8x128xf32>
    %231 = arith.addf %230, %229 : vector<8x128xf32>
    %232 = arith.divf %230, %231 : vector<8x128xf32>
    %233 = vector.extract_strided_slice %220 {offsets = [0, 256], sizes = [8, 128], strides = [1, 1]} : vector<8x512xf32> to vector<8x128xf32>
    %234 = math.tanh %233 : vector<8x128xf32>
    %235 = vector.extract_strided_slice %220 {offsets = [0, 384], sizes = [8, 128], strides = [1, 1]} : vector<8x512xf32> to vector<8x128xf32>
    %236 = arith.negf %235 : vector<8x128xf32>
    %237 = math.exp %236 : vector<8x128xf32>
    %cst_44 = arith.constant 1.000000e+00 : f32
    %238 = vector.broadcast %cst_44 : f32 to vector<8x128xf32>
    %239 = arith.addf %238, %237 : vector<8x128xf32>
    %240 = arith.divf %238, %239 : vector<8x128xf32>
    %241 = arith.mulf %232, %185 : vector<8x128xf32>
    %242 = arith.mulf %226, %234 : vector<8x128xf32>
    %243 = arith.addf %241, %242 : vector<8x128xf32>
    %244 = math.tanh %243 : vector<8x128xf32>
    %245 = arith.mulf %240, %244 : vector<8x128xf32>
    %246 = vector.extract_strided_slice %7 {offsets = [32, 0], sizes = [8, 512], strides = [1, 1]} : vector<64x512xf32> to vector<8x512xf32>
    %247 = arith.truncf %216 : vector<8x128xf32> to vector<8x128xbf16>
    %cst_45 = arith.constant dense<0.000000e+00> : vector<8x512xf32>
    %248 = tpu.matmul %247, %8, %cst_45 {dimension_numbers = #tpu.dot_dimension_numbers<[1], [0], [0], [1], [0, 0, 1, 1], [], []>} : vector<8x128xbf16>, vector<128x512xbf16>, vector<8x512xf32> -> vector<8x512xf32>
    %249 = arith.addf %246, %248 : vector<8x512xf32>
    %250 = vector.extract_strided_slice %249 {offsets = [0, 0], sizes = [8, 128], strides = [1, 1]} : vector<8x512xf32> to vector<8x128xf32>
    %251 = arith.negf %250 : vector<8x128xf32>
    %252 = math.exp %251 : vector<8x128xf32>
    %cst_46 = arith.constant 1.000000e+00 : f32
    %253 = vector.broadcast %cst_46 : f32 to vector<8x128xf32>
    %254 = arith.addf %253, %252 : vector<8x128xf32>
    %255 = arith.divf %253, %254 : vector<8x128xf32>
    %256 = vector.extract_strided_slice %249 {offsets = [0, 128], sizes = [8, 128], strides = [1, 1]} : vector<8x512xf32> to vector<8x128xf32>
    %257 = arith.negf %256 : vector<8x128xf32>
    %258 = math.exp %257 : vector<8x128xf32>
    %cst_47 = arith.constant 1.000000e+00 : f32
    %259 = vector.broadcast %cst_47 : f32 to vector<8x128xf32>
    %260 = arith.addf %259, %258 : vector<8x128xf32>
    %261 = arith.divf %259, %260 : vector<8x128xf32>
    %262 = vector.extract_strided_slice %249 {offsets = [0, 256], sizes = [8, 128], strides = [1, 1]} : vector<8x512xf32> to vector<8x128xf32>
    %263 = math.tanh %262 : vector<8x128xf32>
    %264 = vector.extract_strided_slice %249 {offsets = [0, 384], sizes = [8, 128], strides = [1, 1]} : vector<8x512xf32> to vector<8x128xf32>
    %265 = arith.negf %264 : vector<8x128xf32>
    %266 = math.exp %265 : vector<8x128xf32>
    %cst_48 = arith.constant 1.000000e+00 : f32
    %267 = vector.broadcast %cst_48 : f32 to vector<8x128xf32>
    %268 = arith.addf %267, %266 : vector<8x128xf32>
    %269 = arith.divf %267, %268 : vector<8x128xf32>
    %270 = arith.mulf %261, %214 : vector<8x128xf32>
    %271 = arith.mulf %255, %263 : vector<8x128xf32>
    %272 = arith.addf %270, %271 : vector<8x128xf32>
    %273 = math.tanh %272 : vector<8x128xf32>
    %274 = arith.mulf %269, %273 : vector<8x128xf32>
    %275 = tpu.concatenate %274, %245 in 1 : vector<8x128xf32>, vector<8x128xf32> -> vector<8x256xf32>
    %276 = arith.truncf %275 : vector<8x256xf32> to vector<8x256xbf16>
    %cst_49 = arith.constant dense<0.000000e+00> : vector<8x512xf32>
    %277 = tpu.matmul %276, %9, %cst_49 {dimension_numbers = #tpu.dot_dimension_numbers<[1], [0], [0], [1], [0, 0, 1, 1], [], []>} : vector<8x256xbf16>, vector<256x512xbf16>, vector<8x512xf32> -> vector<8x512xf32>
    %278 = arith.addf %277, %12 : vector<8x512xf32>
    %279 = vector.extract_strided_slice %278 {offsets = [0, 0], sizes = [8, 128], strides = [1, 1]} : vector<8x512xf32> to vector<8x128xf32>
    %280 = arith.negf %279 : vector<8x128xf32>
    %281 = math.exp %280 : vector<8x128xf32>
    %cst_50 = arith.constant 1.000000e+00 : f32
    %282 = vector.broadcast %cst_50 : f32 to vector<8x128xf32>
    %283 = arith.addf %282, %281 : vector<8x128xf32>
    %284 = arith.divf %282, %283 : vector<8x128xf32>
    %285 = vector.extract_strided_slice %278 {offsets = [0, 128], sizes = [8, 128], strides = [1, 1]} : vector<8x512xf32> to vector<8x128xf32>
    %286 = arith.negf %285 : vector<8x128xf32>
    %287 = math.exp %286 : vector<8x128xf32>
    %cst_51 = arith.constant 1.000000e+00 : f32
    %288 = vector.broadcast %cst_51 : f32 to vector<8x128xf32>
    %289 = arith.addf %288, %287 : vector<8x128xf32>
    %290 = arith.divf %288, %289 : vector<8x128xf32>
    %291 = vector.extract_strided_slice %278 {offsets = [0, 256], sizes = [8, 128], strides = [1, 1]} : vector<8x512xf32> to vector<8x128xf32>
    %292 = math.tanh %291 : vector<8x128xf32>
    %293 = vector.extract_strided_slice %278 {offsets = [0, 384], sizes = [8, 128], strides = [1, 1]} : vector<8x512xf32> to vector<8x128xf32>
    %294 = arith.negf %293 : vector<8x128xf32>
    %295 = math.exp %294 : vector<8x128xf32>
    %cst_52 = arith.constant 1.000000e+00 : f32
    %296 = vector.broadcast %cst_52 : f32 to vector<8x128xf32>
    %297 = arith.addf %296, %295 : vector<8x128xf32>
    %298 = arith.divf %296, %297 : vector<8x128xf32>
    %299 = arith.mulf %290, %243 : vector<8x128xf32>
    %300 = arith.mulf %284, %292 : vector<8x128xf32>
    %301 = arith.addf %299, %300 : vector<8x128xf32>
    %302 = math.tanh %301 : vector<8x128xf32>
    %303 = arith.mulf %298, %302 : vector<8x128xf32>
    %304 = vector.extract_strided_slice %7 {offsets = [40, 0], sizes = [8, 512], strides = [1, 1]} : vector<64x512xf32> to vector<8x512xf32>
    %305 = arith.truncf %274 : vector<8x128xf32> to vector<8x128xbf16>
    %cst_53 = arith.constant dense<0.000000e+00> : vector<8x512xf32>
    %306 = tpu.matmul %305, %8, %cst_53 {dimension_numbers = #tpu.dot_dimension_numbers<[1], [0], [0], [1], [0, 0, 1, 1], [], []>} : vector<8x128xbf16>, vector<128x512xbf16>, vector<8x512xf32> -> vector<8x512xf32>
    %307 = arith.addf %304, %306 : vector<8x512xf32>
    %308 = vector.extract_strided_slice %307 {offsets = [0, 0], sizes = [8, 128], strides = [1, 1]} : vector<8x512xf32> to vector<8x128xf32>
    %309 = arith.negf %308 : vector<8x128xf32>
    %310 = math.exp %309 : vector<8x128xf32>
    %cst_54 = arith.constant 1.000000e+00 : f32
    %311 = vector.broadcast %cst_54 : f32 to vector<8x128xf32>
    %312 = arith.addf %311, %310 : vector<8x128xf32>
    %313 = arith.divf %311, %312 : vector<8x128xf32>
    %314 = vector.extract_strided_slice %307 {offsets = [0, 128], sizes = [8, 128], strides = [1, 1]} : vector<8x512xf32> to vector<8x128xf32>
    %315 = arith.negf %314 : vector<8x128xf32>
    %316 = math.exp %315 : vector<8x128xf32>
    %cst_55 = arith.constant 1.000000e+00 : f32
    %317 = vector.broadcast %cst_55 : f32 to vector<8x128xf32>
    %318 = arith.addf %317, %316 : vector<8x128xf32>
    %319 = arith.divf %317, %318 : vector<8x128xf32>
    %320 = vector.extract_strided_slice %307 {offsets = [0, 256], sizes = [8, 128], strides = [1, 1]} : vector<8x512xf32> to vector<8x128xf32>
    %321 = math.tanh %320 : vector<8x128xf32>
    %322 = vector.extract_strided_slice %307 {offsets = [0, 384], sizes = [8, 128], strides = [1, 1]} : vector<8x512xf32> to vector<8x128xf32>
    %323 = arith.negf %322 : vector<8x128xf32>
    %324 = math.exp %323 : vector<8x128xf32>
    %cst_56 = arith.constant 1.000000e+00 : f32
    %325 = vector.broadcast %cst_56 : f32 to vector<8x128xf32>
    %326 = arith.addf %325, %324 : vector<8x128xf32>
    %327 = arith.divf %325, %326 : vector<8x128xf32>
    %328 = arith.mulf %319, %272 : vector<8x128xf32>
    %329 = arith.mulf %313, %321 : vector<8x128xf32>
    %330 = arith.addf %328, %329 : vector<8x128xf32>
    %331 = math.tanh %330 : vector<8x128xf32>
    %332 = arith.mulf %327, %331 : vector<8x128xf32>
    %333 = tpu.concatenate %332, %303 in 1 : vector<8x128xf32>, vector<8x128xf32> -> vector<8x256xf32>
    %334 = arith.truncf %333 : vector<8x256xf32> to vector<8x256xbf16>
    %cst_57 = arith.constant dense<0.000000e+00> : vector<8x512xf32>
    %335 = tpu.matmul %334, %9, %cst_57 {dimension_numbers = #tpu.dot_dimension_numbers<[1], [0], [0], [1], [0, 0, 1, 1], [], []>} : vector<8x256xbf16>, vector<256x512xbf16>, vector<8x512xf32> -> vector<8x512xf32>
    %336 = arith.addf %335, %12 : vector<8x512xf32>
    %337 = vector.extract_strided_slice %336 {offsets = [0, 0], sizes = [8, 128], strides = [1, 1]} : vector<8x512xf32> to vector<8x128xf32>
    %338 = arith.negf %337 : vector<8x128xf32>
    %339 = math.exp %338 : vector<8x128xf32>
    %cst_58 = arith.constant 1.000000e+00 : f32
    %340 = vector.broadcast %cst_58 : f32 to vector<8x128xf32>
    %341 = arith.addf %340, %339 : vector<8x128xf32>
    %342 = arith.divf %340, %341 : vector<8x128xf32>
    %343 = vector.extract_strided_slice %336 {offsets = [0, 128], sizes = [8, 128], strides = [1, 1]} : vector<8x512xf32> to vector<8x128xf32>
    %344 = arith.negf %343 : vector<8x128xf32>
    %345 = math.exp %344 : vector<8x128xf32>
    %cst_59 = arith.constant 1.000000e+00 : f32
    %346 = vector.broadcast %cst_59 : f32 to vector<8x128xf32>
    %347 = arith.addf %346, %345 : vector<8x128xf32>
    %348 = arith.divf %346, %347 : vector<8x128xf32>
    %349 = vector.extract_strided_slice %336 {offsets = [0, 256], sizes = [8, 128], strides = [1, 1]} : vector<8x512xf32> to vector<8x128xf32>
    %350 = math.tanh %349 : vector<8x128xf32>
    %351 = vector.extract_strided_slice %336 {offsets = [0, 384], sizes = [8, 128], strides = [1, 1]} : vector<8x512xf32> to vector<8x128xf32>
    %352 = arith.negf %351 : vector<8x128xf32>
    %353 = math.exp %352 : vector<8x128xf32>
    %cst_60 = arith.constant 1.000000e+00 : f32
    %354 = vector.broadcast %cst_60 : f32 to vector<8x128xf32>
    %355 = arith.addf %354, %353 : vector<8x128xf32>
    %356 = arith.divf %354, %355 : vector<8x128xf32>
    %357 = arith.mulf %348, %301 : vector<8x128xf32>
    %358 = arith.mulf %342, %350 : vector<8x128xf32>
    %359 = arith.addf %357, %358 : vector<8x128xf32>
    %360 = math.tanh %359 : vector<8x128xf32>
    %361 = arith.mulf %356, %360 : vector<8x128xf32>
    %362 = vector.extract_strided_slice %7 {offsets = [48, 0], sizes = [8, 512], strides = [1, 1]} : vector<64x512xf32> to vector<8x512xf32>
    %363 = arith.truncf %332 : vector<8x128xf32> to vector<8x128xbf16>
    %cst_61 = arith.constant dense<0.000000e+00> : vector<8x512xf32>
    %364 = tpu.matmul %363, %8, %cst_61 {dimension_numbers = #tpu.dot_dimension_numbers<[1], [0], [0], [1], [0, 0, 1, 1], [], []>} : vector<8x128xbf16>, vector<128x512xbf16>, vector<8x512xf32> -> vector<8x512xf32>
    %365 = arith.addf %362, %364 : vector<8x512xf32>
    %366 = vector.extract_strided_slice %365 {offsets = [0, 0], sizes = [8, 128], strides = [1, 1]} : vector<8x512xf32> to vector<8x128xf32>
    %367 = arith.negf %366 : vector<8x128xf32>
    %368 = math.exp %367 : vector<8x128xf32>
    %cst_62 = arith.constant 1.000000e+00 : f32
    %369 = vector.broadcast %cst_62 : f32 to vector<8x128xf32>
    %370 = arith.addf %369, %368 : vector<8x128xf32>
    %371 = arith.divf %369, %370 : vector<8x128xf32>
    %372 = vector.extract_strided_slice %365 {offsets = [0, 128], sizes = [8, 128], strides = [1, 1]} : vector<8x512xf32> to vector<8x128xf32>
    %373 = arith.negf %372 : vector<8x128xf32>
    %374 = math.exp %373 : vector<8x128xf32>
    %cst_63 = arith.constant 1.000000e+00 : f32
    %375 = vector.broadcast %cst_63 : f32 to vector<8x128xf32>
    %376 = arith.addf %375, %374 : vector<8x128xf32>
    %377 = arith.divf %375, %376 : vector<8x128xf32>
    %378 = vector.extract_strided_slice %365 {offsets = [0, 256], sizes = [8, 128], strides = [1, 1]} : vector<8x512xf32> to vector<8x128xf32>
    %379 = math.tanh %378 : vector<8x128xf32>
    %380 = vector.extract_strided_slice %365 {offsets = [0, 384], sizes = [8, 128], strides = [1, 1]} : vector<8x512xf32> to vector<8x128xf32>
    %381 = arith.negf %380 : vector<8x128xf32>
    %382 = math.exp %381 : vector<8x128xf32>
    %cst_64 = arith.constant 1.000000e+00 : f32
    %383 = vector.broadcast %cst_64 : f32 to vector<8x128xf32>
    %384 = arith.addf %383, %382 : vector<8x128xf32>
    %385 = arith.divf %383, %384 : vector<8x128xf32>
    %386 = arith.mulf %377, %330 : vector<8x128xf32>
    %387 = arith.mulf %371, %379 : vector<8x128xf32>
    %388 = arith.addf %386, %387 : vector<8x128xf32>
    %389 = math.tanh %388 : vector<8x128xf32>
    %390 = arith.mulf %385, %389 : vector<8x128xf32>
    %391 = tpu.concatenate %390, %361 in 1 : vector<8x128xf32>, vector<8x128xf32> -> vector<8x256xf32>
    %392 = arith.truncf %391 : vector<8x256xf32> to vector<8x256xbf16>
    %cst_65 = arith.constant dense<0.000000e+00> : vector<8x512xf32>
    %393 = tpu.matmul %392, %9, %cst_65 {dimension_numbers = #tpu.dot_dimension_numbers<[1], [0], [0], [1], [0, 0, 1, 1], [], []>} : vector<8x256xbf16>, vector<256x512xbf16>, vector<8x512xf32> -> vector<8x512xf32>
    %394 = arith.addf %393, %12 : vector<8x512xf32>
    %395 = vector.extract_strided_slice %394 {offsets = [0, 0], sizes = [8, 128], strides = [1, 1]} : vector<8x512xf32> to vector<8x128xf32>
    %396 = arith.negf %395 : vector<8x128xf32>
    %397 = math.exp %396 : vector<8x128xf32>
    %cst_66 = arith.constant 1.000000e+00 : f32
    %398 = vector.broadcast %cst_66 : f32 to vector<8x128xf32>
    %399 = arith.addf %398, %397 : vector<8x128xf32>
    %400 = arith.divf %398, %399 : vector<8x128xf32>
    %401 = vector.extract_strided_slice %394 {offsets = [0, 128], sizes = [8, 128], strides = [1, 1]} : vector<8x512xf32> to vector<8x128xf32>
    %402 = arith.negf %401 : vector<8x128xf32>
    %403 = math.exp %402 : vector<8x128xf32>
    %cst_67 = arith.constant 1.000000e+00 : f32
    %404 = vector.broadcast %cst_67 : f32 to vector<8x128xf32>
    %405 = arith.addf %404, %403 : vector<8x128xf32>
    %406 = arith.divf %404, %405 : vector<8x128xf32>
    %407 = vector.extract_strided_slice %394 {offsets = [0, 256], sizes = [8, 128], strides = [1, 1]} : vector<8x512xf32> to vector<8x128xf32>
    %408 = math.tanh %407 : vector<8x128xf32>
    %409 = vector.extract_strided_slice %394 {offsets = [0, 384], sizes = [8, 128], strides = [1, 1]} : vector<8x512xf32> to vector<8x128xf32>
    %410 = arith.negf %409 : vector<8x128xf32>
    %411 = math.exp %410 : vector<8x128xf32>
    %cst_68 = arith.constant 1.000000e+00 : f32
    %412 = vector.broadcast %cst_68 : f32 to vector<8x128xf32>
    %413 = arith.addf %412, %411 : vector<8x128xf32>
    %414 = arith.divf %412, %413 : vector<8x128xf32>
    %415 = arith.mulf %406, %359 : vector<8x128xf32>
    %416 = arith.mulf %400, %408 : vector<8x128xf32>
    %417 = arith.addf %415, %416 : vector<8x128xf32>
    %418 = math.tanh %417 : vector<8x128xf32>
    %419 = arith.mulf %414, %418 : vector<8x128xf32>
    %420 = vector.extract_strided_slice %7 {offsets = [56, 0], sizes = [8, 512], strides = [1, 1]} : vector<64x512xf32> to vector<8x512xf32>
    %421 = arith.truncf %390 : vector<8x128xf32> to vector<8x128xbf16>
    %cst_69 = arith.constant dense<0.000000e+00> : vector<8x512xf32>
    %422 = tpu.matmul %421, %8, %cst_69 {dimension_numbers = #tpu.dot_dimension_numbers<[1], [0], [0], [1], [0, 0, 1, 1], [], []>} : vector<8x128xbf16>, vector<128x512xbf16>, vector<8x512xf32> -> vector<8x512xf32>
    %423 = arith.addf %420, %422 : vector<8x512xf32>
    %424 = vector.extract_strided_slice %423 {offsets = [0, 0], sizes = [8, 128], strides = [1, 1]} : vector<8x512xf32> to vector<8x128xf32>
    %425 = arith.negf %424 : vector<8x128xf32>
    %426 = math.exp %425 : vector<8x128xf32>
    %cst_70 = arith.constant 1.000000e+00 : f32
    %427 = vector.broadcast %cst_70 : f32 to vector<8x128xf32>
    %428 = arith.addf %427, %426 : vector<8x128xf32>
    %429 = arith.divf %427, %428 : vector<8x128xf32>
    %430 = vector.extract_strided_slice %423 {offsets = [0, 128], sizes = [8, 128], strides = [1, 1]} : vector<8x512xf32> to vector<8x128xf32>
    %431 = arith.negf %430 : vector<8x128xf32>
    %432 = math.exp %431 : vector<8x128xf32>
    %cst_71 = arith.constant 1.000000e+00 : f32
    %433 = vector.broadcast %cst_71 : f32 to vector<8x128xf32>
    %434 = arith.addf %433, %432 : vector<8x128xf32>
    %435 = arith.divf %433, %434 : vector<8x128xf32>
    %436 = vector.extract_strided_slice %423 {offsets = [0, 256], sizes = [8, 128], strides = [1, 1]} : vector<8x512xf32> to vector<8x128xf32>
    %437 = math.tanh %436 : vector<8x128xf32>
    %438 = vector.extract_strided_slice %423 {offsets = [0, 384], sizes = [8, 128], strides = [1, 1]} : vector<8x512xf32> to vector<8x128xf32>
    %439 = arith.negf %438 : vector<8x128xf32>
    %440 = math.exp %439 : vector<8x128xf32>
    %cst_72 = arith.constant 1.000000e+00 : f32
    %441 = vector.broadcast %cst_72 : f32 to vector<8x128xf32>
    %442 = arith.addf %441, %440 : vector<8x128xf32>
    %443 = arith.divf %441, %442 : vector<8x128xf32>
    %444 = arith.mulf %435, %388 : vector<8x128xf32>
    %445 = arith.mulf %429, %437 : vector<8x128xf32>
    %446 = arith.addf %444, %445 : vector<8x128xf32>
    %447 = math.tanh %446 : vector<8x128xf32>
    %448 = arith.mulf %443, %447 : vector<8x128xf32>
    %449 = tpu.concatenate %448, %419 in 1 : vector<8x128xf32>, vector<8x128xf32> -> vector<8x256xf32>
    %450 = arith.truncf %449 : vector<8x256xf32> to vector<8x256xbf16>
    %cst_73 = arith.constant dense<0.000000e+00> : vector<8x512xf32>
    %451 = tpu.matmul %450, %9, %cst_73 {dimension_numbers = #tpu.dot_dimension_numbers<[1], [0], [0], [1], [0, 0, 1, 1], [], []>} : vector<8x256xbf16>, vector<256x512xbf16>, vector<8x512xf32> -> vector<8x512xf32>
    %452 = arith.addf %451, %12 : vector<8x512xf32>
    %453 = vector.extract_strided_slice %452 {offsets = [0, 0], sizes = [8, 128], strides = [1, 1]} : vector<8x512xf32> to vector<8x128xf32>
    %454 = arith.negf %453 : vector<8x128xf32>
    %455 = math.exp %454 : vector<8x128xf32>
    %cst_74 = arith.constant 1.000000e+00 : f32
    %456 = vector.broadcast %cst_74 : f32 to vector<8x128xf32>
    %457 = arith.addf %456, %455 : vector<8x128xf32>
    %458 = arith.divf %456, %457 : vector<8x128xf32>
    %459 = vector.extract_strided_slice %452 {offsets = [0, 128], sizes = [8, 128], strides = [1, 1]} : vector<8x512xf32> to vector<8x128xf32>
    %460 = arith.negf %459 : vector<8x128xf32>
    %461 = math.exp %460 : vector<8x128xf32>
    %cst_75 = arith.constant 1.000000e+00 : f32
    %462 = vector.broadcast %cst_75 : f32 to vector<8x128xf32>
    %463 = arith.addf %462, %461 : vector<8x128xf32>
    %464 = arith.divf %462, %463 : vector<8x128xf32>
    %465 = vector.extract_strided_slice %452 {offsets = [0, 256], sizes = [8, 128], strides = [1, 1]} : vector<8x512xf32> to vector<8x128xf32>
    %466 = math.tanh %465 : vector<8x128xf32>
    %467 = vector.extract_strided_slice %452 {offsets = [0, 384], sizes = [8, 128], strides = [1, 1]} : vector<8x512xf32> to vector<8x128xf32>
    %468 = arith.negf %467 : vector<8x128xf32>
    %469 = math.exp %468 : vector<8x128xf32>
    %cst_76 = arith.constant 1.000000e+00 : f32
    %470 = vector.broadcast %cst_76 : f32 to vector<8x128xf32>
    %471 = arith.addf %470, %469 : vector<8x128xf32>
    %472 = arith.divf %470, %471 : vector<8x128xf32>
    %473 = arith.mulf %464, %417 : vector<8x128xf32>
    %474 = arith.mulf %458, %466 : vector<8x128xf32>
    %475 = arith.addf %473, %474 : vector<8x128xf32>
    %476 = math.tanh %475 : vector<8x128xf32>
    %477 = arith.mulf %472, %476 : vector<8x128xf32>
    %c0_77 = arith.constant 0 : index
    %c0_78 = arith.constant 0 : index
    %478 = vector.load %arg2[%c0_77, %c0_78] : memref<8x128xf32, #tpu.memory_space<vmem>>, vector<8x128xf32>
    %479 = tpu.concatenate %477, %478 in 1 : vector<8x128xf32>, vector<8x128xf32> -> vector<8x256xf32>
    %480 = arith.truncf %479 : vector<8x256xf32> to vector<8x256xbf16>
    %c0_79 = arith.constant 0 : index
    %c0_80 = arith.constant 0 : index
    %481 = vector.load %arg8[%c0_79, %c0_80] : memref<256x32xbf16, #tpu.memory_space<vmem>>, vector<256x32xbf16>
    %cst_81 = arith.constant dense<0.000000e+00> : vector<8x32xf32>
    %482 = tpu.matmul %480, %481, %cst_81 {dimension_numbers = #tpu.dot_dimension_numbers<[1], [0], [0], [1], [0, 0, 1, 1], [], []>} : vector<8x256xbf16>, vector<256x32xbf16>, vector<8x32xf32> -> vector<8x32xf32>
    %c0_82 = arith.constant 0 : index
    %c0_83 = arith.constant 0 : index
    %483 = vector.load %arg9[%c0_82, %c0_83] : memref<1x32xf32, #tpu.memory_space<vmem>>, vector<1x32xf32>
    %484 = vector.broadcast %483 : vector<1x32xf32> to vector<8x32xf32>
    %485 = arith.addf %482, %484 : vector<8x32xf32>
    %cst_84 = arith.constant 0.000000e+00 : f32
    %486 = vector.broadcast %cst_84 : f32 to vector<8x32xf32>
    %487 = arith.maximumf %485, %486 : vector<8x32xf32>
    %488 = arith.truncf %487 : vector<8x32xf32> to vector<8x32xbf16>
    %c0_85 = arith.constant 0 : index
    %c0_86 = arith.constant 0 : index
    %489 = vector.load %arg10[%c0_85, %c0_86] : memref<32x128xbf16, #tpu.memory_space<vmem>>, vector<32x128xbf16>
    %cst_87 = arith.constant dense<0.000000e+00> : vector<8x128xf32>
    %490 = tpu.matmul %488, %489, %cst_87 {dimension_numbers = #tpu.dot_dimension_numbers<[1], [0], [0], [1], [0, 0, 1, 1], [], []>} : vector<8x32xbf16>, vector<32x128xbf16>, vector<8x128xf32> -> vector<8x128xf32>
    %c0_88 = arith.constant 0 : index
    %c0_89 = arith.constant 0 : index
    %491 = vector.load %arg11[%c0_88, %c0_89] : memref<1x128xf32, #tpu.memory_space<vmem>>, vector<1x128xf32>
    %492 = vector.broadcast %491 : vector<1x128xf32> to vector<8x128xf32>
    %493 = arith.addf %490, %492 : vector<8x128xf32>
    %c0_90 = arith.constant 0 : index
    %c0_91 = arith.constant 0 : index
    %494 = vector.load %arg12[%c0_90, %c0_91] : memref<8x128xf32, #tpu.memory_space<vmem>>, vector<8x128xf32>
    tpu.vector_store %arg12[%c0_90, %c0_91], %493 {strides = array<i32>} : memref<8x128xf32, #tpu.memory_space<vmem>>, vector<8x128xf32>,
    return
  }
  func.func @transform_0(%arg0: i32) -> (i32, i32, i32) {
    %c0_i32 = arith.constant 0 : i32
    %c0_i32_0 = arith.constant 0 : i32
    %c0_i32_1 = arith.constant 0 : i32
    return %c0_i32, %arg0, %c0_i32_0 : i32, i32, i32
  }
  func.func @transform_1(%arg0: i32) -> (i32, i32) {
    %c0_i32 = arith.constant 0 : i32
    %c0_i32_0 = arith.constant 0 : i32
    return %arg0, %c0_i32 : i32, i32
  }
  func.func @transform_2(%arg0: i32) -> (i32, i32) {
    %c0_i32 = arith.constant 0 : i32
    %c0_i32_0 = arith.constant 0 : i32
    %c0_i32_1 = arith.constant 0 : i32
    return %c0_i32, %c0_i32_0 : i32, i32
  }
  func.func @transform_3(%arg0: i32) -> (i32, i32) {
    %c0_i32 = arith.constant 0 : i32
    %c0_i32_0 = arith.constant 0 : i32
    %c0_i32_1 = arith.constant 0 : i32
    return %c0_i32, %c0_i32_0 : i32, i32
  }
  func.func @transform_4(%arg0: i32) -> (i32, i32) {
    %c0_i32 = arith.constant 0 : i32
    %c0_i32_0 = arith.constant 0 : i32
    %c0_i32_1 = arith.constant 0 : i32
    return %c0_i32, %c0_i32_0 : i32, i32
  }
  func.func @transform_5(%arg0: i32) -> (i32, i32) {
    %c0_i32 = arith.constant 0 : i32
    %c0_i32_0 = arith.constant 0 : i32
    %c0_i32_1 = arith.constant 0 : i32
    return %c0_i32, %c0_i32_0 : i32, i32
  }
  func.func @transform_6(%arg0: i32) -> (i32, i32) {
    %c0_i32 = arith.constant 0 : i32
    %c0_i32_0 = arith.constant 0 : i32
    %c0_i32_1 = arith.constant 0 : i32
    return %c0_i32, %c0_i32_0 : i32, i32
  }
  func.func @transform_7(%arg0: i32) -> (i32, i32) {
    %c0_i32 = arith.constant 0 : i32
    %c0_i32_0 = arith.constant 0 : i32
    %c0_i32_1 = arith.constant 0 : i32
    return %c0_i32, %c0_i32_0 : i32, i32
  }
  func.func @transform_8(%arg0: i32) -> (i32, i32) {
    %c0_i32 = arith.constant 0 : i32
    %c0_i32_0 = arith.constant 0 : i32
    %c0_i32_1 = arith.constant 0 : i32
    return %c0_i32, %c0_i32_0 : i32, i32
  }
  func.func @transform_9(%arg0: i32) -> (i32, i32) {
    %c0_i32 = arith.constant 0 : i32
    %c0_i32_0 = arith.constant 0 : i32
    %c0_i32_1 = arith.constant 0 : i32
    return %c0_i32, %c0_i32_0 : i32, i32
  }
  func.func @transform_10(%arg0: i32) -> (i32, i32) {
    %c0_i32 = arith.constant 0 : i32
    %c0_i32_0 = arith.constant 0 : i32
    %c0_i32_1 = arith.constant 0 : i32
    return %c0_i32, %c0_i32_0 : i32, i32
  }
  func.func @transform_11(%arg0: i32) -> (i32, i32) {
    %c0_i32 = arith.constant 0 : i32
    %c0_i32_0 = arith.constant 0 : i32
    return %arg0, %c0_i32 : i32, i32
  }
}

</mosaic_0001>

<llo_original>
// kernel: tpu_custom_call.1
$region0: #{tpu_custom_call.1}
  #allocation0 [shape = 'u32[]', space=smem, size = 0x4, offset = 0x4, fixed_abs, tag = 'smem constant byte address 0x4 - core index']
  #allocation1 [shape = 'u32[144,128]{1,0:T(1,128)}', space=vmem, size = 0x12000, scoped, tag = 'internal scratch']
  %s0 = inlined_call_operand.vmem [shape: f32[8,8,12], index: 0, kind: input, shape index: {}]
  %s1 = inlined_call_operand.vmem [shape: f32[8,128], index: 1, kind: input, shape index: {}]
  %s2 = inlined_call_operand.vmem [shape: bf16[12,512], index: 2, kind: input, shape index: {}]
  %s3 = inlined_call_operand.hbm [shape: bf16[128,512], index: 3, kind: input, shape index: {}]
  %s4 = inlined_call_operand.vmem [shape: f32[1,512], index: 4, kind: input, shape index: {}]
  %s5 = inlined_call_operand.hbm [shape: bf16[256,512], index: 5, kind: input, shape index: {}]
  %s6 = inlined_call_operand.vmem [shape: f32[1,512], index: 6, kind: input, shape index: {}]
  %s7 = inlined_call_operand.vmem [shape: bf16[256,32], index: 7, kind: input, shape index: {}]
  %s8 = inlined_call_operand.vmem [shape: f32[1,32], index: 8, kind: input, shape index: {}]
  %s9 = inlined_call_operand.vmem [shape: bf16[32,128], index: 9, kind: input, shape index: {}]
  %s10 = inlined_call_operand.vmem [shape: f32[1,128], index: 10, kind: input, shape index: {}]
  %s11 = inlined_call_operand.hbm [shape: f32[8,128], index: 11, kind: output, shape index: {}]
  %s12 = sld [smem:[#allocation0]]
  $region62: #{tpu_custom_call.1} parent=0
    _
  %s14 = ssub.s32 1, %s12
  %s15 = scalar_select 0, %s14, %s12
  $region1: #{tpu_custom_call.1} parent=0
    #allocation2 [shape = 'u8[131072]{0}', space=vmem, size = 0x20000, scoped, tag = 'input window, operand 3, single buffered']
    #allocation3 [shape = 's32[1]{0}', space=sflag, size = 0x4, scoped, tag = 'scoped memory for tpu_custom_call.1']
    #allocation4 [shape = 's32[1]{0}', space=sflag, size = 0x4, scoped, tag = 'scoped memory for tpu_custom_call.1']
    #allocation5 [shape = 'u8[262144]{0}', space=vmem, size = 0x40000, scoped, tag = 'input window, operand 5, single buffered']
    #allocation6 [shape = 's32[1]{0}', space=sflag, size = 0x4, scoped, tag = 'scoped memory for tpu_custom_call.1']
    #allocation7 [shape = 'u8[4096]{0}', space=vmem, size = 0x1000, scoped, tag = 'output window, operand 0, single buffered']
    %16 = vsyncpa [#allocation3], 0
    %17 = vsyncpa [#allocation6], 0
    %18 = vsyncpa [#allocation4], 0
    // Predicated region
    $region2: #{tpu_custom_call.1} parent=1 // pred_check
      _
    $region3: #{tpu_custom_call.1} parent=1 // pred_check_branch
      %20 = sbr.rel (0) target = $region5
    $region4: #{tpu_custom_call.1} parent=1 // pred_region
      _
    $region5: #{tpu_custom_call.1} parent=1 // pred_fallthru
      _
    // Predicated region
    $region6: #{tpu_custom_call.1} parent=1 // pred_check
      _
    $region7: #{tpu_custom_call.1} parent=1 // pred_check_branch
      %22 = sbr.rel (0) target = $region9
    $region8: #{tpu_custom_call.1} parent=1 // pred_region
      _
    $region9: #{tpu_custom_call.1} parent=1 // pred_fallthru
      _
    // Predicated region
    $region10: #{tpu_custom_call.1} parent=1 // pred_check
      _
    $region11: #{tpu_custom_call.1} parent=1 // pred_check_branch
      %24 = sbr.rel (0) target = $region13
    $region12: #{tpu_custom_call.1} parent=1 // pred_region
      _
    $region13: #{tpu_custom_call.1} parent=1 // pred_fallthru
      _
    // Predicated region
    $region14: #{tpu_custom_call.1} parent=1 // pred_check
      _
    $region15: #{tpu_custom_call.1} parent=1 // pred_check_branch
      %26 = sbr.rel (0) target = $region17
    $region16: #{tpu_custom_call.1} parent=1 // pred_region
      %s28 = ssub.s32 4096, 4096
      %29 = vsyncadd [#allocation3], %s28
      %s30 = sshll.u32 [#allocation2], 4
      %s31 = int_to_ptr.vmem [resolvable:$true] %s30
      %36 = dma.hbm_to_vmem [thread:$0]  %s3, 4096, %s31, [#allocation3], 256, 256, 16
    $region17: #{tpu_custom_call.1} parent=1 // pred_fallthru
      _
    // Predicated region
    $region18: #{tpu_custom_call.1} parent=1 // pred_check
      _
    $region19: #{tpu_custom_call.1} parent=1 // pred_check_branch
      %38 = sbr.rel (0) target = $region21
    $region20: #{tpu_custom_call.1} parent=1 // pred_region
      _
    $region21: #{tpu_custom_call.1} parent=1 // pred_fallthru
      _
    // Predicated region
    $region22: #{tpu_custom_call.1} parent=1 // pred_check
      _
    $region23: #{tpu_custom_call.1} parent=1 // pred_check_branch
      %40 = sbr.rel (0) target = $region25
    $region24: #{tpu_custom_call.1} parent=1 // pred_region
      %s42 = ssub.s32 8192, 8192
      %43 = vsyncadd [#allocation6], %s42
      %s44 = sshll.u32 [#allocation5], 4
      %s45 = int_to_ptr.vmem [resolvable:$true] %s44
      %50 = dma.hbm_to_vmem [thread:$0]  %s5, 8192, %s45, [#allocation6], 256, 256, 16
    $region25: #{tpu_custom_call.1} parent=1 // pred_fallthru
      _
    // Predicated region
    $region26: #{tpu_custom_call.1} parent=1 // pred_check
      _
    $region27: #{tpu_custom_call.1} parent=1 // pred_check_branch
      %52 = sbr.rel (0) target = $region29
    $region28: #{tpu_custom_call.1} parent=1 // pred_region
      _
    $region29: #{tpu_custom_call.1} parent=1 // pred_fallthru
      _
    // Predicated region
    $region30: #{tpu_custom_call.1} parent=1 // pred_check
      _
    $region31: #{tpu_custom_call.1} parent=1 // pred_check_branch
      %54 = sbr.rel (0) target = $region33
    $region32: #{tpu_custom_call.1} parent=1 // pred_region
      _
    $region33: #{tpu_custom_call.1} parent=1 // pred_fallthru
      _
    // Predicated region
    $region34: #{tpu_custom_call.1} parent=1 // pred_check
      _
    $region35: #{tpu_custom_call.1} parent=1 // pred_check_branch
      %56 = sbr.rel (0) target = $region37
    $region36: #{tpu_custom_call.1} parent=1 // pred_region
      _
    $region37: #{tpu_custom_call.1} parent=1 // pred_fallthru
      _
    // Predicated region
    $region38: #{tpu_custom_call.1} parent=1 // pred_check
      _
    $region39: #{tpu_custom_call.1} parent=1 // pred_check_branch
      %58 = sbr.rel (0) target = $region41
    $region40: #{tpu_custom_call.1} parent=1 // pred_region
      _
    $region41: #{tpu_custom_call.1} parent=1 // pred_fallthru
      _
    // Predicated region
    $region42: #{tpu_custom_call.1} parent=1 // pred_check
      _
    $region43: #{tpu_custom_call.1} parent=1 // pred_check_branch
      %60 = sbr.rel (0) target = $region45
    $region44: #{tpu_custom_call.1} parent=1 // pred_region
      _
    $region45: #{tpu_custom_call.1} parent=1 // pred_fallthru
      _
    // Predicated region
    $region46: #{tpu_custom_call.1} parent=1 // pred_check
      _
    $region47: #{tpu_custom_call.1} parent=1 // pred_check_branch
      %62 = sbr.rel (0) target = $region49
    $region48: #{tpu_custom_call.1} parent=1 // pred_region
      %63 = dma.done [#allocation3], 4096
    $region49: #{tpu_custom_call.1} parent=1 // pred_fallthru
      _
    // Predicated region
    $region50: #{tpu_custom_call.1} parent=1 // pred_check
      _
    $region51: #{tpu_custom_call.1} parent=1 // pred_check_branch
      %65 = sbr.rel (0) target = $region53
    $region52: #{tpu_custom_call.1} parent=1 // pred_region
      %66 = dma.done [#allocation6], 8192
    $region53: #{tpu_custom_call.1} parent=1 // pred_fallthru
      _
    %v68 = vld [vmem:[%s0] sm:$0xff]
    %v69 = vld [vmem:[%s0 + $0x8] sm:$0xff]
    %v70 = vld [vmem:[%s0 + $0x10] sm:$0xff]
    %v71 = vld [vmem:[%s0 + $0x18] sm:$0xff]
    %v72 = vld [vmem:[%s0 + $0x20] sm:$0xff]
    %v73 = vld [vmem:[%s0 + $0x28] sm:$0xff]
    %v74 = vld [vmem:[%s0 + $0x30] sm:$0xff]
    %v75 = vld [vmem:[%s0 + $0x38] sm:$0xff]
    %v76 = vpack.c.bf16 %v69, %v68
    %v77 = vpack.c.bf16 %v71, %v70
    %v78 = vpack.c.bf16 %v73, %v72
    %v79 = vpack.c.bf16 %v75, %v74
    %v80 = vld [vmem:[%s2] sm:$0xff]
    %v81 = vld [vmem:[%s2 + $0x8] sm:$0xff]
    %v82 = vld [vmem:[%s2 + $0x10] sm:$0x33]
    %v83 = vld [vmem:[%s2 + $0x18] sm:$0x33]
    %v84 = vld [vmem:[%s4] sm:$0xf]
    %v86 = vlaneseq
    %v87 = vshrl.u32 %v86, 7
    %v88 = vsub.s32 0, %v87
    %v89 = vrot.slane %v84, %v88
    %v90 = vlaneseq
    %v91 = vshrl.u32 %v90, 7
    %v92 = vsub.s32 1, %v91
    %v93 = vrot.slane %v84, %v92
    %v94 = vlaneseq
    %v95 = vshrl.u32 %v94, 7
    %v96 = vsub.s32 2, %v95
    %v97 = vrot.slane %v84, %v96
    %v98 = vlaneseq
    %v99 = vshrl.u32 %v98, 7
    %v100 = vsub.s32 3, %v99
    %v101 = vrot.slane %v84, %v100
    %v110 = vunpack.c.l.b16 %v80
    %v111 = vunpack.c.h.b16 %v80
    %v112 = vunpack.c.l.b16 %v81
    %v113 = vunpack.c.h.b16 %v81
    %v114 = vunpack.c.l.b16 %v82
    %v115 = vunpack.c.h.b16 %v82
    %v116 = vunpack.c.l.b16 %v83
    %v117 = vunpack.c.h.b16 %v83
    %v118 = vpack.c.b16 %v114, %v110
    %v119 = vpack.c.b16 %v115, %v111
    %v120 = vpack.c.b16 %v116, %v112
    %v121 = vpack.c.b16 %v117, %v113
    %vm122 = vcmask 97280
    %v124 = vsel %vm122, %v76, 0
    %v127 = vsel %vm122, %v77, 0
    %v130 = vsel %vm122, %v78, 0
    %v133 = vsel %vm122, %v79, 0
    %vm135 = vcmask 1045504
    %v137 = vsel %vm135, %v118, 0
    %v140 = vsel %vm135, %v119, 0
    %v143 = vsel %vm135, %v120, 0
    %v146 = vsel %vm135, %v121, 0
    %148 = vmatprep.subr.bf16.mxu0 0
    %149 = vmatpush1.bf16.msra.mxu0 0
    %150 = vmatprep.subr.bf16.mxu0 0
    %151 = vmatpush1.bf16.msra.mxu0 0
    %152 = vmatprep.subr.bf16.mxu0 0
    %153 = vmatpush1.bf16.msra.mxu0 0
    %154 = vmatprep.subr.bf16.mxu0 0
    %155 = vmatpush1.bf16.msra.mxu0 0
    %156 = vmatprep.subr.bf16.mxu0 0
    %157 = vmatpush1.bf16.msra.mxu0 0
    %158 = vmatprep.subr.bf16.mxu0 0
    %159 = vmatpush1.bf16.msra.mxu0 0
    %160 = vmatprep.subr.bf16.mxu0 0
    %161 = vmatpush1.bf16.msra.mxu0 0
    %162 = vmatprep.subr.bf16.mxu0 %v140
    %163 = vmatpush1.bf16.msra.mxu0 %v137
    %164 = vmatprep.subr.bf16.mxu0 0
    %165 = vmatpush2.bf16.msra.mxu0 0
    %166 = vmatprep.subr.bf16.mxu0 0
    %167 = vmatpush2.bf16.msra.mxu0 0
    %168 = vmatprep.subr.bf16.mxu0 0
    %169 = vmatpush2.bf16.msra.mxu0 0
    %170 = vmatprep.subr.bf16.mxu0 0
    %171 = vmatpush2.bf16.msra.mxu0 0
    %172 = vmatprep.subr.bf16.mxu0 0
    %173 = vmatpush2.bf16.msra.mxu0 0
    %174 = vmatprep.subr.bf16.mxu0 0
    %175 = vmatpush2.bf16.msra.mxu0 0
    %176 = vmatprep.subr.bf16.mxu0 0
    %177 = vmatpush2.bf16.msra.mxu0 0
    %178 = vmatprep.subr.bf16.mxu0 0
    %179 = vmatpush2.bf16.msra.mxu0 0
    %180 = vmatprep.mubr.bf16.mxu0 0
    %181 = vmatmul.mubr.bf16.gmra.mxu0 %v124
    %v182 = vpop.f32.mrf.mxu0
    %v183 = vadd.f32 %v89, %v182
    %v184 = vpop.f32.mrf.mxu0
    %v185 = vadd.f32 %v93, %v184
    %v186 = vpop.f32.mrf.mxu0
    %v187 = vadd.f32 %v89, %v186
    %v188 = vpop.f32.mrf.mxu0
    %v189 = vadd.f32 %v93, %v188
    %190 = vmatprep.mubr.bf16.mxu0 0
    %191 = vmatmul.mubr.bf16.gmra.mxu0 %v127
    %v192 = vpop.f32.mrf.mxu0
    %v193 = vadd.f32 %v89, %v192
    %v194 = vpop.f32.mrf.mxu0
    %v195 = vadd.f32 %v93, %v194
    %v196 = vpop.f32.mrf.mxu0
    %v197 = vadd.f32 %v89, %v196
    %v198 = vpop.f32.mrf.mxu0
    %v199 = vadd.f32 %v93, %v198
    %200 = vmatprep.mubr.bf16.mxu0 0
    %201 = vmatmul.mubr.bf16.gmra.mxu0 %v130
    %v202 = vpop.f32.mrf.mxu0
    %v203 = vadd.f32 %v89, %v202
    %v204 = vpop.f32.mrf.mxu0
    %v205 = vadd.f32 %v93, %v204
    %v206 = vpop.f32.mrf.mxu0
    %v207 = vadd.f32 %v89, %v206
    %v208 = vpop.f32.mrf.mxu0
    %v209 = vadd.f32 %v93, %v208
    %210 = vmatprep.mubr.bf16.mxu0 0
    %211 = vmatmul.mubr.bf16.gmra.mxu0 %v133
    %v212 = vpop.f32.mrf.mxu0
    %v213 = vadd.f32 %v89, %v212
    %v214 = vpop.f32.mrf.mxu0
    %v215 = vadd.f32 %v93, %v214
    %v216 = vpop.f32.mrf.mxu0
    %v217 = vadd.f32 %v89, %v216
    %v218 = vpop.f32.mrf.mxu0
    %v219 = vadd.f32 %v93, %v218
    %220 = vdwg.mxu0
    %221 = vmatprep.subr.bf16.mxu0 0
    %222 = vmatpush1.bf16.msra.mxu0 0
    %223 = vmatprep.subr.bf16.mxu0 0
    %224 = vmatpush1.bf16.msra.mxu0 0
    %225 = vmatprep.subr.bf16.mxu0 0
    %226 = vmatpush1.bf16.msra.mxu0 0
    %227 = vmatprep.subr.bf16.mxu0 0
    %228 = vmatpush1.bf16.msra.mxu0 0
    %229 = vmatprep.subr.bf16.mxu0 0
    %230 = vmatpush1.bf16.msra.mxu0 0
    %231 = vmatprep.subr.bf16.mxu0 0
    %232 = vmatpush1.bf16.msra.mxu0 0
    %233 = vmatprep.subr.bf16.mxu0 0
    %234 = vmatpush1.bf16.msra.mxu0 0
    %235 = vmatprep.subr.bf16.mxu0 %v146
    %236 = vmatpush1.bf16.msra.mxu0 %v143
    %237 = vmatprep.subr.bf16.mxu0 0
    %238 = vmatpush2.bf16.msra.mxu0 0
    %239 = vmatprep.subr.bf16.mxu0 0
    %240 = vmatpush2.bf16.msra.mxu0 0
    %241 = vmatprep.subr.bf16.mxu0 0
    %242 = vmatpush2.bf16.msra.mxu0 0
    %243 = vmatprep.subr.bf16.mxu0 0
    %244 = vmatpush2.bf16.msra.mxu0 0
    %245 = vmatprep.subr.bf16.mxu0 0
    %246 = vmatpush2.bf16.msra.mxu0 0
    %247 = vmatprep.subr.bf16.mxu0 0
    %248 = vmatpush2.bf16.msra.mxu0 0
    %249 = vmatprep.subr.bf16.mxu0 0
    %250 = vmatpush2.bf16.msra.mxu0 0
    %251 = vmatprep.subr.bf16.mxu0 0
    %252 = vmatpush2.bf16.msra.mxu0 0
    %253 = vmatprep.mubr.bf16.mxu0 0
    %254 = vmatmul.mubr.bf16.gmra.mxu0 %v124
    %v255 = vpop.f32.mrf.mxu0
    %v256 = vadd.f32 %v97, %v255
    %v257 = vpop.f32.mrf.mxu0
    %v258 = vadd.f32 %v101, %v257
    %v259 = vpop.f32.mrf.mxu0
    %v260 = vadd.f32 %v97, %v259
    %v261 = vpop.f32.mrf.mxu0
    %v262 = vadd.f32 %v101, %v261
    %263 = vmatprep.mubr.bf16.mxu0 0
    %264 = vmatmul.mubr.bf16.gmra.mxu0 %v127
    %v265 = vpop.f32.mrf.mxu0
    %v266 = vadd.f32 %v97, %v265
    %v267 = vpop.f32.mrf.mxu0
    %v268 = vadd.f32 %v101, %v267
    %v269 = vpop.f32.mrf.mxu0
    %v270 = vadd.f32 %v97, %v269
    %v271 = vpop.f32.mrf.mxu0
    %v272 = vadd.f32 %v101, %v271
    %273 = vmatprep.mubr.bf16.mxu0 0
    %274 = vmatmul.mubr.bf16.gmra.mxu0 %v130
    %v275 = vpop.f32.mrf.mxu0
    %v276 = vadd.f32 %v97, %v275
    %v277 = vpop.f32.mrf.mxu0
    %v278 = vadd.f32 %v101, %v277
    %v279 = vpop.f32.mrf.mxu0
    %v280 = vadd.f32 %v97, %v279
    %v281 = vpop.f32.mrf.mxu0
    %v282 = vadd.f32 %v101, %v281
    %283 = vmatprep.mubr.bf16.mxu0 0
    %284 = vmatmul.mubr.bf16.gmra.mxu0 %v133
    %v285 = vpop.f32.mrf.mxu0
    %v286 = vadd.f32 %v97, %v285
    %v287 = vpop.f32.mrf.mxu0
    %v288 = vadd.f32 %v101, %v287
    %v289 = vpop.f32.mrf.mxu0
    %v290 = vadd.f32 %v97, %v289
    %v291 = vpop.f32.mrf.mxu0
    %v292 = vadd.f32 %v101, %v291
    %293 = vdwg.mxu0
    %v294 = vld [vmem:[#allocation2] sm:$0xff]
    %v295 = vld [vmem:[#allocation2 + $0x8] sm:$0xff]
    %v296 = vld [vmem:[#allocation2 + $0x10] sm:$0xff]
    %v297 = vld [vmem:[#allocation2 + $0x18] sm:$0xff]
    %v298 = vld [vmem:[#allocation2 + $0x20] sm:$0xff]
    %v299 = vld [vmem:[#allocation2 + $0x28] sm:$0xff]
    %v300 = vld [vmem:[#allocation2 + $0x30] sm:$0xff]
    %v301 = vld [vmem:[#allocation2 + $0x38] sm:$0xff]
    %v302 = vld [vmem:[#allocation2 + $0x40] sm:$0xff]
    %v303 = vld [vmem:[#allocation2 + $0x48] sm:$0xff]
    %v304 = vld [vmem:[#allocation2 + $0x50] sm:$0xff]
    %v305 = vld [vmem:[#allocation2 + $0x58] sm:$0xff]
    %v306 = vld [vmem:[#allocation2 + $0x60] sm:$0xff]
    %v307 = vld [vmem:[#allocation2 + $0x68] sm:$0xff]
    %v308 = vld [vmem:[#allocation2 + $0x70] sm:$0xff]
    %v309 = vld [vmem:[#allocation2 + $0x78] sm:$0xff]
    %v310 = vld [vmem:[#allocation2 + $0x80] sm:$0xff]
    %v311 = vld [vmem:[#allocation2 + $0x88] sm:$0xff]
    %v312 = vld [vmem:[#allocation2 + $0x90] sm:$0xff]
    %v313 = vld [vmem:[#allocation2 + $0x98] sm:$0xff]
    %v314 = vld [vmem:[#allocation2 + $0xa0] sm:$0xff]
    %v315 = vld [vmem:[#allocation2 + $0xa8] sm:$0xff]
    %v316 = vld [vmem:[#allocation2 + $0xb0] sm:$0xff]
    %v317 = vld [vmem:[#allocation2 + $0xb8] sm:$0xff]
    %v318 = vld [vmem:[#allocation2 + $0xc0] sm:$0xff]
    %v319 = vld [vmem:[#allocation2 + $0xc8] sm:$0xff]
    %v320 = vld [vmem:[#allocation2 + $0xd0] sm:$0xff]
    %v321 = vld [vmem:[#allocation2 + $0xd8] sm:$0xff]
    %v322 = vld [vmem:[#allocation2 + $0xe0] sm:$0xff]
    %v323 = vld [vmem:[#allocation2 + $0xe8] sm:$0xff]
    %v324 = vld [vmem:[#allocation2 + $0xf0] sm:$0xff]
    %v325 = vld [vmem:[#allocation2 + $0xf8] sm:$0xff]
    %v326 = vld [vmem:[#allocation5] sm:$0xff]
    %v327 = vld [vmem:[#allocation5 + $0x8] sm:$0xff]
    %v328 = vld [vmem:[#allocation5 + $0x10] sm:$0xff]
    %v329 = vld [vmem:[#allocation5 + $0x18] sm:$0xff]
    %v330 = vld [vmem:[#allocation5 + $0x20] sm:$0xff]
    %v331 = vld [vmem:[#allocation5 + $0x28] sm:$0xff]
    %v332 = vld [vmem:[#allocation5 + $0x30] sm:$0xff]
    %v333 = vld [vmem:[#allocation5 + $0x38] sm:$0xff]
    %v334 = vld [vmem:[#allocation5 + $0x40] sm:$0xff]
    %v335 = vld [vmem:[#allocation5 + $0x48] sm:$0xff]
    %v336 = vld [vmem:[#allocation5 + $0x50] sm:$0xff]
    %v337 = vld [vmem:[#allocation5 + $0x58] sm:$0xff]
    %v338 = vld [vmem:[#allocation5 + $0x60] sm:$0xff]
    %v339 = vld [vmem:[#allocation5 + $0x68] sm:$0xff]
    %v340 = vld [vmem:[#allocation5 + $0x70] sm:$0xff]
    %v341 = vld [vmem:[#allocation5 + $0x78] sm:$0xff]
    %v342 = vld [vmem:[#allocation5 + $0x80] sm:$0xff]
    %v343 = vld [vmem:[#allocation5 + $0x88] sm:$0xff]
    %v344 = vld [vmem:[#allocation5 + $0x90] sm:$0xff]
    %v345 = vld [vmem:[#allocation5 + $0x98] sm:$0xff]
    %v346 = vld [vmem:[#allocation5 + $0xa0] sm:$0xff]
    %v347 = vld [vmem:[#allocation5 + $0xa8] sm:$0xff]
    %v348 = vld [vmem:[#allocation5 + $0xb0] sm:$0xff]
    %v349 = vld [vmem:[#allocation5 + $0xb8] sm:$0xff]
    %v350 = vld [vmem:[#allocation5 + $0xc0] sm:$0xff]
    %v351 = vld [vmem:[#allocation5 + $0xc8] sm:$0xff]
    %v352 = vld [vmem:[#allocation5 + $0xd0] sm:$0xff]
    %v353 = vld [vmem:[#allocation5 + $0xd8] sm:$0xff]
    %v354 = vld [vmem:[#allocation5 + $0xe0] sm:$0xff]
    %v355 = vld [vmem:[#allocation5 + $0xe8] sm:$0xff]
    %v356 = vld [vmem:[#allocation5 + $0xf0] sm:$0xff]
    %v357 = vld [vmem:[#allocation5 + $0xf8] sm:$0xff]
    %v358 = vld [vmem:[#allocation5 + $0x100] sm:$0xff]
    %v359 = vld [vmem:[#allocation5 + $0x108] sm:$0xff]
    %v360 = vld [vmem:[#allocation5 + $0x110] sm:$0xff]
    %v361 = vld [vmem:[#allocation5 + $0x118] sm:$0xff]
    %v362 = vld [vmem:[#allocation5 + $0x120] sm:$0xff]
    %v363 = vld [vmem:[#allocation5 + $0x128] sm:$0xff]
    %v364 = vld [vmem:[#allocation5 + $0x130] sm:$0xff]
    %v365 = vld [vmem:[#allocation5 + $0x138] sm:$0xff]
    %v366 = vld [vmem:[#allocation5 + $0x140] sm:$0xff]
    %v367 = vld [vmem:[#allocation5 + $0x148] sm:$0xff]
    %v368 = vld [vmem:[#allocation5 + $0x150] sm:$0xff]
    %v369 = vld [vmem:[#allocation5 + $0x158] sm:$0xff]
    %v370 = vld [vmem:[#allocation5 + $0x160] sm:$0xff]
    %v371 = vld [vmem:[#allocation5 + $0x168] sm:$0xff]
    %v372 = vld [vmem:[#allocation5 + $0x170] sm:$0xff]
    %v373 = vld [vmem:[#allocation5 + $0x178] sm:$0xff]
    %v374 = vld [vmem:[#allocation5 + $0x180] sm:$0xff]
    %v375 = vld [vmem:[#allocation5 + $0x188] sm:$0xff]
    %v376 = vld [vmem:[#allocation5 + $0x190] sm:$0xff]
    %v377 = vld [vmem:[#allocation5 + $0x198] sm:$0xff]
    %v378 = vld [vmem:[#allocation5 + $0x1a0] sm:$0xff]
    %v379 = vld [vmem:[#allocation5 + $0x1a8] sm:$0xff]
    %v380 = vld [vmem:[#allocation5 + $0x1b0] sm:$0xff]
    %v381 = vld [vmem:[#allocation5 + $0x1b8] sm:$0xff]
    %v382 = vld [vmem:[#allocation5 + $0x1c0] sm:$0xff]
    %v383 = vld [vmem:[#allocation5 + $0x1c8] sm:$0xff]
    %v384 = vld [vmem:[#allocation5 + $0x1d0] sm:$0xff]
    %v385 = vld [vmem:[#allocation5 + $0x1d8] sm:$0xff]
    %v386 = vld [vmem:[#allocation5 + $0x1e0] sm:$0xff]
    %v387 = vld [vmem:[#allocation5 + $0x1e8] sm:$0xff]
    %v388 = vld [vmem:[#allocation5 + $0x1f0] sm:$0xff]
    %v389 = vld [vmem:[#allocation5 + $0x1f8] sm:$0xff]
    %v390 = vld [vmem:[%s6] sm:$0xf]
    %v392 = vlaneseq
    %v393 = vshrl.u32 %v392, 7
    %v394 = vsub.s32 0, %v393
    %v395 = vrot.slane %v390, %v394
    %v396 = vlaneseq
    %v397 = vshrl.u32 %v396, 7
    %v398 = vsub.s32 1, %v397
    %v399 = vrot.slane %v390, %v398
    %v400 = vlaneseq
    %v401 = vshrl.u32 %v400, 7
    %v402 = vsub.s32 2, %v401
    %v403 = vrot.slane %v390, %v402
    %v404 = vlaneseq
    %v405 = vshrl.u32 %v404, 7
    %v406 = vsub.s32 3, %v405
    %v407 = vrot.slane %v390, %v406
    %v444 = vunpack.c.l.b16 %v294
    %v445 = vunpack.c.h.b16 %v294
    %v446 = vunpack.c.l.b16 %v295
    %v447 = vunpack.c.h.b16 %v295
    %v448 = vunpack.c.l.b16 %v296
    %v449 = vunpack.c.h.b16 %v296
    %v450 = vunpack.c.l.b16 %v297
    %v451 = vunpack.c.h.b16 %v297
    %v452 = vunpack.c.l.b16 %v298
    %v453 = vunpack.c.h.b16 %v298
    %v454 = vunpack.c.l.b16 %v299
    %v455 = vunpack.c.h.b16 %v299
    %v456 = vunpack.c.l.b16 %v300
    %v457 = vunpack.c.h.b16 %v300
    %v458 = vunpack.c.l.b16 %v301
    %v459 = vunpack.c.h.b16 %v301
    %v460 = vunpack.c.l.b16 %v302
    %v461 = vunpack.c.h.b16 %v302
    %v462 = vunpack.c.l.b16 %v303
    %v463 = vunpack.c.h.b16 %v303
    %v464 = vunpack.c.l.b16 %v304
    %v465 = vunpack.c.h.b16 %v304
    %v466 = vunpack.c.l.b16 %v305
    %v467 = vunpack.c.h.b16 %v305
    %v468 = vunpack.c.l.b16 %v306
    %v469 = vunpack.c.h.b16 %v306
    %v470 = vunpack.c.l.b16 %v307
    %v471 = vunpack.c.h.b16 %v307
    %v472 = vunpack.c.l.b16 %v308
    %v473 = vunpack.c.h.b16 %v308
    %v474 = vunpack.c.l.b16 %v309
    %v475 = vunpack.c.h.b16 %v309
    %v476 = vunpack.c.l.b16 %v310
    %v477 = vunpack.c.h.b16 %v310
    %v478 = vunpack.c.l.b16 %v311
    %v479 = vunpack.c.h.b16 %v311
    %v480 = vunpack.c.l.b16 %v312
    %v481 = vunpack.c.h.b16 %v312
    %v482 = vunpack.c.l.b16 %v313
    %v483 = vunpack.c.h.b16 %v313
    %v484 = vunpack.c.l.b16 %v314
    %v485 = vunpack.c.h.b16 %v314
    %v486 = vunpack.c.l.b16 %v315
    %v487 = vunpack.c.h.b16 %v315
    %v488 = vunpack.c.l.b16 %v316
    %v489 = vunpack.c.h.b16 %v316
    %v490 = vunpack.c.l.b16 %v317
    %v491 = vunpack.c.h.b16 %v317
    %v492 = vunpack.c.l.b16 %v318
    %v493 = vunpack.c.h.b16 %v318
    %v494 = vunpack.c.l.b16 %v319
    %v495 = vunpack.c.h.b16 %v319
    %v496 = vunpack.c.l.b16 %v320
    %v497 = vunpack.c.h.b16 %v320
    %v498 = vunpack.c.l.b16 %v321
    %v499 = vunpack.c.h.b16 %v321
    %v500 = vunpack.c.l.b16 %v322
    %v501 = vunpack.c.h.b16 %v322
    %v502 = vunpack.c.l.b16 %v323
    %v503 = vunpack.c.h.b16 %v323
    %v504 = vunpack.c.l.b16 %v324
    %v505 = vunpack.c.h.b16 %v324
    %v506 = vunpack.c.l.b16 %v325
    %v507 = vunpack.c.h.b16 %v325
    %v508 = vpack.c.b16 %v448, %v444
    %v509 = vpack.c.b16 %v449, %v445
    %v510 = vpack.c.b16 %v450, %v446
    %v511 = vpack.c.b16 %v451, %v447
    %v512 = vpack.c.b16 %v456, %v452
    %v513 = vpack.c.b16 %v457, %v453
    %v514 = vpack.c.b16 %v458, %v454
    %v515 = vpack.c.b16 %v459, %v455
    %v516 = vpack.c.b16 %v464, %v460
    %v517 = vpack.c.b16 %v465, %v461
    %v518 = vpack.c.b16 %v466, %v462
    %v519 = vpack.c.b16 %v467, %v463
    %v520 = vpack.c.b16 %v472, %v468
    %v521 = vpack.c.b16 %v473, %v469
    %v522 = vpack.c.b16 %v474, %v470
    %v523 = vpack.c.b16 %v475, %v471
    %v524 = vpack.c.b16 %v480, %v476
    %v525 = vpack.c.b16 %v481, %v477
    %v526 = vpack.c.b16 %v482, %v478
    %v527 = vpack.c.b16 %v483, %v479
    %v528 = vpack.c.b16 %v488, %v484
    %v529 = vpack.c.b16 %v489, %v485
    %v530 = vpack.c.b16 %v490, %v486
    %v531 = vpack.c.b16 %v491, %v487
    %v532 = vpack.c.b16 %v496, %v492
    %v533 = vpack.c.b16 %v497, %v493
    %v534 = vpack.c.b16 %v498, %v494
    %v535 = vpack.c.b16 %v499, %v495
    %v536 = vpack.c.b16 %v504, %v500
    %v537 = vpack.c.b16 %v505, %v501
    %v538 = vpack.c.b16 %v506, %v502
    %v539 = vpack.c.b16 %v507, %v503
    %572 = vmatprep.subr.bf16.mxu0 %v537
    %573 = vmatpush1.bf16.msra.mxu0 %v536
    %574 = vmatprep.subr.bf16.mxu0 %v533
    %575 = vmatpush1.bf16.msra.mxu0 %v532
    %576 = vmatprep.subr.bf16.mxu0 %v529
    %577 = vmatpush1.bf16.msra.mxu0 %v528
    %578 = vmatprep.subr.bf16.mxu0 %v525
    %579 = vmatpush1.bf16.msra.mxu0 %v524
    %580 = vmatprep.subr.bf16.mxu0 %v521
    %581 = vmatpush1.bf16.msra.mxu0 %v520
    %582 = vmatprep.subr.bf16.mxu0 %v517
    %583 = vmatpush1.bf16.msra.mxu0 %v516
    %584 = vmatprep.subr.bf16.mxu0 %v513
    %585 = vmatpush1.bf16.msra.mxu0 %v512
    %586 = vmatprep.subr.bf16.mxu0 %v509
    %587 = vmatpush1.bf16.msra.mxu0 %v508
    %588 = vmatprep.subr.bf16.mxu0 0
    %589 = vmatpush2.bf16.msra.mxu0 0
    %590 = vmatprep.subr.bf16.mxu0 0
    %591 = vmatpush2.bf16.msra.mxu0 0
    %592 = vmatprep.subr.bf16.mxu0 0
    %593 = vmatpush2.bf16.msra.mxu0 0
    %594 = vmatprep.subr.bf16.mxu0 0
    %595 = vmatpush2.bf16.msra.mxu0 0
    %596 = vmatprep.subr.bf16.mxu0 0
    %597 = vmatpush2.bf16.msra.mxu0 0
    %598 = vmatprep.subr.bf16.mxu0 0
    %599 = vmatpush2.bf16.msra.mxu0 0
    %600 = vmatprep.subr.bf16.mxu0 0
    %601 = vmatpush2.bf16.msra.mxu0 0
    %602 = vmatprep.subr.bf16.mxu0 0
    %603 = vmatpush2.bf16.msra.mxu0 0
    %604 = vmatprep.mubr.bf16.mxu0 0
    %605 = vmatmul.mubr.bf16.gmra.mxu0 0
    %v606 = vpop.f32.mrf.mxu0
    %v607 = vadd.f32 0.0, %v606
    %v608 = vpop.f32.mrf.mxu0
    %v609 = vadd.f32 0.0, %v608
    %v610 = vpop.f32.mrf.mxu0
    %v611 = vpop.f32.mrf.mxu0
    %612 = vdwg.mxu0
    %613 = vmatprep.subr.bf16.mxu0 %v539
    %614 = vmatpush1.bf16.msra.mxu0 %v538
    %615 = vmatprep.subr.bf16.mxu0 %v535
    %616 = vmatpush1.bf16.msra.mxu0 %v534
    %617 = vmatprep.subr.bf16.mxu0 %v531
    %618 = vmatpush1.bf16.msra.mxu0 %v530
    %619 = vmatprep.subr.bf16.mxu0 %v527
    %620 = vmatpush1.bf16.msra.mxu0 %v526
    %621 = vmatprep.subr.bf16.mxu0 %v523
    %622 = vmatpush1.bf16.msra.mxu0 %v522
    %623 = vmatprep.subr.bf16.mxu0 %v519
    %624 = vmatpush1.bf16.msra.mxu0 %v518
    %625 = vmatprep.subr.bf16.mxu0 %v515
    %626 = vmatpush1.bf16.msra.mxu0 %v514
    %627 = vmatprep.subr.bf16.mxu0 %v511
    %628 = vmatpush1.bf16.msra.mxu0 %v510
    %629 = vmatprep.subr.bf16.mxu0 0
    %630 = vmatpush2.bf16.msra.mxu0 0
    %631 = vmatprep.subr.bf16.mxu0 0
    %632 = vmatpush2.bf16.msra.mxu0 0
    %633 = vmatprep.subr.bf16.mxu0 0
    %634 = vmatpush2.bf16.msra.mxu0 0
    %635 = vmatprep.subr.bf16.mxu0 0
    %636 = vmatpush2.bf16.msra.mxu0 0
    %637 = vmatprep.subr.bf16.mxu0 0
    %638 = vmatpush2.bf16.msra.mxu0 0
    %639 = vmatprep.subr.bf16.mxu0 0
    %640 = vmatpush2.bf16.msra.mxu0 0
    %641 = vmatprep.subr.bf16.mxu0 0
    %642 = vmatpush2.bf16.msra.mxu0 0
    %643 = vmatprep.subr.bf16.mxu0 0
    %644 = vmatpush2.bf16.msra.mxu0 0
    %645 = vmatprep.mubr.bf16.mxu0 0
    %646 = vmatmul.mubr.bf16.gmra.mxu0 0
    %v647 = vpop.f32.mrf.mxu0
    %v648 = vadd.f32 0.0, %v647
    %v649 = vpop.f32.mrf.mxu0
    %v650 = vadd.f32 0.0, %v649
    %v651 = vpop.f32.mrf.mxu0
    %v652 = vpop.f32.mrf.mxu0
    %653 = vdwg.mxu0
    %v654 = vadd.f32 %v183, %v607
    %v655 = vadd.f32 %v185, %v609
    %v656 = vadd.f32 %v256, %v648
    %v657 = vadd.f32 %v258, %v650
    %v658 = vxor.u32 %v654, 2147483648
    %v659 = vmul.f32 %v658, 1.442695
    %v660 = vpow.pop %v659
    %v661 = vadd.f32 %v660, 1.0
    %v662 = vrcp.pop %v661
    %v663 = vmul.f32 1.0, %v662
    %v664 = vxor.u32 %v655, 2147483648
    %v665 = vmul.f32 %v664, 1.442695
    %v666 = vpow.pop %v665
    %v667 = vadd.f32 %v666, 1.0
    %v668 = vrcp.pop %v667
    %v669 = vmul.f32 1.0, %v668
    %v670 = vtanh.pop %v656
    %v671 = vxor.u32 %v657, 2147483648
    %v672 = vmul.f32 %v671, 1.442695
    %v673 = vpow.pop %v672
    %v674 = vadd.f32 %v673, 1.0
    %v675 = vrcp.pop %v674
    %v676 = vmul.f32 1.0, %v675
    %v677 = vmul.f32 %v669, 0.0
    %v678 = vmul.f32 %v663, %v670
    %v679 = vadd.f32 %v677, %v678
    %v680 = vtanh.pop %v679
    %v681 = vmul.f32 %v676, %v680
    %v682 = vpack.c.bf16 %v681, %v681
    %v683 = vpack.c.bf16 0.0, 0.0
    %v748 = vunpack.c.l.b16 %v326
    %v749 = vunpack.c.h.b16 %v326
    %v750 = vunpack.c.l.b16 %v327
    %v751 = vunpack.c.h.b16 %v327
    %v752 = vunpack.c.l.b16 %v328
    %v753 = vunpack.c.h.b16 %v328
    %v754 = vunpack.c.l.b16 %v329
    %v755 = vunpack.c.h.b16 %v329
    %v756 = vunpack.c.l.b16 %v330
    %v757 = vunpack.c.h.b16 %v330
    %v758 = vunpack.c.l.b16 %v331
    %v759 = vunpack.c.h.b16 %v331
    %v760 = vunpack.c.l.b16 %v332
    %v761 = vunpack.c.h.b16 %v332
    %v762 = vunpack.c.l.b16 %v333
    %v763 = vunpack.c.h.b16 %v333
    %v764 = vunpack.c.l.b16 %v334
    %v765 = vunpack.c.h.b16 %v334
    %v766 = vunpack.c.l.b16 %v335
    %v767 = vunpack.c.h.b16 %v335
    %v768 = vunpack.c.l.b16 %v336
    %v769 = vunpack.c.h.b16 %v336
    %v770 = vunpack.c.l.b16 %v337
    %v771 = vunpack.c.h.b16 %v337
    %v772 = vunpack.c.l.b16 %v338
    %v773 = vunpack.c.h.b16 %v338
    %v774 = vunpack.c.l.b16 %v339
    %v775 = vunpack.c.h.b16 %v339
    %v776 = vunpack.c.l.b16 %v340
    %v777 = vunpack.c.h.b16 %v340
    %v778 = vunpack.c.l.b16 %v341
    %v779 = vunpack.c.h.b16 %v341
    %v780 = vunpack.c.l.b16 %v342
    %v781 = vunpack.c.h.b16 %v342
    %v782 = vunpack.c.l.b16 %v343
    %v783 = vunpack.c.h.b16 %v343
    %v784 = vunpack.c.l.b16 %v344
    %v785 = vunpack.c.h.b16 %v344
    %v786 = vunpack.c.l.b16 %v345
    %v787 = vunpack.c.h.b16 %v345
    %v788 = vunpack.c.l.b16 %v346
    %v789 = vunpack.c.h.b16 %v346
    %v790 = vunpack.c.l.b16 %v347
    %v791 = vunpack.c.h.b16 %v347
    %v792 = vunpack.c.l.b16 %v348
    %v793 = vunpack.c.h.b16 %v348
    %v794 = vunpack.c.l.b16 %v349
    %v795 = vunpack.c.h.b16 %v349
    %v796 = vunpack.c.l.b16 %v350
    %v797 = vunpack.c.h.b16 %v350
    %v798 = vunpack.c.l.b16 %v351
    %v799 = vunpack.c.h.b16 %v351
    %v800 = vunpack.c.l.b16 %v352
    %v801 = vunpack.c.h.b16 %v352
    %v802 = vunpack.c.l.b16 %v353
    %v803 = vunpack.c.h.b16 %v353
    %v804 = vunpack.c.l.b16 %v354
    %v805 = vunpack.c.h.b16 %v354
    %v806 = vunpack.c.l.b16 %v355
    %v807 = vunpack.c.h.b16 %v355
    %v808 = vunpack.c.l.b16 %v356
    %v809 = vunpack.c.h.b16 %v356
    %v810 = vunpack.c.l.b16 %v357
    %v811 = vunpack.c.h.b16 %v357
    %v812 = vunpack.c.l.b16 %v358
    %v813 = vunpack.c.h.b16 %v358
    %v814 = vunpack.c.l.b16 %v359
    %v815 = vunpack.c.h.b16 %v359
    %v816 = vunpack.c.l.b16 %v360
    %v817 = vunpack.c.h.b16 %v360
    %v818 = vunpack.c.l.b16 %v361
    %v819 = vunpack.c.h.b16 %v361
    %v820 = vunpack.c.l.b16 %v362
    %v821 = vunpack.c.h.b16 %v362
    %v822 = vunpack.c.l.b16 %v363
    %v823 = vunpack.c.h.b16 %v363
    %v824 = vunpack.c.l.b16 %v364
    %v825 = vunpack.c.h.b16 %v364
    %v826 = vunpack.c.l.b16 %v365
    %v827 = vunpack.c.h.b16 %v365
    %v828 = vunpack.c.l.b16 %v366
    %v829 = vunpack.c.h.b16 %v366
    %v830 = vunpack.c.l.b16 %v367
    %v831 = vunpack.c.h.b16 %v367
    %v832 = vunpack.c.l.b16 %v368
    %v833 = vunpack.c.h.b16 %v368
    %v834 = vunpack.c.l.b16 %v369
    %v835 = vunpack.c.h.b16 %v369
    %v836 = vunpack.c.l.b16 %v370
    %v837 = vunpack.c.h.b16 %v370
    %v838 = vunpack.c.l.b16 %v371
    %v839 = vunpack.c.h.b16 %v371
    %v840 = vunpack.c.l.b16 %v372
    %v841 = vunpack.c.h.b16 %v372
    %v842 = vunpack.c.l.b16 %v373
    %v843 = vunpack.c.h.b16 %v373
    %v844 = vunpack.c.l.b16 %v374
    %v845 = vunpack.c.h.b16 %v374
    %v846 = vunpack.c.l.b16 %v375
    %v847 = vunpack.c.h.b16 %v375
    %v848 = vunpack.c.l.b16 %v376
    %v849 = vunpack.c.h.b16 %v376
    %v850 = vunpack.c.l.b16 %v377
    %v851 = vunpack.c.h.b16 %v377
    %v852 = vunpack.c.l.b16 %v378
    %v853 = vunpack.c.h.b16 %v378
    %v854 = vunpack.c.l.b16 %v379
    %v855 = vunpack.c.h.b16 %v379
    %v856 = vunpack.c.l.b16 %v380
    %v857 = vunpack.c.h.b16 %v380
    %v858 = vunpack.c.l.b16 %v381
    %v859 = vunpack.c.h.b16 %v381
    %v860 = vunpack.c.l.b16 %v382
    %v861 = vunpack.c.h.b16 %v382
    %v862 = vunpack.c.l.b16 %v383
    %v863 = vunpack.c.h.b16 %v383
    %v864 = vunpack.c.l.b16 %v384
    %v865 = vunpack.c.h.b16 %v384
    %v866 = vunpack.c.l.b16 %v385
    %v867 = vunpack.c.h.b16 %v385
    %v868 = vunpack.c.l.b16 %v386
    %v869 = vunpack.c.h.b16 %v386
    %v870 = vunpack.c.l.b16 %v387
    %v871 = vunpack.c.h.b16 %v387
    %v872 = vunpack.c.l.b16 %v388
    %v873 = vunpack.c.h.b16 %v388
    %v874 = vunpack.c.l.b16 %v389
    %v875 = vunpack.c.h.b16 %v389
    %v876 = vpack.c.b16 %v752, %v748
    %v877 = vpack.c.b16 %v753, %v749
    %v878 = vpack.c.b16 %v754, %v750
    %v879 = vpack.c.b16 %v755, %v751
    %v880 = vpack.c.b16 %v760, %v756
    %v881 = vpack.c.b16 %v761, %v757
    %v882 = vpack.c.b16 %v762, %v758
    %v883 = vpack.c.b16 %v763, %v759
    %v884 = vpack.c.b16 %v768, %v764
    %v885 = vpack.c.b16 %v769, %v765
    %v886 = vpack.c.b16 %v770, %v766
    %v887 = vpack.c.b16 %v771, %v767
    %v888 = vpack.c.b16 %v776, %v772
    %v889 = vpack.c.b16 %v777, %v773
    %v890 = vpack.c.b16 %v778, %v774
    %v891 = vpack.c.b16 %v779, %v775
    %v892 = vpack.c.b16 %v784, %v780
    %v893 = vpack.c.b16 %v785, %v781
    %v894 = vpack.c.b16 %v786, %v782
    %v895 = vpack.c.b16 %v787, %v783
    %v896 = vpack.c.b16 %v792, %v788
    %v897 = vpack.c.b16 %v793, %v789
    %v898 = vpack.c.b16 %v794, %v790
    %v899 = vpack.c.b16 %v795, %v791
    %v900 = vpack.c.b16 %v800, %v796
    %v901 = vpack.c.b16 %v801, %v797
    %v902 = vpack.c.b16 %v802, %v798
    %v903 = vpack.c.b16 %v803, %v799
    %v904 = vpack.c.b16 %v808, %v804
    %v905 = vpack.c.b16 %v809, %v805
    %v906 = vpack.c.b16 %v810, %v806
    %v907 = vpack.c.b16 %v811, %v807
    %v908 = vpack.c.b16 %v816, %v812
    %v909 = vpack.c.b16 %v817, %v813
    %v910 = vpack.c.b16 %v818, %v814
    %v911 = vpack.c.b16 %v819, %v815
    %v912 = vpack.c.b16 %v824, %v820
    %v913 = vpack.c.b16 %v825, %v821
    %v914 = vpack.c.b16 %v826, %v822
    %v915 = vpack.c.b16 %v827, %v823
    %v916 = vpack.c.b16 %v832, %v828
    %v917 = vpack.c.b16 %v833, %v829
    %v918 = vpack.c.b16 %v834, %v830
    %v919 = vpack.c.b16 %v835, %v831
    %v920 = vpack.c.b16 %v840, %v836
    %v921 = vpack.c.b16 %v841, %v837
    %v922 = vpack.c.b16 %v842, %v838
    %v923 = vpack.c.b16 %v843, %v839
    %v924 = vpack.c.b16 %v848, %v844
    %v925 = vpack.c.b16 %v849, %v845
    %v926 = vpack.c.b16 %v850, %v846
    %v927 = vpack.c.b16 %v851, %v847
    %v928 = vpack.c.b16 %v856, %v852
    %v929 = vpack.c.b16 %v857, %v853
    %v930 = vpack.c.b16 %v858, %v854
    %v931 = vpack.c.b16 %v859, %v855
    %v932 = vpack.c.b16 %v864, %v860
    %v933 = vpack.c.b16 %v865, %v861
    %v934 = vpack.c.b16 %v866, %v862
    %v935 = vpack.c.b16 %v867, %v863
    %v936 = vpack.c.b16 %v872, %v868
    %v937 = vpack.c.b16 %v873, %v869
    %v938 = vpack.c.b16 %v874, %v870
    %v939 = vpack.c.b16 %v875, %v871
    %1004 = vmatprep.subr.bf16.mxu0 %v905
    %1005 = vmatpush1.bf16.msra.mxu0 %v904
    %1006 = vmatprep.subr.bf16.mxu0 %v901
    %1007 = vmatpush1.bf16.msra.mxu0 %v900
    %1008 = vmatprep.subr.bf16.mxu0 %v897
    %1009 = vmatpush1.bf16.msra.mxu0 %v896
    %1010 = vmatprep.subr.bf16.mxu0 %v893
    %1011 = vmatpush1.bf16.msra.mxu0 %v892
    %1012 = vmatprep.subr.bf16.mxu0 %v889
    %1013 = vmatpush1.bf16.msra.mxu0 %v888
    %1014 = vmatprep.subr.bf16.mxu0 %v885
    %1015 = vmatpush1.bf16.msra.mxu0 %v884
    %1016 = vmatprep.subr.bf16.mxu0 %v881
    %1017 = vmatpush1.bf16.msra.mxu0 %v880
    %1018 = vmatprep.subr.bf16.mxu0 %v877
    %1019 = vmatpush1.bf16.msra.mxu0 %v876
    %1020 = vmatprep.subr.bf16.mxu0 %v937
    %1021 = vmatpush2.bf16.msra.mxu0 %v936
    %1022 = vmatprep.subr.bf16.mxu0 %v933
    %1023 = vmatpush2.bf16.msra.mxu0 %v932
    %1024 = vmatprep.subr.bf16.mxu0 %v929
    %1025 = vmatpush2.bf16.msra.mxu0 %v928
    %1026 = vmatprep.subr.bf16.mxu0 %v925
    %1027 = vmatpush2.bf16.msra.mxu0 %v924
    %1028 = vmatprep.subr.bf16.mxu0 %v921
    %1029 = vmatpush2.bf16.msra.mxu0 %v920
    %1030 = vmatprep.subr.bf16.mxu0 %v917
    %1031 = vmatpush2.bf16.msra.mxu0 %v916
    %1032 = vmatprep.subr.bf16.mxu0 %v913
    %1033 = vmatpush2.bf16.msra.mxu0 %v912
    %1034 = vmatprep.subr.bf16.mxu0 %v909
    %1035 = vmatpush2.bf16.msra.mxu0 %v908
    %1036 = vmatprep.mubr.bf16.mxu0 %v683
    %1037 = vmatmul.mubr.bf16.gmra.mxu0 %v682
    %v1038 = vpop.f32.mrf.mxu0
    %v1039 = vadd.f32 %v395, %v1038
    %v1040 = vpop.f32.mrf.mxu0
    %v1041 = vadd.f32 %v399, %v1040
    %v1042 = vpop.f32.mrf.mxu0
    %v1043 = vpop.f32.mrf.mxu0
    %1044 = vdwg.mxu0
    %1045 = vmatprep.subr.bf16.mxu0 %v907
    %1046 = vmatpush1.bf16.msra.mxu0 %v906
    %1047 = vmatprep.subr.bf16.mxu0 %v903
    %1048 = vmatpush1.bf16.msra.mxu0 %v902
    %1049 = vmatprep.subr.bf16.mxu0 %v899
    %1050 = vmatpush1.bf16.msra.mxu0 %v898
    %1051 = vmatprep.subr.bf16.mxu0 %v895
    %1052 = vmatpush1.bf16.msra.mxu0 %v894
    %1053 = vmatprep.subr.bf16.mxu0 %v891
    %1054 = vmatpush1.bf16.msra.mxu0 %v890
    %1055 = vmatprep.subr.bf16.mxu0 %v887
    %1056 = vmatpush1.bf16.msra.mxu0 %v886
    %1057 = vmatprep.subr.bf16.mxu0 %v883
    %1058 = vmatpush1.bf16.msra.mxu0 %v882
    %1059 = vmatprep.subr.bf16.mxu0 %v879
    %1060 = vmatpush1.bf16.msra.mxu0 %v878
    %1061 = vmatprep.subr.bf16.mxu0 %v939
    %1062 = vmatpush2.bf16.msra.mxu0 %v938
    %1063 = vmatprep.subr.bf16.mxu0 %v935
    %1064 = vmatpush2.bf16.msra.mxu0 %v934
    %1065 = vmatprep.subr.bf16.mxu0 %v931
    %1066 = vmatpush2.bf16.msra.mxu0 %v930
    %1067 = vmatprep.subr.bf16.mxu0 %v927
    %1068 = vmatpush2.bf16.msra.mxu0 %v926
    %1069 = vmatprep.subr.bf16.mxu0 %v923
    %1070 = vmatpush2.bf16.msra.mxu0 %v922
    %1071 = vmatprep.subr.bf16.mxu0 %v919
    %1072 = vmatpush2.bf16.msra.mxu0 %v918
    %1073 = vmatprep.subr.bf16.mxu0 %v915
    %1074 = vmatpush2.bf16.msra.mxu0 %v914
    %1075 = vmatprep.subr.bf16.mxu0 %v911
    %1076 = vmatpush2.bf16.msra.mxu0 %v910
    %1077 = vmatprep.mubr.bf16.mxu0 %v683
    %1078 = vmatmul.mubr.bf16.gmra.mxu0 %v682
    %v1079 = vpop.f32.mrf.mxu0
    %v1080 = vadd.f32 %v403, %v1079
    %v1081 = vpop.f32.mrf.mxu0
    %v1082 = vadd.f32 %v407, %v1081
    %v1083 = vpop.f32.mrf.mxu0
    %v1084 = vpop.f32.mrf.mxu0
    %1085 = vdwg.mxu0
    %v1086 = vxor.u32 %v1039, 2147483648
    %v1087 = vmul.f32 %v1086, 1.442695
    %v1088 = vpow.pop %v1087
    %v1089 = vadd.f32 %v1088, 1.0
    %v1090 = vrcp.pop %v1089
    %v1091 = vmul.f32 1.0, %v1090
    %v1092 = vxor.u32 %v1041, 2147483648
    %v1093 = vmul.f32 %v1092, 1.442695
    %v1094 = vpow.pop %v1093
    %v1095 = vadd.f32 %v1094, 1.0
    %v1096 = vrcp.pop %v1095
    %v1097 = vmul.f32 1.0, %v1096
    %v1098 = vtanh.pop %v1080
    %v1099 = vxor.u32 %v1082, 2147483648
    %v1100 = vmul.f32 %v1099, 1.442695
    %v1101 = vpow.pop %v1100
    %v1102 = vadd.f32 %v1101, 1.0
    %v1103 = vrcp.pop %v1102
    %v1104 = vmul.f32 1.0, %v1103
    %v1105 = vmul.f32 %v1097, 0.0
    %v1106 = vmul.f32 %v1091, %v1098
    %v1107 = vadd.f32 %v1105, %v1106
    %v1108 = vtanh.pop %v1107
    %v1109 = vmul.f32 %v1104, %v1108
    %1110 = vmatprep.subr.bf16.mxu0 %v537
    %1111 = vmatpush1.bf16.msra.mxu0 %v536
    %1112 = vmatprep.subr.bf16.mxu0 %v533
    %1113 = vmatpush1.bf16.msra.mxu0 %v532
    %1114 = vmatprep.subr.bf16.mxu0 %v529
    %1115 = vmatpush1.bf16.msra.mxu0 %v528
    %1116 = vmatprep.subr.bf16.mxu0 %v525
    %1117 = vmatpush1.bf16.msra.mxu0 %v524
    %1118 = vmatprep.subr.bf16.mxu0 %v521
    %1119 = vmatpush1.bf16.msra.mxu0 %v520
    %1120 = vmatprep.subr.bf16.mxu0 %v517
    %1121 = vmatpush1.bf16.msra.mxu0 %v516
    %1122 = vmatprep.subr.bf16.mxu0 %v513
    %1123 = vmatpush1.bf16.msra.mxu0 %v512
    %1124 = vmatprep.subr.bf16.mxu0 %v509
    %1125 = vmatpush1.bf16.msra.mxu0 %v508
    %1126 = vmatprep.subr.bf16.mxu0 0
    %1127 = vmatpush2.bf16.msra.mxu0 0
    %1128 = vmatprep.subr.bf16.mxu0 0
    %1129 = vmatpush2.bf16.msra.mxu0 0
    %1130 = vmatprep.subr.bf16.mxu0 0
    %1131 = vmatpush2.bf16.msra.mxu0 0
    %1132 = vmatprep.subr.bf16.mxu0 0
    %1133 = vmatpush2.bf16.msra.mxu0 0
    %1134 = vmatprep.subr.bf16.mxu0 0
    %1135 = vmatpush2.bf16.msra.mxu0 0
    %1136 = vmatprep.subr.bf16.mxu0 0
    %1137 = vmatpush2.bf16.msra.mxu0 0
    %1138 = vmatprep.subr.bf16.mxu0 0
    %1139 = vmatpush2.bf16.msra.mxu0 0
    %1140 = vmatprep.subr.bf16.mxu0 0
    %1141 = vmatpush2.bf16.msra.mxu0 0
    %1142 = vmatprep.mubr.bf16.mxu0 0
    %1143 = vmatmul.mubr.bf16.gmra.mxu0 %v682
    %v1144 = vpop.f32.mrf.mxu0
    %v1145 = vadd.f32 0.0, %v1144
    %v1146 = vpop.f32.mrf.mxu0
    %v1147 = vadd.f32 0.0, %v1146
    %v1148 = vpop.f32.mrf.mxu0
    %v1149 = vpop.f32.mrf.mxu0
    %1150 = vdwg.mxu0
    %1151 = vmatprep.subr.bf16.mxu0 %v539
    %1152 = vmatpush1.bf16.msra.mxu0 %v538
    %1153 = vmatprep.subr.bf16.mxu0 %v535
    %1154 = vmatpush1.bf16.msra.mxu0 %v534
    %1155 = vmatprep.subr.bf16.mxu0 %v531
    %1156 = vmatpush1.bf16.msra.mxu0 %v530
    %1157 = vmatprep.subr.bf16.mxu0 %v527
    %1158 = vmatpush1.bf16.msra.mxu0 %v526
    %1159 = vmatprep.subr.bf16.mxu0 %v523
    %1160 = vmatpush1.bf16.msra.mxu0 %v522
    %1161 = vmatprep.subr.bf16.mxu0 %v519
    %1162 = vmatpush1.bf16.msra.mxu0 %v518
    %1163 = vmatprep.subr.bf16.mxu0 %v515
    %1164 = vmatpush1.bf16.msra.mxu0 %v514
    %1165 = vmatprep.subr.bf16.mxu0 %v511
    %1166 = vmatpush1.bf16.msra.mxu0 %v510
    %1167 = vmatprep.subr.bf16.mxu0 0
    %1168 = vmatpush2.bf16.msra.mxu0 0
    %1169 = vmatprep.subr.bf16.mxu0 0
    %1170 = vmatpush2.bf16.msra.mxu0 0
    %1171 = vmatprep.subr.bf16.mxu0 0
    %1172 = vmatpush2.bf16.msra.mxu0 0
    %1173 = vmatprep.subr.bf16.mxu0 0
    %1174 = vmatpush2.bf16.msra.mxu0 0
    %1175 = vmatprep.subr.bf16.mxu0 0
    %1176 = vmatpush2.bf16.msra.mxu0 0
    %1177 = vmatprep.subr.bf16.mxu0 0
    %1178 = vmatpush2.bf16.msra.mxu0 0
    %1179 = vmatprep.subr.bf16.mxu0 0
    %1180 = vmatpush2.bf16.msra.mxu0 0
    %1181 = vmatprep.subr.bf16.mxu0 0
    %1182 = vmatpush2.bf16.msra.mxu0 0
    %1183 = vmatprep.mubr.bf16.mxu0 0
    %1184 = vmatmul.mubr.bf16.gmra.mxu0 %v682
    %v1185 = vpop.f32.mrf.mxu0
    %v1186 = vadd.f32 0.0, %v1185
    %v1187 = vpop.f32.mrf.mxu0
    %v1188 = vadd.f32 0.0, %v1187
    %v1189 = vpop.f32.mrf.mxu0
    %v1190 = vpop.f32.mrf.mxu0
    %1191 = vdwg.mxu0
    %v1192 = vadd.f32 %v187, %v1145
    %v1193 = vadd.f32 %v189, %v1147
    %v1194 = vadd.f32 %v260, %v1186
    %v1195 = vadd.f32 %v262, %v1188
    %v1196 = vxor.u32 %v1192, 2147483648
    %v1197 = vmul.f32 %v1196, 1.442695
    %v1198 = vpow.pop %v1197
    %v1199 = vadd.f32 %v1198, 1.0
    %v1200 = vrcp.pop %v1199
    %v1201 = vmul.f32 1.0, %v1200
    %v1202 = vxor.u32 %v1193, 2147483648
    %v1203 = vmul.f32 %v1202, 1.442695
    %v1204 = vpow.pop %v1203
    %v1205 = vadd.f32 %v1204, 1.0
    %v1206 = vrcp.pop %v1205
    %v1207 = vmul.f32 1.0, %v1206
    %v1208 = vtanh.pop %v1194
    %v1209 = vxor.u32 %v1195, 2147483648
    %v1210 = vmul.f32 %v1209, 1.442695
    %v1211 = vpow.pop %v1210
    %v1212 = vadd.f32 %v1211, 1.0
    %v1213 = vrcp.pop %v1212
    %v1214 = vmul.f32 1.0, %v1213
    %v1215 = vmul.f32 %v1207, %v679
    %v1216 = vmul.f32 %v1201, %v1208
    %v1217 = vadd.f32 %v1215, %v1216
    %v1218 = vtanh.pop %v1217
    %v1219 = vmul.f32 %v1214, %v1218
    %v1220 = vpack.c.bf16 %v1219, %v1219
    %v1221 = vpack.c.bf16 %v1109, %v1109
    %1222 = vmatprep.subr.bf16.mxu0 %v905
    %1223 = vmatpush1.bf16.msra.mxu0 %v904
    %1224 = vmatprep.subr.bf16.mxu0 %v901
    %1225 = vmatpush1.bf16.msra.mxu0 %v900
    %1226 = vmatprep.subr.bf16.mxu0 %v897
    %1227 = vmatpush1.bf16.msra.mxu0 %v896
    %1228 = vmatprep.subr.bf16.mxu0 %v893
    %1229 = vmatpush1.bf16.msra.mxu0 %v892
    %1230 = vmatprep.subr.bf16.mxu0 %v889
    %1231 = vmatpush1.bf16.msra.mxu0 %v888
    %1232 = vmatprep.subr.bf16.mxu0 %v885
    %1233 = vmatpush1.bf16.msra.mxu0 %v884
    %1234 = vmatprep.subr.bf16.mxu0 %v881
    %1235 = vmatpush1.bf16.msra.mxu0 %v880
    %1236 = vmatprep.subr.bf16.mxu0 %v877
    %1237 = vmatpush1.bf16.msra.mxu0 %v876
    %1238 = vmatprep.subr.bf16.mxu0 %v937
    %1239 = vmatpush2.bf16.msra.mxu0 %v936
    %1240 = vmatprep.subr.bf16.mxu0 %v933
    %1241 = vmatpush2.bf16.msra.mxu0 %v932
    %1242 = vmatprep.subr.bf16.mxu0 %v929
    %1243 = vmatpush2.bf16.msra.mxu0 %v928
    %1244 = vmatprep.subr.bf16.mxu0 %v925
    %1245 = vmatpush2.bf16.msra.mxu0 %v924
    %1246 = vmatprep.subr.bf16.mxu0 %v921
    %1247 = vmatpush2.bf16.msra.mxu0 %v920
    %1248 = vmatprep.subr.bf16.mxu0 %v917
    %1249 = vmatpush2.bf16.msra.mxu0 %v916
    %1250 = vmatprep.subr.bf16.mxu0 %v913
    %1251 = vmatpush2.bf16.msra.mxu0 %v912
    %1252 = vmatprep.subr.bf16.mxu0 %v909
    %1253 = vmatpush2.bf16.msra.mxu0 %v908
    %1254 = vmatprep.mubr.bf16.mxu0 %v1221
    %1255 = vmatmul.mubr.bf16.gmra.mxu0 %v1220
    %v1256 = vpop.f32.mrf.mxu0
    %v1257 = vadd.f32 %v395, %v1256
    %v1258 = vpop.f32.mrf.mxu0
    %v1259 = vadd.f32 %v399, %v1258
    %v1260 = vpop.f32.mrf.mxu0
    %v1261 = vpop.f32.mrf.mxu0
    %1262 = vdwg.mxu0
    %1263 = vmatprep.subr.bf16.mxu0 %v907
    %1264 = vmatpush1.bf16.msra.mxu0 %v906
    %1265 = vmatprep.subr.bf16.mxu0 %v903
    %1266 = vmatpush1.bf16.msra.mxu0 %v902
    %1267 = vmatprep.subr.bf16.mxu0 %v899
    %1268 = vmatpush1.bf16.msra.mxu0 %v898
    %1269 = vmatprep.subr.bf16.mxu0 %v895
    %1270 = vmatpush1.bf16.msra.mxu0 %v894
    %1271 = vmatprep.subr.bf16.mxu0 %v891
    %1272 = vmatpush1.bf16.msra.mxu0 %v890
    %1273 = vmatprep.subr.bf16.mxu0 %v887
    %1274 = vmatpush1.bf16.msra.mxu0 %v886
    %1275 = vmatprep.subr.bf16.mxu0 %v883
    %1276 = vmatpush1.bf16.msra.mxu0 %v882
    %1277 = vmatprep.subr.bf16.mxu0 %v879
    %1278 = vmatpush1.bf16.msra.mxu0 %v878
    %1279 = vmatprep.subr.bf16.mxu0 %v939
    %1280 = vmatpush2.bf16.msra.mxu0 %v938
    %1281 = vmatprep.subr.bf16.mxu0 %v935
    %1282 = vmatpush2.bf16.msra.mxu0 %v934
    %1283 = vmatprep.subr.bf16.mxu0 %v931
    %1284 = vmatpush2.bf16.msra.mxu0 %v930
    %1285 = vmatprep.subr.bf16.mxu0 %v927
    %1286 = vmatpush2.bf16.msra.mxu0 %v926
    %1287 = vmatprep.subr.bf16.mxu0 %v923
    %1288 = vmatpush2.bf16.msra.mxu0 %v922
    %1289 = vmatprep.subr.bf16.mxu0 %v919
    %1290 = vmatpush2.bf16.msra.mxu0 %v918
    %1291 = vmatprep.subr.bf16.mxu0 %v915
    %1292 = vmatpush2.bf16.msra.mxu0 %v914
    %1293 = vmatprep.subr.bf16.mxu0 %v911
    %1294 = vmatpush2.bf16.msra.mxu0 %v910
    %1295 = vmatprep.mubr.bf16.mxu0 %v1221
    %1296 = vmatmul.mubr.bf16.gmra.mxu0 %v1220
    %v1297 = vpop.f32.mrf.mxu0
    %v1298 = vadd.f32 %v403, %v1297
    %v1299 = vpop.f32.mrf.mxu0
    %v1300 = vadd.f32 %v407, %v1299
    %v1301 = vpop.f32.mrf.mxu0
    %v1302 = vpop.f32.mrf.mxu0
    %1303 = vdwg.mxu0
    %v1304 = vxor.u32 %v1257, 2147483648
    %v1305 = vmul.f32 %v1304, 1.442695
    %v1306 = vpow.pop %v1305
    %v1307 = vadd.f32 %v1306, 1.0
    %v1308 = vrcp.pop %v1307
    %v1309 = vmul.f32 1.0, %v1308
    %v1310 = vxor.u32 %v1259, 2147483648
    %v1311 = vmul.f32 %v1310, 1.442695
    %v1312 = vpow.pop %v1311
    %v1313 = vadd.f32 %v1312, 1.0
    %v1314 = vrcp.pop %v1313
    %v1315 = vmul.f32 1.0, %v1314
    %v1316 = vtanh.pop %v1298
    %v1317 = vxor.u32 %v1300, 2147483648
    %v1318 = vmul.f32 %v1317, 1.442695
    %v1319 = vpow.pop %v1318
    %v1320 = vadd.f32 %v1319, 1.0
    %v1321 = vrcp.pop %v1320
    %v1322 = vmul.f32 1.0, %v1321
    %v1323 = vmul.f32 %v1315, %v1107
    %v1324 = vmul.f32 %v1309, %v1316
    %v1325 = vadd.f32 %v1323, %v1324
    %v1326 = vtanh.pop %v1325
    %v1327 = vmul.f32 %v1322, %v1326
    %1328 = vmatprep.subr.bf16.mxu0 %v537
    %1329 = vmatpush1.bf16.msra.mxu0 %v536
    %1330 = vmatprep.subr.bf16.mxu0 %v533
    %1331 = vmatpush1.bf16.msra.mxu0 %v532
    %1332 = vmatprep.subr.bf16.mxu0 %v529
    %1333 = vmatpush1.bf16.msra.mxu0 %v528
    %1334 = vmatprep.subr.bf16.mxu0 %v525
    %1335 = vmatpush1.bf16.msra.mxu0 %v524
    %1336 = vmatprep.subr.bf16.mxu0 %v521
    %1337 = vmatpush1.bf16.msra.mxu0 %v520
    %1338 = vmatprep.subr.bf16.mxu0 %v517
    %1339 = vmatpush1.bf16.msra.mxu0 %v516
    %1340 = vmatprep.subr.bf16.mxu0 %v513
    %1341 = vmatpush1.bf16.msra.mxu0 %v512
    %1342 = vmatprep.subr.bf16.mxu0 %v509
    %1343 = vmatpush1.bf16.msra.mxu0 %v508
    %1344 = vmatprep.subr.bf16.mxu0 0
    %1345 = vmatpush2.bf16.msra.mxu0 0
    %1346 = vmatprep.subr.bf16.mxu0 0
    %1347 = vmatpush2.bf16.msra.mxu0 0
    %1348 = vmatprep.subr.bf16.mxu0 0
    %1349 = vmatpush2.bf16.msra.mxu0 0
    %1350 = vmatprep.subr.bf16.mxu0 0
    %1351 = vmatpush2.bf16.msra.mxu0 0
    %1352 = vmatprep.subr.bf16.mxu0 0
    %1353 = vmatpush2.bf16.msra.mxu0 0
    %1354 = vmatprep.subr.bf16.mxu0 0
    %1355 = vmatpush2.bf16.msra.mxu0 0
    %1356 = vmatprep.subr.bf16.mxu0 0
    %1357 = vmatpush2.bf16.msra.mxu0 0
    %1358 = vmatprep.subr.bf16.mxu0 0
    %1359 = vmatpush2.bf16.msra.mxu0 0
    %1360 = vmatprep.mubr.bf16.mxu0 0
    %1361 = vmatmul.mubr.bf16.gmra.mxu0 %v1220
    %v1362 = vpop.f32.mrf.mxu0
    %v1363 = vadd.f32 0.0, %v1362
    %v1364 = vpop.f32.mrf.mxu0
    %v1365 = vadd.f32 0.0, %v1364
    %v1366 = vpop.f32.mrf.mxu0
    %v1367 = vpop.f32.mrf.mxu0
    %1368 = vdwg.mxu0
    %1369 = vmatprep.subr.bf16.mxu0 %v539
    %1370 = vmatpush1.bf16.msra.mxu0 %v538
    %1371 = vmatprep.subr.bf16.mxu0 %v535
    %1372 = vmatpush1.bf16.msra.mxu0 %v534
    %1373 = vmatprep.subr.bf16.mxu0 %v531
    %1374 = vmatpush1.bf16.msra.mxu0 %v530
    %1375 = vmatprep.subr.bf16.mxu0 %v527
    %1376 = vmatpush1.bf16.msra.mxu0 %v526
    %1377 = vmatprep.subr.bf16.mxu0 %v523
    %1378 = vmatpush1.bf16.msra.mxu0 %v522
    %1379 = vmatprep.subr.bf16.mxu0 %v519
    %1380 = vmatpush1.bf16.msra.mxu0 %v518
    %1381 = vmatprep.subr.bf16.mxu0 %v515
    %1382 = vmatpush1.bf16.msra.mxu0 %v514
    %1383 = vmatprep.subr.bf16.mxu0 %v511
    %1384 = vmatpush1.bf16.msra.mxu0 %v510
    %1385 = vmatprep.subr.bf16.mxu0 0
    %1386 = vmatpush2.bf16.msra.mxu0 0
    %1387 = vmatprep.subr.bf16.mxu0 0
    %1388 = vmatpush2.bf16.msra.mxu0 0
    %1389 = vmatprep.subr.bf16.mxu0 0
    %1390 = vmatpush2.bf16.msra.mxu0 0
    %1391 = vmatprep.subr.bf16.mxu0 0
    %1392 = vmatpush2.bf16.msra.mxu0 0
    %1393 = vmatprep.subr.bf16.mxu0 0
    %1394 = vmatpush2.bf16.msra.mxu0 0
    %1395 = vmatprep.subr.bf16.mxu0 0
    %1396 = vmatpush2.bf16.msra.mxu0 0
    %1397 = vmatprep.subr.bf16.mxu0 0
    %1398 = vmatpush2.bf16.msra.mxu0 0
    %1399 = vmatprep.subr.bf16.mxu0 0
    %1400 = vmatpush2.bf16.msra.mxu0 0
    %1401 = vmatprep.mubr.bf16.mxu0 0
    %1402 = vmatmul.mubr.bf16.gmra.mxu0 %v1220
    %v1403 = vpop.f32.mrf.mxu0
    %v1404 = vadd.f32 0.0, %v1403
    %v1405 = vpop.f32.mrf.mxu0
    %v1406 = vadd.f32 0.0, %v1405
    %v1407 = vpop.f32.mrf.mxu0
    %v1408 = vpop.f32.mrf.mxu0
    %1409 = vdwg.mxu0
    %v1410 = vadd.f32 %v193, %v1363
    %v1411 = vadd.f32 %v195, %v1365
    %v1412 = vadd.f32 %v266, %v1404
    %v1413 = vadd.f32 %v268, %v1406
    %v1414 = vxor.u32 %v1410, 2147483648
    %v1415 = vmul.f32 %v1414, 1.442695
    %v1416 = vpow.pop %v1415
    %v1417 = vadd.f32 %v1416, 1.0
    %v1418 = vrcp.pop %v1417
    %v1419 = vmul.f32 1.0, %v1418
    %v1420 = vxor.u32 %v1411, 2147483648
    %v1421 = vmul.f32 %v1420, 1.442695
    %v1422 = vpow.pop %v1421
    %v1423 = vadd.f32 %v1422, 1.0
    %v1424 = vrcp.pop %v1423
    %v1425 = vmul.f32 1.0, %v1424
    %v1426 = vtanh.pop %v1412
    %v1427 = vxor.u32 %v1413, 2147483648
    %v1428 = vmul.f32 %v1427, 1.442695
    %v1429 = vpow.pop %v1428
    %v1430 = vadd.f32 %v1429, 1.0
    %v1431 = vrcp.pop %v1430
    %v1432 = vmul.f32 1.0, %v1431
    %v1433 = vmul.f32 %v1425, %v1217
    %v1434 = vmul.f32 %v1419, %v1426
    %v1435 = vadd.f32 %v1433, %v1434
    %v1436 = vtanh.pop %v1435
    %v1437 = vmul.f32 %v1432, %v1436
    %v1438 = vpack.c.bf16 %v1437, %v1437
    %v1439 = vpack.c.bf16 %v1327, %v1327
    %1440 = vmatprep.subr.bf16.mxu0 %v905
    %1441 = vmatpush1.bf16.msra.mxu0 %v904
    %1442 = vmatprep.subr.bf16.mxu0 %v901
    %1443 = vmatpush1.bf16.msra.mxu0 %v900
    %1444 = vmatprep.subr.bf16.mxu0 %v897
    %1445 = vmatpush1.bf16.msra.mxu0 %v896
    %1446 = vmatprep.subr.bf16.mxu0 %v893
    %1447 = vmatpush1.bf16.msra.mxu0 %v892
    %1448 = vmatprep.subr.bf16.mxu0 %v889
    %1449 = vmatpush1.bf16.msra.mxu0 %v888
    %1450 = vmatprep.subr.bf16.mxu0 %v885
    %1451 = vmatpush1.bf16.msra.mxu0 %v884
    %1452 = vmatprep.subr.bf16.mxu0 %v881
    %1453 = vmatpush1.bf16.msra.mxu0 %v880
    %1454 = vmatprep.subr.bf16.mxu0 %v877
    %1455 = vmatpush1.bf16.msra.mxu0 %v876
    %1456 = vmatprep.subr.bf16.mxu0 %v937
    %1457 = vmatpush2.bf16.msra.mxu0 %v936
    %1458 = vmatprep.subr.bf16.mxu0 %v933
    %1459 = vmatpush2.bf16.msra.mxu0 %v932
    %1460 = vmatprep.subr.bf16.mxu0 %v929
    %1461 = vmatpush2.bf16.msra.mxu0 %v928
    %1462 = vmatprep.subr.bf16.mxu0 %v925
    %1463 = vmatpush2.bf16.msra.mxu0 %v924
    %1464 = vmatprep.subr.bf16.mxu0 %v921
    %1465 = vmatpush2.bf16.msra.mxu0 %v920
    %1466 = vmatprep.subr.bf16.mxu0 %v917
    %1467 = vmatpush2.bf16.msra.mxu0 %v916
    %1468 = vmatprep.subr.bf16.mxu0 %v913
    %1469 = vmatpush2.bf16.msra.mxu0 %v912
    %1470 = vmatprep.subr.bf16.mxu0 %v909
    %1471 = vmatpush2.bf16.msra.mxu0 %v908
    %1472 = vmatprep.mubr.bf16.mxu0 %v1439
    %1473 = vmatmul.mubr.bf16.gmra.mxu0 %v1438
    %v1474 = vpop.f32.mrf.mxu0
    %v1475 = vadd.f32 %v395, %v1474
    %v1476 = vpop.f32.mrf.mxu0
    %v1477 = vadd.f32 %v399, %v1476
    %v1478 = vpop.f32.mrf.mxu0
    %v1479 = vpop.f32.mrf.mxu0
    %1480 = vdwg.mxu0
    %1481 = vmatprep.subr.bf16.mxu0 %v907
    %1482 = vmatpush1.bf16.msra.mxu0 %v906
    %1483 = vmatprep.subr.bf16.mxu0 %v903
    %1484 = vmatpush1.bf16.msra.mxu0 %v902
    %1485 = vmatprep.subr.bf16.mxu0 %v899
    %1486 = vmatpush1.bf16.msra.mxu0 %v898
    %1487 = vmatprep.subr.bf16.mxu0 %v895
    %1488 = vmatpush1.bf16.msra.mxu0 %v894
    %1489 = vmatprep.subr.bf16.mxu0 %v891
    %1490 = vmatpush1.bf16.msra.mxu0 %v890
    %1491 = vmatprep.subr.bf16.mxu0 %v887
    %1492 = vmatpush1.bf16.msra.mxu0 %v886
    %1493 = vmatprep.subr.bf16.mxu0 %v883
    %1494 = vmatpush1.bf16.msra.mxu0 %v882
    %1495 = vmatprep.subr.bf16.mxu0 %v879
    %1496 = vmatpush1.bf16.msra.mxu0 %v878
    %1497 = vmatprep.subr.bf16.mxu0 %v939
    %1498 = vmatpush2.bf16.msra.mxu0 %v938
    %1499 = vmatprep.subr.bf16.mxu0 %v935
    %1500 = vmatpush2.bf16.msra.mxu0 %v934
    %1501 = vmatprep.subr.bf16.mxu0 %v931
    %1502 = vmatpush2.bf16.msra.mxu0 %v930
    %1503 = vmatprep.subr.bf16.mxu0 %v927
    %1504 = vmatpush2.bf16.msra.mxu0 %v926
    %1505 = vmatprep.subr.bf16.mxu0 %v923
    %1506 = vmatpush2.bf16.msra.mxu0 %v922
    %1507 = vmatprep.subr.bf16.mxu0 %v919
    %1508 = vmatpush2.bf16.msra.mxu0 %v918
    %1509 = vmatprep.subr.bf16.mxu0 %v915
    %1510 = vmatpush2.bf16.msra.mxu0 %v914
    %1511 = vmatprep.subr.bf16.mxu0 %v911
    %1512 = vmatpush2.bf16.msra.mxu0 %v910
    %1513 = vmatprep.mubr.bf16.mxu0 %v1439
    %1514 = vmatmul.mubr.bf16.gmra.mxu0 %v1438
    %v1515 = vpop.f32.mrf.mxu0
    %v1516 = vadd.f32 %v403, %v1515
    %v1517 = vpop.f32.mrf.mxu0
    %v1518 = vadd.f32 %v407, %v1517
    %v1519 = vpop.f32.mrf.mxu0
    %v1520 = vpop.f32.mrf.mxu0
    %1521 = vdwg.mxu0
    %v1522 = vxor.u32 %v1475, 2147483648
    %v1523 = vmul.f32 %v1522, 1.442695
    %v1524 = vpow.pop %v1523
    %v1525 = vadd.f32 %v1524, 1.0
    %v1526 = vrcp.pop %v1525
    %v1527 = vmul.f32 1.0, %v1526
    %v1528 = vxor.u32 %v1477, 2147483648
    %v1529 = vmul.f32 %v1528, 1.442695
    %v1530 = vpow.pop %v1529
    %v1531 = vadd.f32 %v1530, 1.0
    %v1532 = vrcp.pop %v1531
    %v1533 = vmul.f32 1.0, %v1532
    %v1534 = vtanh.pop %v1516
    %v1535 = vxor.u32 %v1518, 2147483648
    %v1536 = vmul.f32 %v1535, 1.442695
    %v1537 = vpow.pop %v1536
    %v1538 = vadd.f32 %v1537, 1.0
    %v1539 = vrcp.pop %v1538
    %v1540 = vmul.f32 1.0, %v1539
    %v1541 = vmul.f32 %v1533, %v1325
    %v1542 = vmul.f32 %v1527, %v1534
    %v1543 = vadd.f32 %v1541, %v1542
    %v1544 = vtanh.pop %v1543
    %v1545 = vmul.f32 %v1540, %v1544
    %1546 = vmatprep.subr.bf16.mxu0 %v537
    %1547 = vmatpush1.bf16.msra.mxu0 %v536
    %1548 = vmatprep.subr.bf16.mxu0 %v533
    %1549 = vmatpush1.bf16.msra.mxu0 %v532
    %1550 = vmatprep.subr.bf16.mxu0 %v529
    %1551 = vmatpush1.bf16.msra.mxu0 %v528
    %1552 = vmatprep.subr.bf16.mxu0 %v525
    %1553 = vmatpush1.bf16.msra.mxu0 %v524
    %1554 = vmatprep.subr.bf16.mxu0 %v521
    %1555 = vmatpush1.bf16.msra.mxu0 %v520
    %1556 = vmatprep.subr.bf16.mxu0 %v517
    %1557 = vmatpush1.bf16.msra.mxu0 %v516
    %1558 = vmatprep.subr.bf16.mxu0 %v513
    %1559 = vmatpush1.bf16.msra.mxu0 %v512
    %1560 = vmatprep.subr.bf16.mxu0 %v509
    %1561 = vmatpush1.bf16.msra.mxu0 %v508
    %1562 = vmatprep.subr.bf16.mxu0 0
    %1563 = vmatpush2.bf16.msra.mxu0 0
    %1564 = vmatprep.subr.bf16.mxu0 0
    %1565 = vmatpush2.bf16.msra.mxu0 0
    %1566 = vmatprep.subr.bf16.mxu0 0
    %1567 = vmatpush2.bf16.msra.mxu0 0
    %1568 = vmatprep.subr.bf16.mxu0 0
    %1569 = vmatpush2.bf16.msra.mxu0 0
    %1570 = vmatprep.subr.bf16.mxu0 0
    %1571 = vmatpush2.bf16.msra.mxu0 0
    %1572 = vmatprep.subr.bf16.mxu0 0
    %1573 = vmatpush2.bf16.msra.mxu0 0
    %1574 = vmatprep.subr.bf16.mxu0 0
    %1575 = vmatpush2.bf16.msra.mxu0 0
    %1576 = vmatprep.subr.bf16.mxu0 0
    %1577 = vmatpush2.bf16.msra.mxu0 0
    %1578 = vmatprep.mubr.bf16.mxu0 0
    %1579 = vmatmul.mubr.bf16.gmra.mxu0 %v1438
    %v1580 = vpop.f32.mrf.mxu0
    %v1581 = vadd.f32 0.0, %v1580
    %v1582 = vpop.f32.mrf.mxu0
    %v1583 = vadd.f32 0.0, %v1582
    %v1584 = vpop.f32.mrf.mxu0
    %v1585 = vpop.f32.mrf.mxu0
    %1586 = vdwg.mxu0
    %1587 = vmatprep.subr.bf16.mxu0 %v539
    %1588 = vmatpush1.bf16.msra.mxu0 %v538
    %1589 = vmatprep.subr.bf16.mxu0 %v535
    %1590 = vmatpush1.bf16.msra.mxu0 %v534
    %1591 = vmatprep.subr.bf16.mxu0 %v531
    %1592 = vmatpush1.bf16.msra.mxu0 %v530
    %1593 = vmatprep.subr.bf16.mxu0 %v527
    %1594 = vmatpush1.bf16.msra.mxu0 %v526
    %1595 = vmatprep.subr.bf16.mxu0 %v523
    %1596 = vmatpush1.bf16.msra.mxu0 %v522
    %1597 = vmatprep.subr.bf16.mxu0 %v519
    %1598 = vmatpush1.bf16.msra.mxu0 %v518
    %1599 = vmatprep.subr.bf16.mxu0 %v515
    %1600 = vmatpush1.bf16.msra.mxu0 %v514
    %1601 = vmatprep.subr.bf16.mxu0 %v511
    %1602 = vmatpush1.bf16.msra.mxu0 %v510
    %1603 = vmatprep.subr.bf16.mxu0 0
    %1604 = vmatpush2.bf16.msra.mxu0 0
    %1605 = vmatprep.subr.bf16.mxu0 0
    %1606 = vmatpush2.bf16.msra.mxu0 0
    %1607 = vmatprep.subr.bf16.mxu0 0
    %1608 = vmatpush2.bf16.msra.mxu0 0
    %1609 = vmatprep.subr.bf16.mxu0 0
    %1610 = vmatpush2.bf16.msra.mxu0 0
    %1611 = vmatprep.subr.bf16.mxu0 0
    %1612 = vmatpush2.bf16.msra.mxu0 0
    %1613 = vmatprep.subr.bf16.mxu0 0
    %1614 = vmatpush2.bf16.msra.mxu0 0
    %1615 = vmatprep.subr.bf16.mxu0 0
    %1616 = vmatpush2.bf16.msra.mxu0 0
    %1617 = vmatprep.subr.bf16.mxu0 0
    %1618 = vmatpush2.bf16.msra.mxu0 0
    %1619 = vmatprep.mubr.bf16.mxu0 0
    %1620 = vmatmul.mubr.bf16.gmra.mxu0 %v1438
    %v1621 = vpop.f32.mrf.mxu0
    %v1622 = vadd.f32 0.0, %v1621
    %v1623 = vpop.f32.mrf.mxu0
    %v1624 = vadd.f32 0.0, %v1623
    %v1625 = vpop.f32.mrf.mxu0
    %v1626 = vpop.f32.mrf.mxu0
    %1627 = vdwg.mxu0
    %v1628 = vadd.f32 %v197, %v1581
    %v1629 = vadd.f32 %v199, %v1583
    %v1630 = vadd.f32 %v270, %v1622
    %v1631 = vadd.f32 %v272, %v1624
    %v1632 = vxor.u32 %v1628, 2147483648
    %v1633 = vmul.f32 %v1632, 1.442695
    %v1634 = vpow.pop %v1633
    %v1635 = vadd.f32 %v1634, 1.0
    %v1636 = vrcp.pop %v1635
    %v1637 = vmul.f32 1.0, %v1636
    %v1638 = vxor.u32 %v1629, 2147483648
    %v1639 = vmul.f32 %v1638, 1.442695
    %v1640 = vpow.pop %v1639
    %v1641 = vadd.f32 %v1640, 1.0
    %v1642 = vrcp.pop %v1641
    %v1643 = vmul.f32 1.0, %v1642
    %v1644 = vtanh.pop %v1630
    %v1645 = vxor.u32 %v1631, 2147483648
    %v1646 = vmul.f32 %v1645, 1.442695
    %v1647 = vpow.pop %v1646
    %v1648 = vadd.f32 %v1647, 1.0
    %v1649 = vrcp.pop %v1648
    %v1650 = vmul.f32 1.0, %v1649
    %v1651 = vmul.f32 %v1643, %v1435
    %v1652 = vmul.f32 %v1637, %v1644
    %v1653 = vadd.f32 %v1651, %v1652
    %v1654 = vtanh.pop %v1653
    %v1655 = vmul.f32 %v1650, %v1654
    %v1656 = vpack.c.bf16 %v1655, %v1655
    %v1657 = vpack.c.bf16 %v1545, %v1545
    %1658 = vmatprep.subr.bf16.mxu0 %v905
    %1659 = vmatpush1.bf16.msra.mxu0 %v904
    %1660 = vmatprep.subr.bf16.mxu0 %v901
    %1661 = vmatpush1.bf16.msra.mxu0 %v900
    %1662 = vmatprep.subr.bf16.mxu0 %v897
    %1663 = vmatpush1.bf16.msra.mxu0 %v896
    %1664 = vmatprep.subr.bf16.mxu0 %v893
    %1665 = vmatpush1.bf16.msra.mxu0 %v892
    %1666 = vmatprep.subr.bf16.mxu0 %v889
    %1667 = vmatpush1.bf16.msra.mxu0 %v888
    %1668 = vmatprep.subr.bf16.mxu0 %v885
    %1669 = vmatpush1.bf16.msra.mxu0 %v884
    %1670 = vmatprep.subr.bf16.mxu0 %v881
    %1671 = vmatpush1.bf16.msra.mxu0 %v880
    %1672 = vmatprep.subr.bf16.mxu0 %v877
    %1673 = vmatpush1.bf16.msra.mxu0 %v876
    %1674 = vmatprep.subr.bf16.mxu0 %v937
    %1675 = vmatpush2.bf16.msra.mxu0 %v936
    %1676 = vmatprep.subr.bf16.mxu0 %v933
    %1677 = vmatpush2.bf16.msra.mxu0 %v932
    %1678 = vmatprep.subr.bf16.mxu0 %v929
    %1679 = vmatpush2.bf16.msra.mxu0 %v928
    %1680 = vmatprep.subr.bf16.mxu0 %v925
    %1681 = vmatpush2.bf16.msra.mxu0 %v924
    %1682 = vmatprep.subr.bf16.mxu0 %v921
    %1683 = vmatpush2.bf16.msra.mxu0 %v920
    %1684 = vmatprep.subr.bf16.mxu0 %v917
    %1685 = vmatpush2.bf16.msra.mxu0 %v916
    %1686 = vmatprep.subr.bf16.mxu0 %v913
    %1687 = vmatpush2.bf16.msra.mxu0 %v912
    %1688 = vmatprep.subr.bf16.mxu0 %v909
    %1689 = vmatpush2.bf16.msra.mxu0 %v908
    %1690 = vmatprep.mubr.bf16.mxu0 %v1657
    %1691 = vmatmul.mubr.bf16.gmra.mxu0 %v1656
    %v1692 = vpop.f32.mrf.mxu0
    %v1693 = vadd.f32 %v395, %v1692
    %v1694 = vpop.f32.mrf.mxu0
    %v1695 = vadd.f32 %v399, %v1694
    %v1696 = vpop.f32.mrf.mxu0
    %v1697 = vpop.f32.mrf.mxu0
    %1698 = vdwg.mxu0
    %1699 = vmatprep.subr.bf16.mxu0 %v907
    %1700 = vmatpush1.bf16.msra.mxu0 %v906
    %1701 = vmatprep.subr.bf16.mxu0 %v903
    %1702 = vmatpush1.bf16.msra.mxu0 %v902
    %1703 = vmatprep.subr.bf16.mxu0 %v899
    %1704 = vmatpush1.bf16.msra.mxu0 %v898
    %1705 = vmatprep.subr.bf16.mxu0 %v895
    %1706 = vmatpush1.bf16.msra.mxu0 %v894
    %1707 = vmatprep.subr.bf16.mxu0 %v891
    %1708 = vmatpush1.bf16.msra.mxu0 %v890
    %1709 = vmatprep.subr.bf16.mxu0 %v887
    %1710 = vmatpush1.bf16.msra.mxu0 %v886
    %1711 = vmatprep.subr.bf16.mxu0 %v883
    %1712 = vmatpush1.bf16.msra.mxu0 %v882
    %1713 = vmatprep.subr.bf16.mxu0 %v879
    %1714 = vmatpush1.bf16.msra.mxu0 %v878
    %1715 = vmatprep.subr.bf16.mxu0 %v939
    %1716 = vmatpush2.bf16.msra.mxu0 %v938
    %1717 = vmatprep.subr.bf16.mxu0 %v935
    %1718 = vmatpush2.bf16.msra.mxu0 %v934
    %1719 = vmatprep.subr.bf16.mxu0 %v931
    %1720 = vmatpush2.bf16.msra.mxu0 %v930
    %1721 = vmatprep.subr.bf16.mxu0 %v927
    %1722 = vmatpush2.bf16.msra.mxu0 %v926
    %1723 = vmatprep.subr.bf16.mxu0 %v923
    %1724 = vmatpush2.bf16.msra.mxu0 %v922
    %1725 = vmatprep.subr.bf16.mxu0 %v919
    %1726 = vmatpush2.bf16.msra.mxu0 %v918
    %1727 = vmatprep.subr.bf16.mxu0 %v915
    %1728 = vmatpush2.bf16.msra.mxu0 %v914
    %1729 = vmatprep.subr.bf16.mxu0 %v911
    %1730 = vmatpush2.bf16.msra.mxu0 %v910
    %1731 = vmatprep.mubr.bf16.mxu0 %v1657
    %1732 = vmatmul.mubr.bf16.gmra.mxu0 %v1656
    %v1733 = vpop.f32.mrf.mxu0
    %v1734 = vadd.f32 %v403, %v1733
    %v1735 = vpop.f32.mrf.mxu0
    %v1736 = vadd.f32 %v407, %v1735
    %v1737 = vpop.f32.mrf.mxu0
    %v1738 = vpop.f32.mrf.mxu0
    %1739 = vdwg.mxu0
    %v1740 = vxor.u32 %v1693, 2147483648
    %v1741 = vmul.f32 %v1740, 1.442695
    %v1742 = vpow.pop %v1741
    %v1743 = vadd.f32 %v1742, 1.0
    %v1744 = vrcp.pop %v1743
    %v1745 = vmul.f32 1.0, %v1744
    %v1746 = vxor.u32 %v1695, 2147483648
    %v1747 = vmul.f32 %v1746, 1.442695
    %v1748 = vpow.pop %v1747
    %v1749 = vadd.f32 %v1748, 1.0
    %v1750 = vrcp.pop %v1749
    %v1751 = vmul.f32 1.0, %v1750
    %v1752 = vtanh.pop %v1734
    %v1753 = vxor.u32 %v1736, 2147483648
    %v1754 = vmul.f32 %v1753, 1.442695
    %v1755 = vpow.pop %v1754
    %v1756 = vadd.f32 %v1755, 1.0
    %v1757 = vrcp.pop %v1756
    %v1758 = vmul.f32 1.0, %v1757
    %v1759 = vmul.f32 %v1751, %v1543
    %v1760 = vmul.f32 %v1745, %v1752
    %v1761 = vadd.f32 %v1759, %v1760
    %v1762 = vtanh.pop %v1761
    %v1763 = vmul.f32 %v1758, %v1762
    %1764 = vmatprep.subr.bf16.mxu0 %v537
    %1765 = vmatpush1.bf16.msra.mxu0 %v536
    %1766 = vmatprep.subr.bf16.mxu0 %v533
    %1767 = vmatpush1.bf16.msra.mxu0 %v532
    %1768 = vmatprep.subr.bf16.mxu0 %v529
    %1769 = vmatpush1.bf16.msra.mxu0 %v528
    %1770 = vmatprep.subr.bf16.mxu0 %v525
    %1771 = vmatpush1.bf16.msra.mxu0 %v524
    %1772 = vmatprep.subr.bf16.mxu0 %v521
    %1773 = vmatpush1.bf16.msra.mxu0 %v520
    %1774 = vmatprep.subr.bf16.mxu0 %v517
    %1775 = vmatpush1.bf16.msra.mxu0 %v516
    %1776 = vmatprep.subr.bf16.mxu0 %v513
    %1777 = vmatpush1.bf16.msra.mxu0 %v512
    %1778 = vmatprep.subr.bf16.mxu0 %v509
    %1779 = vmatpush1.bf16.msra.mxu0 %v508
    %1780 = vmatprep.subr.bf16.mxu0 0
    %1781 = vmatpush2.bf16.msra.mxu0 0
    %1782 = vmatprep.subr.bf16.mxu0 0
    %1783 = vmatpush2.bf16.msra.mxu0 0
    %1784 = vmatprep.subr.bf16.mxu0 0
    %1785 = vmatpush2.bf16.msra.mxu0 0
    %1786 = vmatprep.subr.bf16.mxu0 0
    %1787 = vmatpush2.bf16.msra.mxu0 0
    %1788 = vmatprep.subr.bf16.mxu0 0
    %1789 = vmatpush2.bf16.msra.mxu0 0
    %1790 = vmatprep.subr.bf16.mxu0 0
    %1791 = vmatpush2.bf16.msra.mxu0 0
    %1792 = vmatprep.subr.bf16.mxu0 0
    %1793 = vmatpush2.bf16.msra.mxu0 0
    %1794 = vmatprep.subr.bf16.mxu0 0
    %1795 = vmatpush2.bf16.msra.mxu0 0
    %1796 = vmatprep.mubr.bf16.mxu0 0
    %1797 = vmatmul.mubr.bf16.gmra.mxu0 %v1656
    %v1798 = vpop.f32.mrf.mxu0
    %v1799 = vadd.f32 0.0, %v1798
    %v1800 = vpop.f32.mrf.mxu0
    %v1801 = vadd.f32 0.0, %v1800
    %v1802 = vpop.f32.mrf.mxu0
    %v1803 = vpop.f32.mrf.mxu0
    %1804 = vdwg.mxu0
    %1805 = vmatprep.subr.bf16.mxu0 %v539
    %1806 = vmatpush1.bf16.msra.mxu0 %v538
    %1807 = vmatprep.subr.bf16.mxu0 %v535
    %1808 = vmatpush1.bf16.msra.mxu0 %v534
    %1809 = vmatprep.subr.bf16.mxu0 %v531
    %1810 = vmatpush1.bf16.msra.mxu0 %v530
    %1811 = vmatprep.subr.bf16.mxu0 %v527
    %1812 = vmatpush1.bf16.msra.mxu0 %v526
    %1813 = vmatprep.subr.bf16.mxu0 %v523
    %1814 = vmatpush1.bf16.msra.mxu0 %v522
    %1815 = vmatprep.subr.bf16.mxu0 %v519
    %1816 = vmatpush1.bf16.msra.mxu0 %v518
    %1817 = vmatprep.subr.bf16.mxu0 %v515
    %1818 = vmatpush1.bf16.msra.mxu0 %v514
    %1819 = vmatprep.subr.bf16.mxu0 %v511
    %1820 = vmatpush1.bf16.msra.mxu0 %v510
    %1821 = vmatprep.subr.bf16.mxu0 0
    %1822 = vmatpush2.bf16.msra.mxu0 0
    %1823 = vmatprep.subr.bf16.mxu0 0
    %1824 = vmatpush2.bf16.msra.mxu0 0
    %1825 = vmatprep.subr.bf16.mxu0 0
    %1826 = vmatpush2.bf16.msra.mxu0 0
    %1827 = vmatprep.subr.bf16.mxu0 0
    %1828 = vmatpush2.bf16.msra.mxu0 0
    %1829 = vmatprep.subr.bf16.mxu0 0
    %1830 = vmatpush2.bf16.msra.mxu0 0
    %1831 = vmatprep.subr.bf16.mxu0 0
    %1832 = vmatpush2.bf16.msra.mxu0 0
    %1833 = vmatprep.subr.bf16.mxu0 0
    %1834 = vmatpush2.bf16.msra.mxu0 0
    %1835 = vmatprep.subr.bf16.mxu0 0
    %1836 = vmatpush2.bf16.msra.mxu0 0
    %1837 = vmatprep.mubr.bf16.mxu0 0
    %1838 = vmatmul.mubr.bf16.gmra.mxu0 %v1656
    %v1839 = vpop.f32.mrf.mxu0
    %v1840 = vadd.f32 0.0, %v1839
    %v1841 = vpop.f32.mrf.mxu0
    %v1842 = vadd.f32 0.0, %v1841
    %v1843 = vpop.f32.mrf.mxu0
    %v1844 = vpop.f32.mrf.mxu0
    %1845 = vdwg.mxu0
    %v1846 = vadd.f32 %v203, %v1799
    %v1847 = vadd.f32 %v205, %v1801
    %v1848 = vadd.f32 %v276, %v1840
    %v1849 = vadd.f32 %v278, %v1842
    %v1850 = vxor.u32 %v1846, 2147483648
    %v1851 = vmul.f32 %v1850, 1.442695
    %v1852 = vpow.pop %v1851
    %v1853 = vadd.f32 %v1852, 1.0
    %v1854 = vrcp.pop %v1853
    %v1855 = vmul.f32 1.0, %v1854
    %v1856 = vxor.u32 %v1847, 2147483648
    %v1857 = vmul.f32 %v1856, 1.442695
    %v1858 = vpow.pop %v1857
    %v1859 = vadd.f32 %v1858, 1.0
    %v1860 = vrcp.pop %v1859
    %v1861 = vmul.f32 1.0, %v1860
    %v1862 = vtanh.pop %v1848
    %v1863 = vxor.u32 %v1849, 2147483648
    %v1864 = vmul.f32 %v1863, 1.442695
    %v1865 = vpow.pop %v1864
    %v1866 = vadd.f32 %v1865, 1.0
    %v1867 = vrcp.pop %v1866
    %v1868 = vmul.f32 1.0, %v1867
    %v1869 = vmul.f32 %v1861, %v1653
    %v1870 = vmul.f32 %v1855, %v1862
    %v1871 = vadd.f32 %v1869, %v1870
    %v1872 = vtanh.pop %v1871
    %v1873 = vmul.f32 %v1868, %v1872
    %v1874 = vpack.c.bf16 %v1873, %v1873
    %v1875 = vpack.c.bf16 %v1763, %v1763
    %1876 = vmatprep.subr.bf16.mxu0 %v905
    %1877 = vmatpush1.bf16.msra.mxu0 %v904
    %1878 = vmatprep.subr.bf16.mxu0 %v901
    %1879 = vmatpush1.bf16.msra.mxu0 %v900
    %1880 = vmatprep.subr.bf16.mxu0 %v897
    %1881 = vmatpush1.bf16.msra.mxu0 %v896
    %1882 = vmatprep.subr.bf16.mxu0 %v893
    %1883 = vmatpush1.bf16.msra.mxu0 %v892
    %1884 = vmatprep.subr.bf16.mxu0 %v889
    %1885 = vmatpush1.bf16.msra.mxu0 %v888
    %1886 = vmatprep.subr.bf16.mxu0 %v885
    %1887 = vmatpush1.bf16.msra.mxu0 %v884
    %1888 = vmatprep.subr.bf16.mxu0 %v881
    %1889 = vmatpush1.bf16.msra.mxu0 %v880
    %1890 = vmatprep.subr.bf16.mxu0 %v877
    %1891 = vmatpush1.bf16.msra.mxu0 %v876
    %1892 = vmatprep.subr.bf16.mxu0 %v937
    %1893 = vmatpush2.bf16.msra.mxu0 %v936
    %1894 = vmatprep.subr.bf16.mxu0 %v933
    %1895 = vmatpush2.bf16.msra.mxu0 %v932
    %1896 = vmatprep.subr.bf16.mxu0 %v929
    %1897 = vmatpush2.bf16.msra.mxu0 %v928
    %1898 = vmatprep.subr.bf16.mxu0 %v925
    %1899 = vmatpush2.bf16.msra.mxu0 %v924
    %1900 = vmatprep.subr.bf16.mxu0 %v921
    %1901 = vmatpush2.bf16.msra.mxu0 %v920
    %1902 = vmatprep.subr.bf16.mxu0 %v917
    %1903 = vmatpush2.bf16.msra.mxu0 %v916
    %1904 = vmatprep.subr.bf16.mxu0 %v913
    %1905 = vmatpush2.bf16.msra.mxu0 %v912
    %1906 = vmatprep.subr.bf16.mxu0 %v909
    %1907 = vmatpush2.bf16.msra.mxu0 %v908
    %1908 = vmatprep.mubr.bf16.mxu0 %v1875
    %1909 = vmatmul.mubr.bf16.gmra.mxu0 %v1874
    %v1910 = vpop.f32.mrf.mxu0
    %v1911 = vadd.f32 %v395, %v1910
    %v1912 = vpop.f32.mrf.mxu0
    %v1913 = vadd.f32 %v399, %v1912
    %v1914 = vpop.f32.mrf.mxu0
    %v1915 = vpop.f32.mrf.mxu0
    %1916 = vdwg.mxu0
    %1917 = vmatprep.subr.bf16.mxu0 %v907
    %1918 = vmatpush1.bf16.msra.mxu0 %v906
    %1919 = vmatprep.subr.bf16.mxu0 %v903
    %1920 = vmatpush1.bf16.msra.mxu0 %v902
    %1921 = vmatprep.subr.bf16.mxu0 %v899
    %1922 = vmatpush1.bf16.msra.mxu0 %v898
    %1923 = vmatprep.subr.bf16.mxu0 %v895
    %1924 = vmatpush1.bf16.msra.mxu0 %v894
    %1925 = vmatprep.subr.bf16.mxu0 %v891
    %1926 = vmatpush1.bf16.msra.mxu0 %v890
    %1927 = vmatprep.subr.bf16.mxu0 %v887
    %1928 = vmatpush1.bf16.msra.mxu0 %v886
    %1929 = vmatprep.subr.bf16.mxu0 %v883
    %1930 = vmatpush1.bf16.msra.mxu0 %v882
    %1931 = vmatprep.subr.bf16.mxu0 %v879
    %1932 = vmatpush1.bf16.msra.mxu0 %v878
    %1933 = vmatprep.subr.bf16.mxu0 %v939
    %1934 = vmatpush2.bf16.msra.mxu0 %v938
    %1935 = vmatprep.subr.bf16.mxu0 %v935
    %1936 = vmatpush2.bf16.msra.mxu0 %v934
    %1937 = vmatprep.subr.bf16.mxu0 %v931
    %1938 = vmatpush2.bf16.msra.mxu0 %v930
    %1939 = vmatprep.subr.bf16.mxu0 %v927
    %1940 = vmatpush2.bf16.msra.mxu0 %v926
    %1941 = vmatprep.subr.bf16.mxu0 %v923
    %1942 = vmatpush2.bf16.msra.mxu0 %v922
    %1943 = vmatprep.subr.bf16.mxu0 %v919
    %1944 = vmatpush2.bf16.msra.mxu0 %v918
    %1945 = vmatprep.subr.bf16.mxu0 %v915
    %1946 = vmatpush2.bf16.msra.mxu0 %v914
    %1947 = vmatprep.subr.bf16.mxu0 %v911
    %1948 = vmatpush2.bf16.msra.mxu0 %v910
    %1949 = vmatprep.mubr.bf16.mxu0 %v1875
    %1950 = vmatmul.mubr.bf16.gmra.mxu0 %v1874
    %v1951 = vpop.f32.mrf.mxu0
    %v1952 = vadd.f32 %v403, %v1951
    %v1953 = vpop.f32.mrf.mxu0
    %v1954 = vadd.f32 %v407, %v1953
    %v1955 = vpop.f32.mrf.mxu0
    %v1956 = vpop.f32.mrf.mxu0
    %1957 = vdwg.mxu0
    %v1958 = vxor.u32 %v1911, 2147483648
    %v1959 = vmul.f32 %v1958, 1.442695
    %v1960 = vpow.pop %v1959
    %v1961 = vadd.f32 %v1960, 1.0
    %v1962 = vrcp.pop %v1961
    %v1963 = vmul.f32 1.0, %v1962
    %v1964 = vxor.u32 %v1913, 2147483648
    %v1965 = vmul.f32 %v1964, 1.442695
    %v1966 = vpow.pop %v1965
    %v1967 = vadd.f32 %v1966, 1.0
    %v1968 = vrcp.pop %v1967
    %v1969 = vmul.f32 1.0, %v1968
    %v1970 = vtanh.pop %v1952
    %v1971 = vxor.u32 %v1954, 2147483648
    %v1972 = vmul.f32 %v1971, 1.442695
    %v1973 = vpow.pop %v1972
    %v1974 = vadd.f32 %v1973, 1.0
    %v1975 = vrcp.pop %v1974
    %v1976 = vmul.f32 1.0, %v1975
    %v1977 = vmul.f32 %v1969, %v1761
    %v1978 = vmul.f32 %v1963, %v1970
    %v1979 = vadd.f32 %v1977, %v1978
    %v1980 = vtanh.pop %v1979
    %v1981 = vmul.f32 %v1976, %v1980
    %1982 = vmatprep.subr.bf16.mxu0 %v537
    %1983 = vmatpush1.bf16.msra.mxu0 %v536
    %1984 = vmatprep.subr.bf16.mxu0 %v533
    %1985 = vmatpush1.bf16.msra.mxu0 %v532
    %1986 = vmatprep.subr.bf16.mxu0 %v529
    %1987 = vmatpush1.bf16.msra.mxu0 %v528
    %1988 = vmatprep.subr.bf16.mxu0 %v525
    %1989 = vmatpush1.bf16.msra.mxu0 %v524
    %1990 = vmatprep.subr.bf16.mxu0 %v521
    %1991 = vmatpush1.bf16.msra.mxu0 %v520
    %1992 = vmatprep.subr.bf16.mxu0 %v517
    %1993 = vmatpush1.bf16.msra.mxu0 %v516
    %1994 = vmatprep.subr.bf16.mxu0 %v513
    %1995 = vmatpush1.bf16.msra.mxu0 %v512
    %1996 = vmatprep.subr.bf16.mxu0 %v509
    %1997 = vmatpush1.bf16.msra.mxu0 %v508
    %1998 = vmatprep.subr.bf16.mxu0 0
    %1999 = vmatpush2.bf16.msra.mxu0 0
    %2000 = vmatprep.subr.bf16.mxu0 0
    %2001 = vmatpush2.bf16.msra.mxu0 0
    %2002 = vmatprep.subr.bf16.mxu0 0
    %2003 = vmatpush2.bf16.msra.mxu0 0
    %2004 = vmatprep.subr.bf16.mxu0 0
    %2005 = vmatpush2.bf16.msra.mxu0 0
    %2006 = vmatprep.subr.bf16.mxu0 0
    %2007 = vmatpush2.bf16.msra.mxu0 0
    %2008 = vmatprep.subr.bf16.mxu0 0
    %2009 = vmatpush2.bf16.msra.mxu0 0
    %2010 = vmatprep.subr.bf16.mxu0 0
    %2011 = vmatpush2.bf16.msra.mxu0 0
    %2012 = vmatprep.subr.bf16.mxu0 0
    %2013 = vmatpush2.bf16.msra.mxu0 0
    %2014 = vmatprep.mubr.bf16.mxu0 0
    %2015 = vmatmul.mubr.bf16.gmra.mxu0 %v1874
    %v2016 = vpop.f32.mrf.mxu0
    %v2017 = vadd.f32 0.0, %v2016
    %v2018 = vpop.f32.mrf.mxu0
    %v2019 = vadd.f32 0.0, %v2018
    %v2020 = vpop.f32.mrf.mxu0
    %v2021 = vpop.f32.mrf.mxu0
    %2022 = vdwg.mxu0
    %2023 = vmatprep.subr.bf16.mxu0 %v539
    %2024 = vmatpush1.bf16.msra.mxu0 %v538
    %2025 = vmatprep.subr.bf16.mxu0 %v535
    %2026 = vmatpush1.bf16.msra.mxu0 %v534
    %2027 = vmatprep.subr.bf16.mxu0 %v531
    %2028 = vmatpush1.bf16.msra.mxu0 %v530
    %2029 = vmatprep.subr.bf16.mxu0 %v527
    %2030 = vmatpush1.bf16.msra.mxu0 %v526
    %2031 = vmatprep.subr.bf16.mxu0 %v523
    %2032 = vmatpush1.bf16.msra.mxu0 %v522
    %2033 = vmatprep.subr.bf16.mxu0 %v519
    %2034 = vmatpush1.bf16.msra.mxu0 %v518
    %2035 = vmatprep.subr.bf16.mxu0 %v515
    %2036 = vmatpush1.bf16.msra.mxu0 %v514
    %2037 = vmatprep.subr.bf16.mxu0 %v511
    %2038 = vmatpush1.bf16.msra.mxu0 %v510
    %2039 = vmatprep.subr.bf16.mxu0 0
    %2040 = vmatpush2.bf16.msra.mxu0 0
    %2041 = vmatprep.subr.bf16.mxu0 0
    %2042 = vmatpush2.bf16.msra.mxu0 0
    %2043 = vmatprep.subr.bf16.mxu0 0
    %2044 = vmatpush2.bf16.msra.mxu0 0
    %2045 = vmatprep.subr.bf16.mxu0 0
    %2046 = vmatpush2.bf16.msra.mxu0 0
    %2047 = vmatprep.subr.bf16.mxu0 0
    %2048 = vmatpush2.bf16.msra.mxu0 0
    %2049 = vmatprep.subr.bf16.mxu0 0
    %2050 = vmatpush2.bf16.msra.mxu0 0
    %2051 = vmatprep.subr.bf16.mxu0 0
    %2052 = vmatpush2.bf16.msra.mxu0 0
    %2053 = vmatprep.subr.bf16.mxu0 0
    %2054 = vmatpush2.bf16.msra.mxu0 0
    %2055 = vmatprep.mubr.bf16.mxu0 0
    %2056 = vmatmul.mubr.bf16.gmra.mxu0 %v1874
    %v2057 = vpop.f32.mrf.mxu0
    %v2058 = vadd.f32 0.0, %v2057
    %v2059 = vpop.f32.mrf.mxu0
    %v2060 = vadd.f32 0.0, %v2059
    %v2061 = vpop.f32.mrf.mxu0
    %v2062 = vpop.f32.mrf.mxu0
    %2063 = vdwg.mxu0
    %v2064 = vadd.f32 %v207, %v2017
    %v2065 = vadd.f32 %v209, %v2019
    %v2066 = vadd.f32 %v280, %v2058
    %v2067 = vadd.f32 %v282, %v2060
    %v2068 = vxor.u32 %v2064, 2147483648
    %v2069 = vmul.f32 %v2068, 1.442695
    %v2070 = vpow.pop %v2069
    %v2071 = vadd.f32 %v2070, 1.0
    %v2072 = vrcp.pop %v2071
    %v2073 = vmul.f32 1.0, %v2072
    %v2074 = vxor.u32 %v2065, 2147483648
    %v2075 = vmul.f32 %v2074, 1.442695
    %v2076 = vpow.pop %v2075
    %v2077 = vadd.f32 %v2076, 1.0
    %v2078 = vrcp.pop %v2077
    %v2079 = vmul.f32 1.0, %v2078
    %v2080 = vtanh.pop %v2066
    %v2081 = vxor.u32 %v2067, 2147483648
    %v2082 = vmul.f32 %v2081, 1.442695
    %v2083 = vpow.pop %v2082
    %v2084 = vadd.f32 %v2083, 1.0
    %v2085 = vrcp.pop %v2084
    %v2086 = vmul.f32 1.0, %v2085
    %v2087 = vmul.f32 %v2079, %v1871
    %v2088 = vmul.f32 %v2073, %v2080
    %v2089 = vadd.f32 %v2087, %v2088
    %v2090 = vtanh.pop %v2089
    %v2091 = vmul.f32 %v2086, %v2090
    %v2092 = vpack.c.bf16 %v2091, %v2091
    %v2093 = vpack.c.bf16 %v1981, %v1981
    %2094 = vmatprep.subr.bf16.mxu0 %v905
    %2095 = vmatpush1.bf16.msra.mxu0 %v904
    %2096 = vmatprep.subr.bf16.mxu0 %v901
    %2097 = vmatpush1.bf16.msra.mxu0 %v900
    %2098 = vmatprep.subr.bf16.mxu0 %v897
    %2099 = vmatpush1.bf16.msra.mxu0 %v896
    %2100 = vmatprep.subr.bf16.mxu0 %v893
    %2101 = vmatpush1.bf16.msra.mxu0 %v892
    %2102 = vmatprep.subr.bf16.mxu0 %v889
    %2103 = vmatpush1.bf16.msra.mxu0 %v888
    %2104 = vmatprep.subr.bf16.mxu0 %v885
    %2105 = vmatpush1.bf16.msra.mxu0 %v884
    %2106 = vmatprep.subr.bf16.mxu0 %v881
    %2107 = vmatpush1.bf16.msra.mxu0 %v880
    %2108 = vmatprep.subr.bf16.mxu0 %v877
    %2109 = vmatpush1.bf16.msra.mxu0 %v876
    %2110 = vmatprep.subr.bf16.mxu0 %v937
    %2111 = vmatpush2.bf16.msra.mxu0 %v936
    %2112 = vmatprep.subr.bf16.mxu0 %v933
    %2113 = vmatpush2.bf16.msra.mxu0 %v932
    %2114 = vmatprep.subr.bf16.mxu0 %v929
    %2115 = vmatpush2.bf16.msra.mxu0 %v928
    %2116 = vmatprep.subr.bf16.mxu0 %v925
    %2117 = vmatpush2.bf16.msra.mxu0 %v924
    %2118 = vmatprep.subr.bf16.mxu0 %v921
    %2119 = vmatpush2.bf16.msra.mxu0 %v920
    %2120 = vmatprep.subr.bf16.mxu0 %v917
    %2121 = vmatpush2.bf16.msra.mxu0 %v916
    %2122 = vmatprep.subr.bf16.mxu0 %v913
    %2123 = vmatpush2.bf16.msra.mxu0 %v912
    %2124 = vmatprep.subr.bf16.mxu0 %v909
    %2125 = vmatpush2.bf16.msra.mxu0 %v908
    %2126 = vmatprep.mubr.bf16.mxu0 %v2093
    %2127 = vmatmul.mubr.bf16.gmra.mxu0 %v2092
    %v2128 = vpop.f32.mrf.mxu0
    %v2129 = vadd.f32 %v395, %v2128
    %v2130 = vpop.f32.mrf.mxu0
    %v2131 = vadd.f32 %v399, %v2130
    %v2132 = vpop.f32.mrf.mxu0
    %v2133 = vpop.f32.mrf.mxu0
    %2134 = vdwg.mxu0
    %2135 = vmatprep.subr.bf16.mxu0 %v907
    %2136 = vmatpush1.bf16.msra.mxu0 %v906
    %2137 = vmatprep.subr.bf16.mxu0 %v903
    %2138 = vmatpush1.bf16.msra.mxu0 %v902
    %2139 = vmatprep.subr.bf16.mxu0 %v899
    %2140 = vmatpush1.bf16.msra.mxu0 %v898
    %2141 = vmatprep.subr.bf16.mxu0 %v895
    %2142 = vmatpush1.bf16.msra.mxu0 %v894
    %2143 = vmatprep.subr.bf16.mxu0 %v891
    %2144 = vmatpush1.bf16.msra.mxu0 %v890
    %2145 = vmatprep.subr.bf16.mxu0 %v887
    %2146 = vmatpush1.bf16.msra.mxu0 %v886
    %2147 = vmatprep.subr.bf16.mxu0 %v883
    %2148 = vmatpush1.bf16.msra.mxu0 %v882
    %2149 = vmatprep.subr.bf16.mxu0 %v879
    %2150 = vmatpush1.bf16.msra.mxu0 %v878
    %2151 = vmatprep.subr.bf16.mxu0 %v939
    %2152 = vmatpush2.bf16.msra.mxu0 %v938
    %2153 = vmatprep.subr.bf16.mxu0 %v935
    %2154 = vmatpush2.bf16.msra.mxu0 %v934
    %2155 = vmatprep.subr.bf16.mxu0 %v931
    %2156 = vmatpush2.bf16.msra.mxu0 %v930
    %2157 = vmatprep.subr.bf16.mxu0 %v927
    %2158 = vmatpush2.bf16.msra.mxu0 %v926
    %2159 = vmatprep.subr.bf16.mxu0 %v923
    %2160 = vmatpush2.bf16.msra.mxu0 %v922
    %2161 = vmatprep.subr.bf16.mxu0 %v919
    %2162 = vmatpush2.bf16.msra.mxu0 %v918
    %2163 = vmatprep.subr.bf16.mxu0 %v915
    %2164 = vmatpush2.bf16.msra.mxu0 %v914
    %2165 = vmatprep.subr.bf16.mxu0 %v911
    %2166 = vmatpush2.bf16.msra.mxu0 %v910
    %2167 = vmatprep.mubr.bf16.mxu0 %v2093
    %2168 = vmatmul.mubr.bf16.gmra.mxu0 %v2092
    %v2169 = vpop.f32.mrf.mxu0
    %v2170 = vadd.f32 %v403, %v2169
    %v2171 = vpop.f32.mrf.mxu0
    %v2172 = vadd.f32 %v407, %v2171
    %v2173 = vpop.f32.mrf.mxu0
    %v2174 = vpop.f32.mrf.mxu0
    %2175 = vdwg.mxu0
    %v2176 = vxor.u32 %v2129, 2147483648
    %v2177 = vmul.f32 %v2176, 1.442695
    %v2178 = vpow.pop %v2177
    %v2179 = vadd.f32 %v2178, 1.0
    %v2180 = vrcp.pop %v2179
    %v2181 = vmul.f32 1.0, %v2180
    %v2182 = vxor.u32 %v2131, 2147483648
    %v2183 = vmul.f32 %v2182, 1.442695
    %v2184 = vpow.pop %v2183
    %v2185 = vadd.f32 %v2184, 1.0
    %v2186 = vrcp.pop %v2185
    %v2187 = vmul.f32 1.0, %v2186
    %v2188 = vtanh.pop %v2170
    %v2189 = vxor.u32 %v2172, 2147483648
    %v2190 = vmul.f32 %v2189, 1.442695
    %v2191 = vpow.pop %v2190
    %v2192 = vadd.f32 %v2191, 1.0
    %v2193 = vrcp.pop %v2192
    %v2194 = vmul.f32 1.0, %v2193
    %v2195 = vmul.f32 %v2187, %v1979
    %v2196 = vmul.f32 %v2181, %v2188
    %v2197 = vadd.f32 %v2195, %v2196
    %v2198 = vtanh.pop %v2197
    %v2199 = vmul.f32 %v2194, %v2198
    %2200 = vmatprep.subr.bf16.mxu0 %v537
    %2201 = vmatpush1.bf16.msra.mxu0 %v536
    %2202 = vmatprep.subr.bf16.mxu0 %v533
    %2203 = vmatpush1.bf16.msra.mxu0 %v532
    %2204 = vmatprep.subr.bf16.mxu0 %v529
    %2205 = vmatpush1.bf16.msra.mxu0 %v528
    %2206 = vmatprep.subr.bf16.mxu0 %v525
    %2207 = vmatpush1.bf16.msra.mxu0 %v524
    %2208 = vmatprep.subr.bf16.mxu0 %v521
    %2209 = vmatpush1.bf16.msra.mxu0 %v520
    %2210 = vmatprep.subr.bf16.mxu0 %v517
    %2211 = vmatpush1.bf16.msra.mxu0 %v516
    %2212 = vmatprep.subr.bf16.mxu0 %v513
    %2213 = vmatpush1.bf16.msra.mxu0 %v512
    %2214 = vmatprep.subr.bf16.mxu0 %v509
    %2215 = vmatpush1.bf16.msra.mxu0 %v508
    %2216 = vmatprep.subr.bf16.mxu0 0
    %2217 = vmatpush2.bf16.msra.mxu0 0
    %2218 = vmatprep.subr.bf16.mxu0 0
    %2219 = vmatpush2.bf16.msra.mxu0 0
    %2220 = vmatprep.subr.bf16.mxu0 0
    %2221 = vmatpush2.bf16.msra.mxu0 0
    %2222 = vmatprep.subr.bf16.mxu0 0
    %2223 = vmatpush2.bf16.msra.mxu0 0
    %2224 = vmatprep.subr.bf16.mxu0 0
    %2225 = vmatpush2.bf16.msra.mxu0 0
    %2226 = vmatprep.subr.bf16.mxu0 0
    %2227 = vmatpush2.bf16.msra.mxu0 0
    %2228 = vmatprep.subr.bf16.mxu0 0
    %2229 = vmatpush2.bf16.msra.mxu0 0
    %2230 = vmatprep.subr.bf16.mxu0 0
    %2231 = vmatpush2.bf16.msra.mxu0 0
    %2232 = vmatprep.mubr.bf16.mxu0 0
    %2233 = vmatmul.mubr.bf16.gmra.mxu0 %v2092
    %v2234 = vpop.f32.mrf.mxu0
    %v2235 = vadd.f32 0.0, %v2234
    %v2236 = vpop.f32.mrf.mxu0
    %v2237 = vadd.f32 0.0, %v2236
    %v2238 = vpop.f32.mrf.mxu0
    %v2239 = vpop.f32.mrf.mxu0
    %2240 = vdwg.mxu0
    %2241 = vmatprep.subr.bf16.mxu0 %v539
    %2242 = vmatpush1.bf16.msra.mxu0 %v538
    %2243 = vmatprep.subr.bf16.mxu0 %v535
    %2244 = vmatpush1.bf16.msra.mxu0 %v534
    %2245 = vmatprep.subr.bf16.mxu0 %v531
    %2246 = vmatpush1.bf16.msra.mxu0 %v530
    %2247 = vmatprep.subr.bf16.mxu0 %v527
    %2248 = vmatpush1.bf16.msra.mxu0 %v526
    %2249 = vmatprep.subr.bf16.mxu0 %v523
    %2250 = vmatpush1.bf16.msra.mxu0 %v522
    %2251 = vmatprep.subr.bf16.mxu0 %v519
    %2252 = vmatpush1.bf16.msra.mxu0 %v518
    %2253 = vmatprep.subr.bf16.mxu0 %v515
    %2254 = vmatpush1.bf16.msra.mxu0 %v514
    %2255 = vmatprep.subr.bf16.mxu0 %v511
    %2256 = vmatpush1.bf16.msra.mxu0 %v510
    %2257 = vmatprep.subr.bf16.mxu0 0
    %2258 = vmatpush2.bf16.msra.mxu0 0
    %2259 = vmatprep.subr.bf16.mxu0 0
    %2260 = vmatpush2.bf16.msra.mxu0 0
    %2261 = vmatprep.subr.bf16.mxu0 0
    %2262 = vmatpush2.bf16.msra.mxu0 0
    %2263 = vmatprep.subr.bf16.mxu0 0
    %2264 = vmatpush2.bf16.msra.mxu0 0
    %2265 = vmatprep.subr.bf16.mxu0 0
    %2266 = vmatpush2.bf16.msra.mxu0 0
    %2267 = vmatprep.subr.bf16.mxu0 0
    %2268 = vmatpush2.bf16.msra.mxu0 0
    %2269 = vmatprep.subr.bf16.mxu0 0
    %2270 = vmatpush2.bf16.msra.mxu0 0
    %2271 = vmatprep.subr.bf16.mxu0 0
    %2272 = vmatpush2.bf16.msra.mxu0 0
    %2273 = vmatprep.mubr.bf16.mxu0 0
    %2274 = vmatmul.mubr.bf16.gmra.mxu0 %v2092
    %v2275 = vpop.f32.mrf.mxu0
    %v2276 = vadd.f32 0.0, %v2275
    %v2277 = vpop.f32.mrf.mxu0
    %v2278 = vadd.f32 0.0, %v2277
    %v2279 = vpop.f32.mrf.mxu0
    %v2280 = vpop.f32.mrf.mxu0
    %2281 = vdwg.mxu0
    %v2282 = vadd.f32 %v213, %v2235
    %v2283 = vadd.f32 %v215, %v2237
    %v2284 = vadd.f32 %v286, %v2276
    %v2285 = vadd.f32 %v288, %v2278
    %v2286 = vxor.u32 %v2282, 2147483648
    %v2287 = vmul.f32 %v2286, 1.442695
    %v2288 = vpow.pop %v2287
    %v2289 = vadd.f32 %v2288, 1.0
    %v2290 = vrcp.pop %v2289
    %v2291 = vmul.f32 1.0, %v2290
    %v2292 = vxor.u32 %v2283, 2147483648
    %v2293 = vmul.f32 %v2292, 1.442695
    %v2294 = vpow.pop %v2293
    %v2295 = vadd.f32 %v2294, 1.0
    %v2296 = vrcp.pop %v2295
    %v2297 = vmul.f32 1.0, %v2296
    %v2298 = vtanh.pop %v2284
    %v2299 = vxor.u32 %v2285, 2147483648
    %v2300 = vmul.f32 %v2299, 1.442695
    %v2301 = vpow.pop %v2300
    %v2302 = vadd.f32 %v2301, 1.0
    %v2303 = vrcp.pop %v2302
    %v2304 = vmul.f32 1.0, %v2303
    %v2305 = vmul.f32 %v2297, %v2089
    %v2306 = vmul.f32 %v2291, %v2298
    %v2307 = vadd.f32 %v2305, %v2306
    %v2308 = vtanh.pop %v2307
    %v2309 = vmul.f32 %v2304, %v2308
    %v2310 = vpack.c.bf16 %v2309, %v2309
    %v2311 = vpack.c.bf16 %v2199, %v2199
    %2312 = vmatprep.subr.bf16.mxu0 %v905
    %2313 = vmatpush1.bf16.msra.mxu0 %v904
    %2314 = vmatprep.subr.bf16.mxu0 %v901
    %2315 = vmatpush1.bf16.msra.mxu0 %v900
    %2316 = vmatprep.subr.bf16.mxu0 %v897
    %2317 = vmatpush1.bf16.msra.mxu0 %v896
    %2318 = vmatprep.subr.bf16.mxu0 %v893
    %2319 = vmatpush1.bf16.msra.mxu0 %v892
    %2320 = vmatprep.subr.bf16.mxu0 %v889
    %2321 = vmatpush1.bf16.msra.mxu0 %v888
    %2322 = vmatprep.subr.bf16.mxu0 %v885
    %2323 = vmatpush1.bf16.msra.mxu0 %v884
    %2324 = vmatprep.subr.bf16.mxu0 %v881
    %2325 = vmatpush1.bf16.msra.mxu0 %v880
    %2326 = vmatprep.subr.bf16.mxu0 %v877
    %2327 = vmatpush1.bf16.msra.mxu0 %v876
    %2328 = vmatprep.subr.bf16.mxu0 %v937
    %2329 = vmatpush2.bf16.msra.mxu0 %v936
    %2330 = vmatprep.subr.bf16.mxu0 %v933
    %2331 = vmatpush2.bf16.msra.mxu0 %v932
    %2332 = vmatprep.subr.bf16.mxu0 %v929
    %2333 = vmatpush2.bf16.msra.mxu0 %v928
    %2334 = vmatprep.subr.bf16.mxu0 %v925
    %2335 = vmatpush2.bf16.msra.mxu0 %v924
    %2336 = vmatprep.subr.bf16.mxu0 %v921
    %2337 = vmatpush2.bf16.msra.mxu0 %v920
    %2338 = vmatprep.subr.bf16.mxu0 %v917
    %2339 = vmatpush2.bf16.msra.mxu0 %v916
    %2340 = vmatprep.subr.bf16.mxu0 %v913
    %2341 = vmatpush2.bf16.msra.mxu0 %v912
    %2342 = vmatprep.subr.bf16.mxu0 %v909
    %2343 = vmatpush2.bf16.msra.mxu0 %v908
    %2344 = vmatprep.mubr.bf16.mxu0 %v2311
    %2345 = vmatmul.mubr.bf16.gmra.mxu0 %v2310
    %v2346 = vpop.f32.mrf.mxu0
    %v2347 = vadd.f32 %v395, %v2346
    %v2348 = vpop.f32.mrf.mxu0
    %v2349 = vadd.f32 %v399, %v2348
    %v2350 = vpop.f32.mrf.mxu0
    %v2351 = vpop.f32.mrf.mxu0
    %2352 = vdwg.mxu0
    %2353 = vmatprep.subr.bf16.mxu0 %v907
    %2354 = vmatpush1.bf16.msra.mxu0 %v906
    %2355 = vmatprep.subr.bf16.mxu0 %v903
    %2356 = vmatpush1.bf16.msra.mxu0 %v902
    %2357 = vmatprep.subr.bf16.mxu0 %v899
    %2358 = vmatpush1.bf16.msra.mxu0 %v898
    %2359 = vmatprep.subr.bf16.mxu0 %v895
    %2360 = vmatpush1.bf16.msra.mxu0 %v894
    %2361 = vmatprep.subr.bf16.mxu0 %v891
    %2362 = vmatpush1.bf16.msra.mxu0 %v890
    %2363 = vmatprep.subr.bf16.mxu0 %v887
    %2364 = vmatpush1.bf16.msra.mxu0 %v886
    %2365 = vmatprep.subr.bf16.mxu0 %v883
    %2366 = vmatpush1.bf16.msra.mxu0 %v882
    %2367 = vmatprep.subr.bf16.mxu0 %v879
    %2368 = vmatpush1.bf16.msra.mxu0 %v878
    %2369 = vmatprep.subr.bf16.mxu0 %v939
    %2370 = vmatpush2.bf16.msra.mxu0 %v938
    %2371 = vmatprep.subr.bf16.mxu0 %v935
    %2372 = vmatpush2.bf16.msra.mxu0 %v934
    %2373 = vmatprep.subr.bf16.mxu0 %v931
    %2374 = vmatpush2.bf16.msra.mxu0 %v930
    %2375 = vmatprep.subr.bf16.mxu0 %v927
    %2376 = vmatpush2.bf16.msra.mxu0 %v926
    %2377 = vmatprep.subr.bf16.mxu0 %v923
    %2378 = vmatpush2.bf16.msra.mxu0 %v922
    %2379 = vmatprep.subr.bf16.mxu0 %v919
    %2380 = vmatpush2.bf16.msra.mxu0 %v918
    %2381 = vmatprep.subr.bf16.mxu0 %v915
    %2382 = vmatpush2.bf16.msra.mxu0 %v914
    %2383 = vmatprep.subr.bf16.mxu0 %v911
    %2384 = vmatpush2.bf16.msra.mxu0 %v910
    %2385 = vmatprep.mubr.bf16.mxu0 %v2311
    %2386 = vmatmul.mubr.bf16.gmra.mxu0 %v2310
    %v2387 = vpop.f32.mrf.mxu0
    %v2388 = vadd.f32 %v403, %v2387
    %v2389 = vpop.f32.mrf.mxu0
    %v2390 = vadd.f32 %v407, %v2389
    %v2391 = vpop.f32.mrf.mxu0
    %v2392 = vpop.f32.mrf.mxu0
    %2393 = vdwg.mxu0
    %v2394 = vxor.u32 %v2347, 2147483648
    %v2395 = vmul.f32 %v2394, 1.442695
    %v2396 = vpow.pop %v2395
    %v2397 = vadd.f32 %v2396, 1.0
    %v2398 = vrcp.pop %v2397
    %v2399 = vmul.f32 1.0, %v2398
    %v2400 = vxor.u32 %v2349, 2147483648
    %v2401 = vmul.f32 %v2400, 1.442695
    %v2402 = vpow.pop %v2401
    %v2403 = vadd.f32 %v2402, 1.0
    %v2404 = vrcp.pop %v2403
    %v2405 = vmul.f32 1.0, %v2404
    %v2406 = vtanh.pop %v2388
    %v2407 = vxor.u32 %v2390, 2147483648
    %v2408 = vmul.f32 %v2407, 1.442695
    %v2409 = vpow.pop %v2408
    %v2410 = vadd.f32 %v2409, 1.0
    %v2411 = vrcp.pop %v2410
    %v2412 = vmul.f32 1.0, %v2411
    %v2413 = vmul.f32 %v2405, %v2197
    %v2414 = vmul.f32 %v2399, %v2406
    %v2415 = vadd.f32 %v2413, %v2414
    %v2416 = vtanh.pop %v2415
    %v2417 = vmul.f32 %v2412, %v2416
    %2418 = vmatprep.subr.bf16.mxu0 %v537
    %2419 = vmatpush1.bf16.msra.mxu0 %v536
    %2420 = vmatprep.subr.bf16.mxu0 %v533
    %2421 = vmatpush1.bf16.msra.mxu0 %v532
    %2422 = vmatprep.subr.bf16.mxu0 %v529
    %2423 = vmatpush1.bf16.msra.mxu0 %v528
    %2424 = vmatprep.subr.bf16.mxu0 %v525
    %2425 = vmatpush1.bf16.msra.mxu0 %v524
    %2426 = vmatprep.subr.bf16.mxu0 %v521
    %2427 = vmatpush1.bf16.msra.mxu0 %v520
    %2428 = vmatprep.subr.bf16.mxu0 %v517
    %2429 = vmatpush1.bf16.msra.mxu0 %v516
    %2430 = vmatprep.subr.bf16.mxu0 %v513
    %2431 = vmatpush1.bf16.msra.mxu0 %v512
    %2432 = vmatprep.subr.bf16.mxu0 %v509
    %2433 = vmatpush1.bf16.msra.mxu0 %v508
    %2434 = vmatprep.subr.bf16.mxu0 0
    %2435 = vmatpush2.bf16.msra.mxu0 0
    %2436 = vmatprep.subr.bf16.mxu0 0
    %2437 = vmatpush2.bf16.msra.mxu0 0
    %2438 = vmatprep.subr.bf16.mxu0 0
    %2439 = vmatpush2.bf16.msra.mxu0 0
    %2440 = vmatprep.subr.bf16.mxu0 0
    %2441 = vmatpush2.bf16.msra.mxu0 0
    %2442 = vmatprep.subr.bf16.mxu0 0
    %2443 = vmatpush2.bf16.msra.mxu0 0
    %2444 = vmatprep.subr.bf16.mxu0 0
    %2445 = vmatpush2.bf16.msra.mxu0 0
    %2446 = vmatprep.subr.bf16.mxu0 0
    %2447 = vmatpush2.bf16.msra.mxu0 0
    %2448 = vmatprep.subr.bf16.mxu0 0
    %2449 = vmatpush2.bf16.msra.mxu0 0
    %2450 = vmatprep.mubr.bf16.mxu0 0
    %2451 = vmatmul.mubr.bf16.gmra.mxu0 %v2310
    %v2452 = vpop.f32.mrf.mxu0
    %v2453 = vadd.f32 0.0, %v2452
    %v2454 = vpop.f32.mrf.mxu0
    %v2455 = vadd.f32 0.0, %v2454
    %v2456 = vpop.f32.mrf.mxu0
    %v2457 = vpop.f32.mrf.mxu0
    %2458 = vdwg.mxu0
    %2459 = vmatprep.subr.bf16.mxu0 %v539
    %2460 = vmatpush1.bf16.msra.mxu0 %v538
    %2461 = vmatprep.subr.bf16.mxu0 %v535
    %2462 = vmatpush1.bf16.msra.mxu0 %v534
    %2463 = vmatprep.subr.bf16.mxu0 %v531
    %2464 = vmatpush1.bf16.msra.mxu0 %v530
    %2465 = vmatprep.subr.bf16.mxu0 %v527
    %2466 = vmatpush1.bf16.msra.mxu0 %v526
    %2467 = vmatprep.subr.bf16.mxu0 %v523
    %2468 = vmatpush1.bf16.msra.mxu0 %v522
    %2469 = vmatprep.subr.bf16.mxu0 %v519
    %2470 = vmatpush1.bf16.msra.mxu0 %v518
    %2471 = vmatprep.subr.bf16.mxu0 %v515
    %2472 = vmatpush1.bf16.msra.mxu0 %v514
    %2473 = vmatprep.subr.bf16.mxu0 %v511
    %2474 = vmatpush1.bf16.msra.mxu0 %v510
    %2475 = vmatprep.subr.bf16.mxu0 0
    %2476 = vmatpush2.bf16.msra.mxu0 0
    %2477 = vmatprep.subr.bf16.mxu0 0
    %2478 = vmatpush2.bf16.msra.mxu0 0
    %2479 = vmatprep.subr.bf16.mxu0 0
    %2480 = vmatpush2.bf16.msra.mxu0 0
    %2481 = vmatprep.subr.bf16.mxu0 0
    %2482 = vmatpush2.bf16.msra.mxu0 0
    %2483 = vmatprep.subr.bf16.mxu0 0
    %2484 = vmatpush2.bf16.msra.mxu0 0
    %2485 = vmatprep.subr.bf16.mxu0 0
    %2486 = vmatpush2.bf16.msra.mxu0 0
    %2487 = vmatprep.subr.bf16.mxu0 0
    %2488 = vmatpush2.bf16.msra.mxu0 0
    %2489 = vmatprep.subr.bf16.mxu0 0
    %2490 = vmatpush2.bf16.msra.mxu0 0
    %2491 = vmatprep.mubr.bf16.mxu0 0
    %2492 = vmatmul.mubr.bf16.gmra.mxu0 %v2310
    %v2493 = vpop.f32.mrf.mxu0
    %v2494 = vadd.f32 0.0, %v2493
    %v2495 = vpop.f32.mrf.mxu0
    %v2496 = vadd.f32 0.0, %v2495
    %v2497 = vpop.f32.mrf.mxu0
    %v2498 = vpop.f32.mrf.mxu0
    %2499 = vdwg.mxu0
    %v2500 = vadd.f32 %v217, %v2453
    %v2501 = vadd.f32 %v219, %v2455
    %v2502 = vadd.f32 %v290, %v2494
    %v2503 = vadd.f32 %v292, %v2496
    %v2504 = vxor.u32 %v2500, 2147483648
    %v2505 = vmul.f32 %v2504, 1.442695
    %v2506 = vpow.pop %v2505
    %v2507 = vadd.f32 %v2506, 1.0
    %v2508 = vrcp.pop %v2507
    %v2509 = vmul.f32 1.0, %v2508
    %v2510 = vxor.u32 %v2501, 2147483648
    %v2511 = vmul.f32 %v2510, 1.442695
    %v2512 = vpow.pop %v2511
    %v2513 = vadd.f32 %v2512, 1.0
    %v2514 = vrcp.pop %v2513
    %v2515 = vmul.f32 1.0, %v2514
    %v2516 = vtanh.pop %v2502
    %v2517 = vxor.u32 %v2503, 2147483648
    %v2518 = vmul.f32 %v2517, 1.442695
    %v2519 = vpow.pop %v2518
    %v2520 = vadd.f32 %v2519, 1.0
    %v2521 = vrcp.pop %v2520
    %v2522 = vmul.f32 1.0, %v2521
    %v2523 = vmul.f32 %v2515, %v2307
    %v2524 = vmul.f32 %v2509, %v2516
    %v2525 = vadd.f32 %v2523, %v2524
    %v2526 = vtanh.pop %v2525
    %v2527 = vmul.f32 %v2522, %v2526
    %v2528 = vpack.c.bf16 %v2527, %v2527
    %v2529 = vpack.c.bf16 %v2417, %v2417
    %2530 = vmatprep.subr.bf16.mxu0 %v905
    %2531 = vmatpush1.bf16.msra.mxu0 %v904
    %2532 = vmatprep.subr.bf16.mxu0 %v901
    %2533 = vmatpush1.bf16.msra.mxu0 %v900
    %2534 = vmatprep.subr.bf16.mxu0 %v897
    %2535 = vmatpush1.bf16.msra.mxu0 %v896
    %2536 = vmatprep.subr.bf16.mxu0 %v893
    %2537 = vmatpush1.bf16.msra.mxu0 %v892
    %2538 = vmatprep.subr.bf16.mxu0 %v889
    %2539 = vmatpush1.bf16.msra.mxu0 %v888
    %2540 = vmatprep.subr.bf16.mxu0 %v885
    %2541 = vmatpush1.bf16.msra.mxu0 %v884
    %2542 = vmatprep.subr.bf16.mxu0 %v881
    %2543 = vmatpush1.bf16.msra.mxu0 %v880
    %2544 = vmatprep.subr.bf16.mxu0 %v877
    %2545 = vmatpush1.bf16.msra.mxu0 %v876
    %2546 = vmatprep.subr.bf16.mxu0 %v937
    %2547 = vmatpush2.bf16.msra.mxu0 %v936
    %2548 = vmatprep.subr.bf16.mxu0 %v933
    %2549 = vmatpush2.bf16.msra.mxu0 %v932
    %2550 = vmatprep.subr.bf16.mxu0 %v929
    %2551 = vmatpush2.bf16.msra.mxu0 %v928
    %2552 = vmatprep.subr.bf16.mxu0 %v925
    %2553 = vmatpush2.bf16.msra.mxu0 %v924
    %2554 = vmatprep.subr.bf16.mxu0 %v921
    %2555 = vmatpush2.bf16.msra.mxu0 %v920
    %2556 = vmatprep.subr.bf16.mxu0 %v917
    %2557 = vmatpush2.bf16.msra.mxu0 %v916
    %2558 = vmatprep.subr.bf16.mxu0 %v913
    %2559 = vmatpush2.bf16.msra.mxu0 %v912
    %2560 = vmatprep.subr.bf16.mxu0 %v909
    %2561 = vmatpush2.bf16.msra.mxu0 %v908
    %2562 = vmatprep.mubr.bf16.mxu0 %v2529
    %2563 = vmatmul.mubr.bf16.gmra.mxu0 %v2528
    %v2564 = vpop.f32.mrf.mxu0
    %v2565 = vadd.f32 %v395, %v2564
    %v2566 = vpop.f32.mrf.mxu0
    %v2567 = vadd.f32 %v399, %v2566
    %v2568 = vpop.f32.mrf.mxu0
    %v2569 = vpop.f32.mrf.mxu0
    %2570 = vdwg.mxu0
    %2571 = vmatprep.subr.bf16.mxu0 %v907
    %2572 = vmatpush1.bf16.msra.mxu0 %v906
    %2573 = vmatprep.subr.bf16.mxu0 %v903
    %2574 = vmatpush1.bf16.msra.mxu0 %v902
    %2575 = vmatprep.subr.bf16.mxu0 %v899
    %2576 = vmatpush1.bf16.msra.mxu0 %v898
    %2577 = vmatprep.subr.bf16.mxu0 %v895
    %2578 = vmatpush1.bf16.msra.mxu0 %v894
    %2579 = vmatprep.subr.bf16.mxu0 %v891
    %2580 = vmatpush1.bf16.msra.mxu0 %v890
    %2581 = vmatprep.subr.bf16.mxu0 %v887
    %2582 = vmatpush1.bf16.msra.mxu0 %v886
    %2583 = vmatprep.subr.bf16.mxu0 %v883
    %2584 = vmatpush1.bf16.msra.mxu0 %v882
    %2585 = vmatprep.subr.bf16.mxu0 %v879
    %2586 = vmatpush1.bf16.msra.mxu0 %v878
    %2587 = vmatprep.subr.bf16.mxu0 %v939
    %2588 = vmatpush2.bf16.msra.mxu0 %v938
    %2589 = vmatprep.subr.bf16.mxu0 %v935
    %2590 = vmatpush2.bf16.msra.mxu0 %v934
    %2591 = vmatprep.subr.bf16.mxu0 %v931
    %2592 = vmatpush2.bf16.msra.mxu0 %v930
    %2593 = vmatprep.subr.bf16.mxu0 %v927
    %2594 = vmatpush2.bf16.msra.mxu0 %v926
    %2595 = vmatprep.subr.bf16.mxu0 %v923
    %2596 = vmatpush2.bf16.msra.mxu0 %v922
    %2597 = vmatprep.subr.bf16.mxu0 %v919
    %2598 = vmatpush2.bf16.msra.mxu0 %v918
    %2599 = vmatprep.subr.bf16.mxu0 %v915
    %2600 = vmatpush2.bf16.msra.mxu0 %v914
    %2601 = vmatprep.subr.bf16.mxu0 %v911
    %2602 = vmatpush2.bf16.msra.mxu0 %v910
    %2603 = vmatprep.mubr.bf16.mxu0 %v2529
    %2604 = vmatmul.mubr.bf16.gmra.mxu0 %v2528
    %v2605 = vpop.f32.mrf.mxu0
    %v2606 = vadd.f32 %v403, %v2605
    %v2607 = vpop.f32.mrf.mxu0
    %v2608 = vadd.f32 %v407, %v2607
    %v2609 = vpop.f32.mrf.mxu0
    %v2610 = vpop.f32.mrf.mxu0
    %2611 = vdwg.mxu0
    %v2612 = vxor.u32 %v2565, 2147483648
    %v2613 = vmul.f32 %v2612, 1.442695
    %v2614 = vpow.pop %v2613
    %v2615 = vadd.f32 %v2614, 1.0
    %v2616 = vrcp.pop %v2615
    %v2617 = vmul.f32 1.0, %v2616
    %v2618 = vxor.u32 %v2567, 2147483648
    %v2619 = vmul.f32 %v2618, 1.442695
    %v2620 = vpow.pop %v2619
    %v2621 = vadd.f32 %v2620, 1.0
    %v2622 = vrcp.pop %v2621
    %v2623 = vmul.f32 1.0, %v2622
    %v2624 = vtanh.pop %v2606
    %v2625 = vxor.u32 %v2608, 2147483648
    %v2626 = vmul.f32 %v2625, 1.442695
    %v2627 = vpow.pop %v2626
    %v2628 = vadd.f32 %v2627, 1.0
    %v2629 = vrcp.pop %v2628
    %v2630 = vmul.f32 1.0, %v2629
    %v2631 = vmul.f32 %v2623, %v2415
    %v2632 = vmul.f32 %v2617, %v2624
    %v2633 = vadd.f32 %v2631, %v2632
    %v2634 = vtanh.pop %v2633
    %v2635 = vmul.f32 %v2630, %v2634
    %v2636 = vld [vmem:[%s1] sm:$0xff]
    %v2637 = vpack.c.bf16 %v2635, %v2635
    %v2638 = vpack.c.bf16 %v2636, %v2636
    %v2639 = vld [vmem:[%s7] sm:$0xf]
    %v2640 = vld [vmem:[%s7 + $0x4] sm:$0xf]
    %v2641 = vld [vmem:[%s7 + $0x8] sm:$0xf]
    %v2642 = vld [vmem:[%s7 + $0xc] sm:$0xf]
    %v2643 = vld [vmem:[%s7 + $0x10] sm:$0xf]
    %v2644 = vld [vmem:[%s7 + $0x14] sm:$0xf]
    %v2645 = vld [vmem:[%s7 + $0x18] sm:$0xf]
    %v2646 = vld [vmem:[%s7 + $0x1c] sm:$0xf]
    %v2647 = vld [vmem:[%s7 + $0x20] sm:$0xf]
    %v2648 = vld [vmem:[%s7 + $0x24] sm:$0xf]
    %v2649 = vld [vmem:[%s7 + $0x28] sm:$0xf]
    %v2650 = vld [vmem:[%s7 + $0x2c] sm:$0xf]
    %v2651 = vld [vmem:[%s7 + $0x30] sm:$0xf]
    %v2652 = vld [vmem:[%s7 + $0x34] sm:$0xf]
    %v2653 = vld [vmem:[%s7 + $0x38] sm:$0xf]
    %v2654 = vld [vmem:[%s7 + $0x3c] sm:$0xf]
    %v2655 = vld [vmem:[%s7 + $0x40] sm:$0xf]
    %v2656 = vld [vmem:[%s7 + $0x44] sm:$0xf]
    %v2657 = vld [vmem:[%s7 + $0x48] sm:$0xf]
    %v2658 = vld [vmem:[%s7 + $0x4c] sm:$0xf]
    %v2659 = vld [vmem:[%s7 + $0x50] sm:$0xf]
    %v2660 = vld [vmem:[%s7 + $0x54] sm:$0xf]
    %v2661 = vld [vmem:[%s7 + $0x58] sm:$0xf]
    %v2662 = vld [vmem:[%s7 + $0x5c] sm:$0xf]
    %v2663 = vld [vmem:[%s7 + $0x60] sm:$0xf]
    %v2664 = vld [vmem:[%s7 + $0x64] sm:$0xf]
    %v2665 = vld [vmem:[%s7 + $0x68] sm:$0xf]
    %v2666 = vld [vmem:[%s7 + $0x6c] sm:$0xf]
    %v2667 = vld [vmem:[%s7 + $0x70] sm:$0xf]
    %v2668 = vld [vmem:[%s7 + $0x74] sm:$0xf]
    %v2669 = vld [vmem:[%s7 + $0x78] sm:$0xf]
    %v2670 = vld [vmem:[%s7 + $0x7c] sm:$0xf]
    %v2671 = vld [vmem:[%s8] sm:$0x1]
    %v2673 = vlaneseq
    %v2674 = vshrl.u32 %v2673, 7
    %v2675 = vsub.s32 0, %v2674
    %v2676 = vrot.slane %v2671, %v2675
    %v2710 = vunpack.c.l.b16 %v2639
    %v2711 = vunpack.c.l.b16 %v2640
    %v2712 = vunpack.c.l.b16 %v2641
    %v2713 = vunpack.c.l.b16 %v2642
    %v2714 = vunpack.c.l.b16 %v2643
    %v2715 = vunpack.c.l.b16 %v2644
    %v2716 = vunpack.c.l.b16 %v2645
    %v2717 = vunpack.c.l.b16 %v2646
    %v2718 = vunpack.c.l.b16 %v2647
    %v2719 = vunpack.c.l.b16 %v2648
    %v2720 = vunpack.c.l.b16 %v2649
    %v2721 = vunpack.c.l.b16 %v2650
    %v2722 = vunpack.c.l.b16 %v2651
    %v2723 = vunpack.c.l.b16 %v2652
    %v2724 = vunpack.c.l.b16 %v2653
    %v2725 = vunpack.c.l.b16 %v2654
    %v2726 = vunpack.c.l.b16 %v2655
    %v2727 = vunpack.c.l.b16 %v2656
    %v2728 = vunpack.c.l.b16 %v2657
    %v2729 = vunpack.c.l.b16 %v2658
    %v2730 = vunpack.c.l.b16 %v2659
    %v2731 = vunpack.c.l.b16 %v2660
    %v2732 = vunpack.c.l.b16 %v2661
    %v2733 = vunpack.c.l.b16 %v2662
    %v2734 = vunpack.c.l.b16 %v2663
    %v2735 = vunpack.c.l.b16 %v2664
    %v2736 = vunpack.c.l.b16 %v2665
    %v2737 = vunpack.c.l.b16 %v2666
    %v2738 = vunpack.c.l.b16 %v2667
    %v2739 = vunpack.c.l.b16 %v2668
    %v2740 = vunpack.c.l.b16 %v2669
    %v2741 = vunpack.c.l.b16 %v2670
    %v2742 = vpack.c.b16 %v2711, %v2710
    %v2743 = vpack.c.b16 %v2713, %v2712
    %v2744 = vpack.c.b16 %v2715, %v2714
    %v2745 = vpack.c.b16 %v2717, %v2716
    %v2746 = vpack.c.b16 %v2719, %v2718
    %v2747 = vpack.c.b16 %v2721, %v2720
    %v2748 = vpack.c.b16 %v2723, %v2722
    %v2749 = vpack.c.b16 %v2725, %v2724
    %v2750 = vpack.c.b16 %v2727, %v2726
    %v2751 = vpack.c.b16 %v2729, %v2728
    %v2752 = vpack.c.b16 %v2731, %v2730
    %v2753 = vpack.c.b16 %v2733, %v2732
    %v2754 = vpack.c.b16 %v2735, %v2734
    %v2755 = vpack.c.b16 %v2737, %v2736
    %v2756 = vpack.c.b16 %v2739, %v2738
    %v2757 = vpack.c.b16 %v2741, %v2740
    %2774 = vmatprep.subr.bf16.mxu0 0
    %2775 = vmatpush1.bf16.msra.mxu0 %v2749
    %2776 = vmatprep.subr.bf16.mxu0 0
    %2777 = vmatpush1.bf16.msra.mxu0 %v2748
    %2778 = vmatprep.subr.bf16.mxu0 0
    %2779 = vmatpush1.bf16.msra.mxu0 %v2747
    %2780 = vmatprep.subr.bf16.mxu0 0
    %2781 = vmatpush1.bf16.msra.mxu0 %v2746
    %2782 = vmatprep.subr.bf16.mxu0 0
    %2783 = vmatpush1.bf16.msra.mxu0 %v2745
    %2784 = vmatprep.subr.bf16.mxu0 0
    %2785 = vmatpush1.bf16.msra.mxu0 %v2744
    %2786 = vmatprep.subr.bf16.mxu0 0
    %2787 = vmatpush1.bf16.msra.mxu0 %v2743
    %2788 = vmatprep.subr.bf16.mxu0 0
    %2789 = vmatpush1.bf16.msra.mxu0 %v2742
    %2790 = vmatprep.subr.bf16.mxu0 0
    %2791 = vmatpush2.bf16.msra.mxu0 %v2757
    %2792 = vmatprep.subr.bf16.mxu0 0
    %2793 = vmatpush2.bf16.msra.mxu0 %v2756
    %2794 = vmatprep.subr.bf16.mxu0 0
    %2795 = vmatpush2.bf16.msra.mxu0 %v2755
    %2796 = vmatprep.subr.bf16.mxu0 0
    %2797 = vmatpush2.bf16.msra.mxu0 %v2754
    %2798 = vmatprep.subr.bf16.mxu0 0
    %2799 = vmatpush2.bf16.msra.mxu0 %v2753
    %2800 = vmatprep.subr.bf16.mxu0 0
    %2801 = vmatpush2.bf16.msra.mxu0 %v2752
    %2802 = vmatprep.subr.bf16.mxu0 0
    %2803 = vmatpush2.bf16.msra.mxu0 %v2751
    %2804 = vmatprep.subr.bf16.mxu0 0
    %2805 = vmatpush2.bf16.msra.mxu0 %v2750
    %2806 = vmatprep.mubr.bf16.mxu0 %v2638
    %2807 = vmatmul.mubr.bf16.gmra.mxu0 %v2637
    %v2808 = vpop.f32.mrf.mxu0
    %v2809 = vadd.f32 %v2676, %v2808
    %v2810 = vpop.f32.mrf.mxu0
    %v2811 = vpop.f32.mrf.mxu0
    %v2812 = vpop.f32.mrf.mxu0
    %2813 = vdwg.mxu0
    %v2814 = vmax.f32 %v2809, 0.0
    %v2815 = vpack.c.bf16 %v2814, %v2814
    %v2816 = vld [vmem:[%s9] sm:$0xf]
    %v2817 = vld [vmem:[%s9 + $0x4] sm:$0xf]
    %v2818 = vld [vmem:[%s9 + $0x8] sm:$0xf]
    %v2819 = vld [vmem:[%s9 + $0xc] sm:$0xf]
    %v2820 = vld [vmem:[%s10] sm:$0x1]
    %v2822 = vlaneseq
    %v2823 = vshrl.u32 %v2822, 7
    %v2824 = vsub.s32 0, %v2823
    %v2825 = vrot.slane %v2820, %v2824
    %v2831 = vunpack.c.l.b16 %v2816
    %v2832 = vunpack.c.l.b16 %v2817
    %v2833 = vunpack.c.l.b16 %v2818
    %v2834 = vunpack.c.l.b16 %v2819
    %v2835 = vpack.c.b16 %v2832, %v2831
    %v2836 = vpack.c.b16 %v2834, %v2833
    %vm2839 = vcmask 261120
    %v2841 = vsel %vm2839, %v2815, 0
    %2843 = vmatprep.subr.bf16.mxu0 0
    %2844 = vmatpush1.bf16.msra.mxu0 0
    %2845 = vmatprep.subr.bf16.mxu0 0
    %2846 = vmatpush1.bf16.msra.mxu0 0
    %2847 = vmatprep.subr.bf16.mxu0 0
    %2848 = vmatpush1.bf16.msra.mxu0 0
    %2849 = vmatprep.subr.bf16.mxu0 0
    %2850 = vmatpush1.bf16.msra.mxu0 0
    %2851 = vmatprep.subr.bf16.mxu0 0
    %2852 = vmatpush1.bf16.msra.mxu0 0
    %2853 = vmatprep.subr.bf16.mxu0 0
    %2854 = vmatpush1.bf16.msra.mxu0 0
    %2855 = vmatprep.subr.bf16.mxu0 0
    %2856 = vmatpush1.bf16.msra.mxu0 %v2836
    %2857 = vmatprep.subr.bf16.mxu0 0
    %2858 = vmatpush1.bf16.msra.mxu0 %v2835
    %2859 = vmatprep.subr.bf16.mxu0 0
    %2860 = vmatpush2.bf16.msra.mxu0 0
    %2861 = vmatprep.subr.bf16.mxu0 0
    %2862 = vmatpush2.bf16.msra.mxu0 0
    %2863 = vmatprep.subr.bf16.mxu0 0
    %2864 = vmatpush2.bf16.msra.mxu0 0
    %2865 = vmatprep.subr.bf16.mxu0 0
    %2866 = vmatpush2.bf16.msra.mxu0 0
    %2867 = vmatprep.subr.bf16.mxu0 0
    %2868 = vmatpush2.bf16.msra.mxu0 0
    %2869 = vmatprep.subr.bf16.mxu0 0
    %2870 = vmatpush2.bf16.msra.mxu0 0
    %2871 = vmatprep.subr.bf16.mxu0 0
    %2872 = vmatpush2.bf16.msra.mxu0 0
    %2873 = vmatprep.subr.bf16.mxu0 0
    %2874 = vmatpush2.bf16.msra.mxu0 0
    %2875 = vmatprep.mubr.bf16.mxu0 0
    %2876 = vmatmul.mubr.bf16.gmra.mxu0 %v2841
    %v2877 = vpop.f32.mrf.mxu0
    %v2878 = vadd.f32 %v2825, %v2877
    %v2879 = vpop.f32.mrf.mxu0
    %v2880 = vpop.f32.mrf.mxu0
    %v2881 = vpop.f32.mrf.mxu0
    %2882 = vdwg.mxu0
    %2883 = vst [vmem:[#allocation7] sm:$0xff] %v2878
    // Predicated region
    $region54: #{tpu_custom_call.1} parent=1 // pred_check
      _
    $region55: #{tpu_custom_call.1} parent=1 // pred_check_branch
      %2885 = sbr.rel (0) target = $region57
    $region56: #{tpu_custom_call.1} parent=1 // pred_region
      %s2887 = ssub.s32 128, 128
      %2888 = vsyncadd [#allocation4], %s2887
      %s2890 = sshll.u32 [#allocation7], 4
      %s2891 = int_to_ptr.vmem [resolvable:$true] %s2890
      %2893 = dma.vmem_to_hbm [thread:$0]  %s2891, 128, %s11, [#allocation4]
    $region57: #{tpu_custom_call.1} parent=1 // pred_fallthru
      _
    // Predicated region
    $region58: #{tpu_custom_call.1} parent=1 // pred_check
      _
    $region59: #{tpu_custom_call.1} parent=1 // pred_check_branch
      %2895 = sbr.rel (0) target = $region61
    $region60: #{tpu_custom_call.1} parent=1 // pred_region
      %2896 = dma.done [#allocation4], 128
    $region61: #{tpu_custom_call.1} parent=1 // pred_fallthru
      _
    %2897 = vsyncpa [#allocation3], 1
    %2898 = vsyncpa [#allocation6], 1
    %2899 = vsyncpa [#allocation4], 1

</llo_original>
